<compile_context>
chip_gen: v7x
topology: tpu7x:2x2x1
jax: 0.10.0
libtpu: 0.0.40
codegen_flags: <defaults>
</compile_context>

<pallas_src>
import math
from functools import partial

import jax
import jax.numpy as jnp
from jax import lax
from jax.experimental import pallas as pl
from jax.experimental.pallas import tpu as pltpu


def _default_vmem_limit():
    # v5e / v6e have 128 MiB VMEM per core -> allow 96 MiB scoped; v7x has only
    # 64 MiB per TensorCore -> keep 48 MiB headroom.  Fallback is v7x-safe.
    try:
        cap = int(pltpu.get_tpu_info().vmem_capacity_bytes)
        if cap >= 128 * (1 << 20):
            return 96 * (1 << 20)
    except Exception:
        pass
    return 48 * (1 << 20)


_VMEM_LIMIT = _default_vmem_limit()


def _pick_tile(dim, target, step=128):
    """Largest `step`-aligned tile <= target that divides dim.

    Falls through smaller aligned candidates instead of jumping to the whole
    axis; only returns the full dim when the axis itself is <= target.
    """
    if dim <= target:
        return dim
    t = (target // step) * step
    while t >= step:
        if dim % t == 0:
            return t
        t -= step
    # Ragged axis with no aligned divisor: largest divisor <= target.
    for t in range(min(target, dim), 0, -1):
        if dim % t == 0:
            return t
    return dim


def _heads_per_block(n_heads, head_dim, target=512):
    """Heads per head-group so that a group is ~512 lanes wide."""
    hb = max(1, min(n_heads, target // max(head_dim, 1)))
    while n_heads % hb:
        hb -= 1
    return hb


# ---------------------------------------------------------------------------
# Kernel A: RMSNorm + fused QKV projection + whole-tile RoPE
#   grid = (head_group, B, S/ts)  -- head_group OUTERMOST so the (E, tn)
#   weight tiles are only re-fetched n_groups times.
#   q/k weight columns are pre-permuted per group to [re... | im...] so RoPE is
#   t*cos + roll(t, tn/2)*sin with pre-tiled (S, tn) tables.
# ---------------------------------------------------------------------------

def _norm_qkv_rope_kernel(x_ref, nw_ref, wq_ref, wk_ref, wv_ref, cos_ref, sin_ref,
                          q_ref, k_ref, v_ref, *, eps, tn):
    x = x_ref[...].astype(jnp.float32)                        # (ts, E)
    var = jnp.mean(x * x, axis=-1, keepdims=True)
    xn = (x * lax.rsqrt(var + eps) * nw_ref[...]).astype(jnp.bfloat16)

    cos = cos_ref[...]                                        # (ts, tn) f32
    sin = sin_ref[...]                                        # sign already folded in

    def project_rope(w_ref, out_ref):
        t = jnp.dot(xn, w_ref[...], preferred_element_type=jnp.float32)
        # Group layout is [re_h0..re_hk | im_h0..im_hk]; rolling by tn//2 swaps
        # the halves (XLU), so RoPE is two full-width VPU muls + one add.
        rot = pltpu.roll(t, shift=tn // 2, axis=1)
        out_ref[...] = (t * cos + rot * sin).astype(out_ref.dtype)

    project_rope(wq_ref, q_ref)
    project_rope(wk_ref, k_ref)
    v_ref[...] = jnp.dot(xn, wv_ref[...],
                         preferred_element_type=jnp.float32).astype(v_ref.dtype)


def _rope_tables(freqs_cos, freqs_sin, heads_per_block):
    """(S, tn) cos / signed-sin tables matching the per-group [re|im] layout."""
    cos = jnp.tile(freqs_cos, (1, 2 * heads_per_block))
    sin = jnp.concatenate([-jnp.tile(freqs_sin, (1, heads_per_block)),
                           jnp.tile(freqs_sin, (1, heads_per_block))], axis=-1)
    return cos.astype(jnp.float32), sin.astype(jnp.float32)


def fused_norm_qkv_rope(x, p, freqs_cos, freqs_sin, n_heads, head_dim, eps):
    B, S, E = x.shape
    HD = n_heads * head_dim
    hb = p["heads_per_block"]
    tn = hb * head_dim
    n_groups = n_heads // hb
    ts = _pick_tile(S, 256)

    cos_tab, sin_tab = _rope_tables(freqs_cos, freqs_sin, hb)

    kernel = partial(_norm_qkv_rope_kernel, eps=eps, tn=tn)

    x_spec = pl.BlockSpec((None, ts, E), lambda hg, b, s: (b, s, 0))
    nw_spec = pl.BlockSpec((1, E), lambda hg, b, s: (0, 0))
    w_spec = pl.BlockSpec((E, tn), lambda hg, b, s: (0, hg))
    tab_spec = pl.BlockSpec((ts, tn), lambda hg, b, s: (s, 0))
    out_spec = pl.BlockSpec((None, ts, tn), lambda hg, b, s: (b, s, hg))

    out_shape = tuple(jax.ShapeDtypeStruct((B, S, HD), jnp.bfloat16)
                      for _ in range(3))

    q, k, v = pl.pallas_call(
        kernel,
        grid=(n_groups, B, S // ts),
        in_specs=[x_spec, nw_spec, w_spec, w_spec, w_spec, tab_spec, tab_spec],
        out_specs=(out_spec, out_spec, out_spec),
        out_shape=out_shape,
        compiler_params=pltpu.CompilerParams(
            dimension_semantics=("parallel", "parallel", "parallel"),
            vmem_limit_bytes=_VMEM_LIMIT),
    )(x, p["attn_norm"], p["wq_t"], p["wk_t"], p["wv_t"], cos_tab, sin_tab)
    return q, k, v


# ---------------------------------------------------------------------------
# Kernel B: flash attention (online softmax, causal mask, head-group grid axis)
#   q/k arrive in the per-group [re|im] layout (same permutation on q and k, so
#   per-head dot products are unchanged); v and the output use the original
#   per-head layout.  start_pos is a runtime SMEM scalar.
# ---------------------------------------------------------------------------

def _flash_attn_kernel(sp_ref, q_ref, k_ref, v_ref, o_ref, m_sc, l_sc, acc_sc, *,
                       heads_per_block, head_dim, scale, tq, tk):
    qi = pl.program_id(2)
    ki = pl.program_id(3)
    start_pos = sp_ref[0]
    hb = heads_per_block
    half = head_dim // 2

    @pl.when(ki == 0)
    def _init():
        m_sc[...] = jnp.full_like(m_sc, -jnp.inf)
        l_sc[...] = jnp.zeros_like(l_sc)
        acc_sc[...] = jnp.zeros_like(acc_sc)

    # Skip kv tiles that lie entirely above the causal diagonal.
    @pl.when(ki * tk <= qi * tq + (tq - 1) + start_pos)
    def _compute():
        q = q_ref[...]                                        # (tq, hb*Dh) bf16
        k = k_ref[...]                                        # (tk, hb*Dh) bf16
        v = v_ref[...]                                        # (tk, hb*Dh) bf16
        rows = qi * tq + lax.broadcasted_iota(jnp.int32, (tq, tk), 0)
        cols = ki * tk + lax.broadcasted_iota(jnp.int32, (tq, tk), 1)
        allow = cols <= rows + start_pos                      # causal mask

        for j in range(hb):                                   # tiny static unroll
            re = slice(j * half, (j + 1) * half)
            im = slice(hb * half + j * half, hb * half + (j + 1) * half)
            # q.k split over the [re|im] halves == full per-head contraction.
            s = (lax.dot_general(q[:, re], k[:, re], (((1,), (1,)), ((), ())),
                                 preferred_element_type=jnp.float32) +
                 lax.dot_general(q[:, im], k[:, im], (((1,), (1,)), ((), ())),
                                 preferred_element_type=jnp.float32)) * scale
            s = jnp.where(allow, s, -1e30)

            m_prev = m_sc[j]                                  # (tq, 1) f32
            m_new = jnp.maximum(m_prev, jnp.max(s, axis=-1, keepdims=True))
            # bf16 exp keeps the single EUP slot off the critical path on
            # v6e/v7x (harmless on v5e); accumulators stay f32.
            alpha = jnp.exp((m_prev - m_new).astype(jnp.bfloat16))
            ps = jnp.exp((s - m_new).astype(jnp.bfloat16))
            l_sc[j] = alpha * l_sc[j] + jnp.sum(ps, axis=-1, keepdims=True,
                                                dtype=jnp.float32)
            acc_sc[j] = alpha * acc_sc[j] + lax.dot_general(
                ps, v[:, j * head_dim:(j + 1) * head_dim],
                (((1,), (0,)), ((), ())), preferred_element_type=jnp.float32)
            m_sc[j] = m_new

    @pl.when(ki == pl.num_programs(3) - 1)
    def _finalize():
        for j in range(hb):
            inv = pl.reciprocal(l_sc[j], approx=True)         # EUP, ~free
            o_ref[:, j * head_dim:(j + 1) * head_dim] = (
                acc_sc[j] * inv).astype(o_ref.dtype)


def flash_attention(q, k, v, start_pos, n_heads, head_dim, heads_per_block):
    B, S, HD = q.shape
    hb = heads_per_block
    tn = hb * head_dim
    n_groups = n_heads // hb
    tq = _pick_tile(S, 256)
    tk = _pick_tile(S, 256)

    kernel = partial(_flash_attn_kernel, heads_per_block=hb, head_dim=head_dim,
                     scale=1.0 / math.sqrt(head_dim), tq=tq, tk=tk)

    q_spec = pl.BlockSpec((None, tq, tn), lambda b, g, qi, ki, sp: (b, qi, g))
    kv_spec = pl.BlockSpec((None, tk, tn), lambda b, g, qi, ki, sp: (b, ki, g))
    o_spec = pl.BlockSpec((None, tq, tn), lambda b, g, qi, ki, sp: (b, qi, g))

    return pl.pallas_call(
        kernel,
        grid_spec=pltpu.PrefetchScalarGridSpec(
            num_scalar_prefetch=1,                            # start_pos in SMEM
            grid=(B, n_groups, S // tq, S // tk),
            in_specs=[q_spec, kv_spec, kv_spec],
            out_specs=o_spec,
            scratch_shapes=[pltpu.VMEM((hb, tq, 1), jnp.float32),
                            pltpu.VMEM((hb, tq, 1), jnp.float32),
                            pltpu.VMEM((hb, tq, head_dim), jnp.float32)]),
        out_shape=jax.ShapeDtypeStruct((B, S, HD), jnp.bfloat16),
        compiler_params=pltpu.CompilerParams(
            dimension_semantics=("parallel", "parallel", "parallel", "arbitrary"),
            vmem_limit_bytes=_VMEM_LIMIT),
    )(jnp.asarray([start_pos], jnp.int32), q, k, v)


# ---------------------------------------------------------------------------
# Kernel C/E: tiled linear (bf16 MXU, f32 accumulator) + residual add
# ---------------------------------------------------------------------------

def _linear_residual_kernel(x_ref, w_ref, r_ref, o_ref, acc_ref):
    @pl.when(pl.program_id(2) == 0)
    def _zero():
        acc_ref[...] = jnp.zeros_like(acc_ref)

    acc_ref[...] += jnp.dot(x_ref[...].astype(jnp.bfloat16), w_ref[...],
                            preferred_element_type=jnp.float32)

    @pl.when(pl.program_id(2) == pl.num_programs(2) - 1)
    def _flush():
        o_ref[...] = (acc_ref[...] + r_ref[...].astype(jnp.float32)
                      ).astype(o_ref.dtype)


def linear_residual(x2d, w_t, res2d, out_dtype=jnp.float32):
    M, K = x2d.shape
    _, N = w_t.shape
    # tm=512 makes the weight stream compute-bound on v7x/v5e (v6e could take
    # 1024 with a larger vmem limit); tk=512 keeps the MXU contraction full.
    tm = _pick_tile(M, 512)
    tn = _pick_tile(N, 256)
    tk = _pick_tile(K, 512)
    return pl.pallas_call(
        _linear_residual_kernel,
        grid=(M // tm, N // tn, K // tk),
        in_specs=[pl.BlockSpec((tm, tk), lambda m, n, k: (m, k)),
                  pl.BlockSpec((tk, tn), lambda m, n, k: (k, n)),
                  pl.BlockSpec((tm, tn), lambda m, n, k: (m, n))],
        out_specs=pl.BlockSpec((tm, tn), lambda m, n, k: (m, n)),
        out_shape=jax.ShapeDtypeStruct((M, N), out_dtype),
        scratch_shapes=[pltpu.VMEM((tm, tn), jnp.float32)],
        compiler_params=pltpu.CompilerParams(
            dimension_semantics=("parallel", "parallel", "arbitrary"),
            vmem_limit_bytes=_VMEM_LIMIT),
    )(x2d, w_t, res2d)


# ---------------------------------------------------------------------------
# Kernel D: RMSNorm (hoisted across column tiles) + FFN up-projection + SiLU
# ---------------------------------------------------------------------------

def _norm_ffn_gate_kernel(h_ref, nw_ref, w1_ref, w3_ref, g_ref, hn_sc, *, eps):
    # RMSNorm computed once per row tile (n == 0) into bf16 scratch and reused
    # across all F/tn column tiles.
    @pl.when(pl.program_id(1) == 0)
    def _norm():
        h = h_ref[...].astype(jnp.float32)
        var = jnp.mean(h * h, axis=-1, keepdims=True)
        hn_sc[...] = (h * lax.rsqrt(var + eps) * nw_ref[...]).astype(jnp.bfloat16)

    hn = hn_sc[...]
    a = jnp.dot(hn, w1_ref[...], preferred_element_type=jnp.float32)
    b = jnp.dot(hn, w3_ref[...], preferred_element_type=jnp.float32)
    g_ref[...] = (a * jax.nn.sigmoid(a) * b).astype(g_ref.dtype)      # silu(a)*b


def fused_norm_ffn_gate(h2d, norm_w, w1_t, w3_t, eps):
    M, E = h2d.shape
    F = w1_t.shape[1]
    tm = _pick_tile(M, 512)
    tn = _pick_tile(F, 512)
    return pl.pallas_call(
        partial(_norm_ffn_gate_kernel, eps=eps),
        grid=(M // tm, F // tn),
        in_specs=[pl.BlockSpec((tm, E), lambda m, n: (m, 0)),
                  pl.BlockSpec((1, E), lambda m, n: (0, 0)),
                  pl.BlockSpec((E, tn), lambda m, n: (0, n)),
                  pl.BlockSpec((E, tn), lambda m, n: (0, n))],
        out_specs=pl.BlockSpec((tm, tn), lambda m, n: (m, n)),
        out_shape=jax.ShapeDtypeStruct((M, F), jnp.bfloat16),
        scratch_shapes=[pltpu.VMEM((tm, E), jnp.bfloat16)],
        compiler_params=pltpu.CompilerParams(
            dimension_semantics=("parallel", "arbitrary"),
            vmem_limit_bytes=_VMEM_LIMIT),
    )(h2d, norm_w, w1_t, w3_t)


# ---------------------------------------------------------------------------
# Param preparation (once, at load time) + forward glue
# ---------------------------------------------------------------------------

def prepare_params(w, n_heads, head_dim):
    hb = _heads_per_block(n_heads, head_dim)
    n_groups = n_heads // hb
    # Per head-group column permutation: [re_h0..re_h{hb-1} | im_h0..im_h{hb-1}]
    # (re = even, im = odd columns of each head).  Applied identically to wq and
    # wk, so per-head q.k dot products are unchanged; it makes RoPE a whole-tile
    # roll in kernel A and two half-width contractions per head in kernel B.
    idx = []
    for g in range(n_groups):
        heads = list(range(g * hb, (g + 1) * hb))
        for h in heads:
            idx.append(h * head_dim + jnp.arange(0, head_dim, 2))
        for h in heads:
            idx.append(h * head_dim + jnp.arange(1, head_dim, 2))
    perm = jnp.concatenate(idx)
    return {
        "heads_per_block": hb,
        "wq_t": w["wq"].T[:, perm].astype(jnp.bfloat16),
        "wk_t": w["wk"].T[:, perm].astype(jnp.bfloat16),
        "wv_t": w["wv"].T.astype(jnp.bfloat16),
        "wo_t": w["wo"].T.astype(jnp.bfloat16),
        "w1_t": w["w1"].T.astype(jnp.bfloat16),
        "w3_t": w["w3"].T.astype(jnp.bfloat16),
        "w2_t": w["w2"].T.astype(jnp.bfloat16),
        "attn_norm": w["attention_norm"].reshape(1, -1).astype(jnp.float32),
        "ffn_norm": w["ffn_norm"].reshape(1, -1).astype(jnp.float32),
    }


def transformer_block_forward(x, params, freqs_cos, freqs_sin, start_pos,
                              n_heads, head_dim, eps=1e-5):
    B, S, E = x.shape
    HD = n_heads * head_dim
    M = B * S

    q, k, v = fused_norm_qkv_rope(x, params, freqs_cos, freqs_sin,
                                  n_heads, head_dim, eps)
    attn = flash_attention(q, k, v, start_pos, n_heads, head_dim,
                           params["heads_per_block"])            # (B,S,HD) bf16
    # h kept in bf16: written once / read twice in the mem-bound middle section.
    h = linear_residual(attn.reshape(M, HD), params["wo_t"],
                        x.reshape(M, E), out_dtype=jnp.bfloat16)
    g = fused_norm_ffn_gate(h, params["ffn_norm"],
                            params["w1_t"], params["w3_t"], eps)
    out = linear_residual(g, params["w2_t"], h,
                          out_dtype=jnp.float32).reshape(B, S, E)
    return out


def precompute_freqs(head_dim, seqlen, start_pos=0, theta=10000.0):
    freqs = 1.0 / (theta ** (jnp.arange(0, head_dim, 2, dtype=jnp.float32) / head_dim))
    t = jnp.arange(start_pos, start_pos + seqlen, dtype=jnp.float32)
    angles = jnp.outer(t, freqs)                               # (S, Dh//2)
    return jnp.cos(angles), jnp.sin(angles)


# ---------------------------------------------------------------------------
# Pure-JAX reference (mirrors the PyTorch TransformerBlock, f32)
# ---------------------------------------------------------------------------

def ref_transformer_block(x, w, freqs_cos, freqs_sin, mask, n_heads, head_dim, eps):
    B, S, E = x.shape

    def rmsnorm(t, g):
        return t * lax.rsqrt(jnp.mean(t * t, axis=-1, keepdims=True) + eps) * g

    def attention(xn):
        xq = xn @ w["wq"].T
        xk = xn @ w["wk"].T
        xv = xn @ w["wv"].T
        xq = xq.reshape(B, S, n_heads, head_dim)
        xk = xk.reshape(B, S, n_heads, head_dim)
        xv = xv.reshape(B, S, n_heads, head_dim)

        def rope(t):
            tr = t.reshape(B, S, n_heads, head_dim // 2, 2)
            re, im = tr[..., 0], tr[..., 1]
            c = freqs_cos[None, :, None, :]
            s = freqs_sin[None, :, None, :]
            return jnp.stack([re * c - im * s, im * c + re * s],
                             axis=-1).reshape(B, S, n_heads, head_dim)

        qh = rope(xq).transpose(0, 2, 1, 3)
        kh = rope(xk).transpose(0, 2, 1, 3)
        vh = xv.transpose(0, 2, 1, 3)
        scores = qh @ kh.transpose(0, 1, 3, 2) / math.sqrt(head_dim) + mask
        p = jax.nn.softmax(scores.astype(jnp.float32), axis=-1)
        o = (p @ vh).transpose(0, 2, 1, 3).reshape(B, S, n_heads * head_dim)
        return o @ w["wo"].T

    h = x + attention(rmsnorm(x, w["attention_norm"]))

    def ffn(t):
        a = t @ w["w1"].T
        b = t @ w["w3"].T
        return (a * jax.nn.sigmoid(a) * b) @ w["w2"].T

    return h + ffn(rmsnorm(h, w["ffn_norm"]))


# ---------------------------------------------------------------------------
# main
# ---------------------------------------------------------------------------

if __name__ == "__main__":
    B, S = 2, 8
    dim, n_heads = 512, 2
    head_dim = dim // n_heads                 # 256 -> all lane slices 128-aligned
    multiple_of = 256
    hidden = int(2 * (4 * dim) / 3)
    hidden = multiple_of * ((hidden + multiple_of - 1) // multiple_of)   # 1536
    start_pos = 0
    eps = 1e-5

    key = jax.random.PRNGKey(0)
    keys = jax.random.split(key, 10)
    x = jax.random.normal(keys[0], (B, S, dim), jnp.float32)

    def lin_init(k, out_f, in_f):
        bound = 1.0 / math.sqrt(in_f)         # nn.Linear-style uniform init
        return jax.random.uniform(k, (out_f, in_f), jnp.float32, -bound, bound)

    w = {
        "wq": lin_init(keys[1], dim, dim),
        "wk": lin_init(keys[2], dim, dim),
        "wv": lin_init(keys[3], dim, dim),
        "wo": lin_init(keys[4], dim, dim),
        "w1": lin_init(keys[5], hidden, dim),
        "w3": lin_init(keys[6], hidden, dim),
        "w2": lin_init(keys[7], dim, hidden),
        "attention_norm": 1.0 + 0.1 * jax.random.normal(keys[8], (dim,), jnp.float32),
        "ffn_norm": 1.0 + 0.1 * jax.random.normal(keys[9], (dim,), jnp.float32),
    }
    # self.gate only feeds the adapter branch, which is not exercised (adapter=None).

    freqs_cos, freqs_sin = precompute_freqs(head_dim, S, start_pos)
    params = prepare_params(w, n_heads, head_dim)

    out = transformer_block_forward(x, params, freqs_cos, freqs_sin, start_pos,
                                    n_heads, head_dim, eps)
    out = jax.block_until_ready(out)

    mask = jnp.triu(jnp.full((1, 1, S, S), -jnp.inf, jnp.float32), k=start_pos + 1)
    ref = ref_transformer_block(x, w, freqs_cos, freqs_sin, mask,
                                n_heads, head_dim, eps)

    assert out.shape == (B, S, dim)
    max_err = float(jnp.max(jnp.abs(out - ref)))
    # bf16 MXU inputs, bf16 softmax exp, bf16 residual stream vs f32 reference.
    assert bool(jnp.allclose(out, ref, atol=5e-2, rtol=5e-2)), max_err
    print("KERNEL_OK")
</pallas_src>

<mosaic_0001>
module attributes {stable_mosaic.version = 11 : i64} {
  func.func @_norm_qkv_rope_kernel(%arg0: i32, %arg1: i32, %arg2: i32, %arg3: memref<1x8x512xf32, #tpu.memory_space<vmem>>, %arg4: memref<1x512xf32, #tpu.memory_space<vmem>>, %arg5: memref<512x512xbf16, #tpu.memory_space<vmem>>, %arg6: memref<512x512xbf16, #tpu.memory_space<vmem>>, %arg7: memref<512x512xbf16, #tpu.memory_space<vmem>>, %arg8: memref<8x512xf32, #tpu.memory_space<vmem>>, %arg9: memref<8x512xf32, #tpu.memory_space<vmem>>, %arg10: memref<1x8x512xbf16, #tpu.memory_space<vmem>>, %arg11: memref<1x8x512xbf16, #tpu.memory_space<vmem>>, %arg12: memref<1x8x512xbf16, #tpu.memory_space<vmem>>) attributes {dimension_semantics = [#tpu.dimension_semantics<parallel>, #tpu.dimension_semantics<parallel>, #tpu.dimension_semantics<parallel>], iteration_bounds = array<i64: 1, 2, 1>, scalar_prefetch = 0 : i64, scratch_operands = 0 : i64, tpu.core_type = #tpu.core_type<tc>, window_params = [{transform_indices = @transform_0, window_bounds = array<i64: 1, 8, 512>}, {pipeline_mode = #tpu.pipeline_mode<synchronous>, transform_indices = @transform_1, window_bounds = array<i64: 1, 512>}, {transform_indices = @transform_2, window_bounds = array<i64: 512, 512>}, {transform_indices = @transform_3, window_bounds = array<i64: 512, 512>}, {transform_indices = @transform_4, window_bounds = array<i64: 512, 512>}, {transform_indices = @transform_5, window_bounds = array<i64: 8, 512>}, {transform_indices = @transform_6, window_bounds = array<i64: 8, 512>}, {transform_indices = @transform_7, window_bounds = array<i64: 1, 8, 512>}, {transform_indices = @transform_8, window_bounds = array<i64: 1, 8, 512>}, {transform_indices = @transform_9, window_bounds = array<i64: 1, 8, 512>}]} {
    %c0 = arith.constant 0 : index
    %c0_0 = arith.constant 0 : index
    %c0_1 = arith.constant 0 : index
    %0 = vector.load %arg3[%c0, %c0_0, %c0_1] : memref<1x8x512xf32, #tpu.memory_space<vmem>>, vector<1x8x512xf32>
    %1 = vector.shape_cast %0 : vector<1x8x512xf32> to vector<8x512xf32>
    %2 = arith.mulf %1, %1 : vector<8x512xf32>
    %cst = arith.constant dense<0.000000e+00> : vector<8xf32>
    %3 = vector.multi_reduction <add>, %2, %cst [1] : vector<8x512xf32> to vector<8xf32>
    %4 = vector.shape_cast %3 : vector<8xf32> to vector<8x1xf32>
    %cst_2 = arith.constant 5.120000e+02 : f32
    %5 = vector.broadcast %cst_2 : f32 to vector<8x1xf32>
    %6 = arith.divf %4, %5 : vector<8x1xf32>
    %cst_3 = arith.constant 9.99999974E-6 : f32
    %7 = vector.broadcast %cst_3 : f32 to vector<8x1xf32>
    %8 = arith.addf %6, %7 : vector<8x1xf32>
    %9 = math.rsqrt %8 : vector<8x1xf32>
    %10 = vector.broadcast %9 : vector<8x1xf32> to vector<8x512xf32>
    %11 = arith.mulf %1, %10 : vector<8x512xf32>
    %c0_4 = arith.constant 0 : index
    %c0_5 = arith.constant 0 : index
    %12 = vector.load %arg4[%c0_4, %c0_5] : memref<1x512xf32, #tpu.memory_space<vmem>>, vector<1x512xf32>
    %13 = vector.broadcast %12 : vector<1x512xf32> to vector<8x512xf32>
    %14 = arith.mulf %11, %13 : vector<8x512xf32>
    %15 = arith.truncf %14 : vector<8x512xf32> to vector<8x512xbf16>
    %c0_6 = arith.constant 0 : index
    %c0_7 = arith.constant 0 : index
    %16 = vector.load %arg8[%c0_6, %c0_7] : memref<8x512xf32, #tpu.memory_space<vmem>>, vector<8x512xf32>
    %c0_8 = arith.constant 0 : index
    %c0_9 = arith.constant 0 : index
    %17 = vector.load %arg9[%c0_8, %c0_9] : memref<8x512xf32, #tpu.memory_space<vmem>>, vector<8x512xf32>
    %c0_10 = arith.constant 0 : index
    %c0_11 = arith.constant 0 : index
    %18 = vector.load %arg5[%c0_10, %c0_11] : memref<512x512xbf16, #tpu.memory_space<vmem>>, vector<512x512xbf16>
    %cst_12 = arith.constant dense<0.000000e+00> : vector<8x512xf32>
    %19 = tpu.matmul %15, %18, %cst_12 {dimension_numbers = #tpu.dot_dimension_numbers<[1], [0], [0], [1], [0, 0, 1, 1], [], []>} : vector<8x512xbf16>, vector<512x512xbf16>, vector<8x512xf32> -> vector<8x512xf32>
    %c256_i32 = arith.constant 256 : i32
    %20 = tpu.dynamic_rotate %19 by %c256_i32 dim 1 : vector<8x512xf32>, i32 -> vector<8x512xf32>
    %21 = arith.mulf %19, %16 : vector<8x512xf32>
    %22 = arith.mulf %20, %17 : vector<8x512xf32>
    %23 = arith.addf %21, %22 : vector<8x512xf32>
    %24 = arith.truncf %23 : vector<8x512xf32> to vector<8x512xbf16>
    %c0_13 = arith.constant 0 : index
    %c0_14 = arith.constant 0 : index
    %c0_15 = arith.constant 0 : index
    %25 = vector.load %arg10[%c0_13, %c0_14, %c0_15] : memref<1x8x512xbf16, #tpu.memory_space<vmem>>, vector<1x8x512xbf16>
    %26 = vector.shape_cast %25 : vector<1x8x512xbf16> to vector<8x512xbf16>
    %27 = vector.shape_cast %24 : vector<8x512xbf16> to vector<1x8x512xbf16>
    tpu.vector_store %arg10[%c0_13, %c0_14, %c0_15], %27 {strides = array<i32>} : memref<1x8x512xbf16, #tpu.memory_space<vmem>>, vector<1x8x512xbf16>,
    %c0_16 = arith.constant 0 : index
    %c0_17 = arith.constant 0 : index
    %28 = vector.load %arg6[%c0_16, %c0_17] : memref<512x512xbf16, #tpu.memory_space<vmem>>, vector<512x512xbf16>
    %cst_18 = arith.constant dense<0.000000e+00> : vector<8x512xf32>
    %29 = tpu.matmul %15, %28, %cst_18 {dimension_numbers = #tpu.dot_dimension_numbers<[1], [0], [0], [1], [0, 0, 1, 1], [], []>} : vector<8x512xbf16>, vector<512x512xbf16>, vector<8x512xf32> -> vector<8x512xf32>
    %c256_i32_19 = arith.constant 256 : i32
    %30 = tpu.dynamic_rotate %29 by %c256_i32_19 dim 1 : vector<8x512xf32>, i32 -> vector<8x512xf32>
    %31 = arith.mulf %29, %16 : vector<8x512xf32>
    %32 = arith.mulf %30, %17 : vector<8x512xf32>
    %33 = arith.addf %31, %32 : vector<8x512xf32>
    %34 = arith.truncf %33 : vector<8x512xf32> to vector<8x512xbf16>
    %c0_20 = arith.constant 0 : index
    %c0_21 = arith.constant 0 : index
    %c0_22 = arith.constant 0 : index
    %35 = vector.load %arg11[%c0_20, %c0_21, %c0_22] : memref<1x8x512xbf16, #tpu.memory_space<vmem>>, vector<1x8x512xbf16>
    %36 = vector.shape_cast %35 : vector<1x8x512xbf16> to vector<8x512xbf16>
    %37 = vector.shape_cast %34 : vector<8x512xbf16> to vector<1x8x512xbf16>
    tpu.vector_store %arg11[%c0_20, %c0_21, %c0_22], %37 {strides = array<i32>} : memref<1x8x512xbf16, #tpu.memory_space<vmem>>, vector<1x8x512xbf16>,
    %c0_23 = arith.constant 0 : index
    %c0_24 = arith.constant 0 : index
    %38 = vector.load %arg7[%c0_23, %c0_24] : memref<512x512xbf16, #tpu.memory_space<vmem>>, vector<512x512xbf16>
    %cst_25 = arith.constant dense<0.000000e+00> : vector<8x512xf32>
    %39 = tpu.matmul %15, %38, %cst_25 {dimension_numbers = #tpu.dot_dimension_numbers<[1], [0], [0], [1], [0, 0, 1, 1], [], []>} : vector<8x512xbf16>, vector<512x512xbf16>, vector<8x512xf32> -> vector<8x512xf32>
    %40 = arith.truncf %39 : vector<8x512xf32> to vector<8x512xbf16>
    %c0_26 = arith.constant 0 : index
    %c0_27 = arith.constant 0 : index
    %c0_28 = arith.constant 0 : index
    %41 = vector.load %arg12[%c0_26, %c0_27, %c0_28] : memref<1x8x512xbf16, #tpu.memory_space<vmem>>, vector<1x8x512xbf16>
    %42 = vector.shape_cast %41 : vector<1x8x512xbf16> to vector<8x512xbf16>
    %43 = vector.shape_cast %40 : vector<8x512xbf16> to vector<1x8x512xbf16>
    tpu.vector_store %arg12[%c0_26, %c0_27, %c0_28], %43 {strides = array<i32>} : memref<1x8x512xbf16, #tpu.memory_space<vmem>>, vector<1x8x512xbf16>,
    return
  }
  func.func @transform_0(%arg0: i32, %arg1: i32, %arg2: i32) -> (i32, i32, i32) {
    %c0_i32 = arith.constant 0 : i32
    %c0_i32_0 = arith.constant 0 : i32
    return %arg1, %arg2, %c0_i32 : i32, i32, i32
  }
  func.func @transform_1(%arg0: i32, %arg1: i32, %arg2: i32) -> (i32, i32) {
    %c0_i32 = arith.constant 0 : i32
    %c0_i32_0 = arith.constant 0 : i32
    %c0_i32_1 = arith.constant 0 : i32
    return %c0_i32, %c0_i32_0 : i32, i32
  }
  func.func @transform_2(%arg0: i32, %arg1: i32, %arg2: i32) -> (i32, i32) {
    %c0_i32 = arith.constant 0 : i32
    %c0_i32_0 = arith.constant 0 : i32
    return %c0_i32, %arg0 : i32, i32
  }
  func.func @transform_3(%arg0: i32, %arg1: i32, %arg2: i32) -> (i32, i32) {
    %c0_i32 = arith.constant 0 : i32
    %c0_i32_0 = arith.constant 0 : i32
    return %c0_i32, %arg0 : i32, i32
  }
  func.func @transform_4(%arg0: i32, %arg1: i32, %arg2: i32) -> (i32, i32) {
    %c0_i32 = arith.constant 0 : i32
    %c0_i32_0 = arith.constant 0 : i32
    return %c0_i32, %arg0 : i32, i32
  }
  func.func @transform_5(%arg0: i32, %arg1: i32, %arg2: i32) -> (i32, i32) {
    %c0_i32 = arith.constant 0 : i32
    %c0_i32_0 = arith.constant 0 : i32
    return %arg2, %c0_i32 : i32, i32
  }
  func.func @transform_6(%arg0: i32, %arg1: i32, %arg2: i32) -> (i32, i32) {
    %c0_i32 = arith.constant 0 : i32
    %c0_i32_0 = arith.constant 0 : i32
    return %arg2, %c0_i32 : i32, i32
  }
  func.func @transform_7(%arg0: i32, %arg1: i32, %arg2: i32) -> (i32, i32, i32) {
    %c0_i32 = arith.constant 0 : i32
    return %arg1, %arg2, %arg0 : i32, i32, i32
  }
  func.func @transform_8(%arg0: i32, %arg1: i32, %arg2: i32) -> (i32, i32, i32) {
    %c0_i32 = arith.constant 0 : i32
    return %arg1, %arg2, %arg0 : i32, i32, i32
  }
  func.func @transform_9(%arg0: i32, %arg1: i32, %arg2: i32) -> (i32, i32, i32) {
    %c0_i32 = arith.constant 0 : i32
    return %arg1, %arg2, %arg0 : i32, i32, i32
  }
}

</mosaic_0001>

<llo_original>
// kernel: tpu_custom_call.1
$region0: #{tpu_custom_call.1}
  #allocation0 [shape = 'u32[]', space=smem, size = 0x4, offset = 0x4, fixed_abs, tag = 'smem constant byte address 0x4 - core index']
  #allocation1 [shape = 'u32[144,128]{1,0:T(1,128)}', space=vmem, size = 0x12000, scoped, tag = 'internal scratch']
  %s0 = inlined_call_operand.hbm [shape: f32[2,8,512], index: 0, kind: input, shape index: {}]
  %s1 = inlined_call_operand.hbm [shape: f32[1,512], index: 1, kind: input, shape index: {}]
  %s2 = inlined_call_operand.hbm [shape: bf16[512,512], index: 2, kind: input, shape index: {}]
  %s3 = inlined_call_operand.hbm [shape: bf16[512,512], index: 3, kind: input, shape index: {}]
  %s4 = inlined_call_operand.hbm [shape: bf16[512,512], index: 4, kind: input, shape index: {}]
  %s5 = inlined_call_operand.hbm [shape: f32[8,512], index: 5, kind: input, shape index: {}]
  %s6 = inlined_call_operand.hbm [shape: f32[8,512], index: 6, kind: input, shape index: {}]
  %s7 = inlined_call_operand.hbm [shape: bf16[2,8,512], index: 7, kind: output, shape index: {0}]
  %s8 = inlined_call_operand.hbm [shape: bf16[2,8,512], index: 8, kind: output, shape index: {1}]
  %s9 = inlined_call_operand.hbm [shape: bf16[2,8,512], index: 9, kind: output, shape index: {2}]
  %10 = xla_tuple %s7, %s8, %s9
  %s11 = sld [smem:[#allocation0]]
  $region105: #{tpu_custom_call.1} parent=0
    _
  %s13 = ssub.s32 1, %s11
  %s14 = scalar_select 0, %s13, %s11
  $region1: #{tpu_custom_call.1} parent=0
    #allocation2 [shape = 'u8[32768]{0}', space=vmem, size = 0x8000, scoped, tag = 'input window, operand 0']
    #allocation3 [shape = 's32[2]{0}', space=sflag, size = 0x8, scoped, tag = 'scoped memory for tpu_custom_call.1']
    #allocation4 [shape = 's32[2]{0}', space=sflag, size = 0x8, scoped, tag = 'scoped memory for tpu_custom_call.1']
    #allocation5 [shape = 'u8[2048]{0}', space=vmem, size = 0x800, scoped, tag = 'input window, operand 1, single buffered']
    #allocation6 [shape = 's32[1]{0}', space=sflag, size = 0x4, scoped, tag = 'scoped memory for tpu_custom_call.1']
    #allocation7 [shape = 'u8[524288]{0}', space=vmem, size = 0x80000, scoped, tag = 'input window, operand 2, single buffered']
    #allocation8 [shape = 'u8[524288]{0}', space=vmem, size = 0x80000, scoped, tag = 'input window, operand 3, single buffered']
    #allocation9 [shape = 's32[1]{0}', space=sflag, size = 0x4, scoped, tag = 'scoped memory for tpu_custom_call.1']
    #allocation10 [shape = 'u8[524288]{0}', space=vmem, size = 0x80000, scoped, tag = 'input window, operand 4, single buffered']
    #allocation11 [shape = 'u8[16384]{0}', space=vmem, size = 0x4000, scoped, tag = 'input window, operand 5, single buffered']
    #allocation12 [shape = 's32[1]{0}', space=sflag, size = 0x4, scoped, tag = 'scoped memory for tpu_custom_call.1']
    #allocation13 [shape = 'u8[16384]{0}', space=vmem, size = 0x4000, scoped, tag = 'input window, operand 6, single buffered']
    #allocation14 [shape = 'u8[16384]{0}', space=vmem, size = 0x4000, scoped, tag = 'output window, operand 0']
    #allocation15 [shape = 'u8[16384]{0}', space=vmem, size = 0x4000, scoped, tag = 'output window, operand 1']
    #allocation16 [shape = 's32[2]{0}', space=sflag, size = 0x8, scoped, tag = 'scoped memory for tpu_custom_call.1']
    #allocation17 [shape = 'u8[16384]{0}', space=vmem, size = 0x4000, scoped, tag = 'output window, operand 2']
    %15 = vsyncpa [#allocation3], 0
    %s16 = scalar_lea.sflag [#allocation3], 1
    %17 = vsyncpa %s16, 0
    %18 = vsyncpa [#allocation6], 0
    %19 = vsyncpa [#allocation9], 0
    %20 = vsyncpa [#allocation12], 0
    %21 = vsyncpa [#allocation4], 0
    %s22 = scalar_lea.sflag [#allocation4], 1
    %23 = vsyncpa %s22, 0
    %24 = vsyncpa [#allocation16], 0
    %s25 = scalar_lea.sflag [#allocation16], 1
    %26 = vsyncpa %s25, 0
    loop: start=0, step=1, limit=4
    $region2: #{tpu_custom_call.1} parent=1 // loop_pre_header
      _
    $region3: #{tpu_custom_call.1} parent=1 // loop_header
      %s28 = sphi 0, %s32
      %p29 = scmp.ge.s32.totalorder %s28, 4
      %s35 = sphi 0, %s54
      %s36 = sphi 0, %s50
      %s37 = sphi 0, %s46
      %s38 = sphi 0, %s35
      %s39 = sphi 0, %s36
      %s40 = sphi 0, %s37
      %s41 = sphi 0, %s38
      %s42 = sphi 0, %s39
      %s43 = sphi 0, %s40
      %s59 = sphi 0, %s61
      %s62 = sphi 0, %s59
      %s63 = sphi 0, %s62
      %s79 = sphi 0, %s63
      %s83 = sphi 0, %s83
      %s85 = sphi 0, %s83
      %s86 = sphi 0, %s85
      %s100 = sphi 0, %s86
      %s106 = sphi 0, %s108
      %s109 = sphi 0, %s106
      %s110 = sphi 0, %s109
      %s126 = sphi 0, %s110
      %s132 = sphi 0, %s134
      %s135 = sphi 0, %s132
      %s136 = sphi 0, %s135
      %s152 = sphi 0, %s136
      %s158 = sphi 0, %s160
      %s161 = sphi 0, %s158
      %s162 = sphi 0, %s161
      %s178 = sphi 0, %s162
      %s184 = sphi 0, %s186
      %s187 = sphi 0, %s184
      %s188 = sphi 0, %s187
      %s204 = sphi 0, %s188
      %s210 = sphi 0, %s212
      %s213 = sphi 0, %s210
      %s214 = sphi 0, %s213
      %s230 = sphi 0, %s214
      %s240 = sphi 0, %s242
      %s243 = sphi 0, %s240
      %s244 = sphi 0, %s243
      %s260 = sphi 0, %s244
      %s270 = sphi 0, %s272
      %s273 = sphi 0, %s270
      %s274 = sphi 0, %s273
      %s290 = sphi 0, %s274
      %s300 = sphi 0, %s302
      %s303 = sphi 0, %s300
      %s304 = sphi 0, %s303
      %s320 = sphi 0, %s304
    $region4: #{tpu_custom_call.1} parent=1 // loop_header_branch
      %31 = sbr.rel (%p29) target = $region8
    $region5: #{tpu_custom_call.1} parent=1 // loop_body
      %s33 = ssub.s32 %s28, 1
      %s34 = ssub.s32 %s28, 2
      %s44 = sadd.s32 1, %s37
      %p45 = scmp.ge.s32.totalorder %s44, 1
      %s46 = scalar_select %p45, 0, %s44
      %s47 = sadd.s32 1, %s36
      %s48 = scalar_select %p45, %s47, %s36
      %p49 = scmp.ge.s32.totalorder %s48, 2
      %s50 = scalar_select %p49, 0, %s48
      %s51 = sadd.s32 1, %s35
      %s52 = scalar_select %p49, %s51, %s35
      %p53 = scmp.ge.s32.totalorder %s52, 1
      %s54 = scalar_select %p53, 0, %s52
      %s55 = ssub.s32 %s36, %s50
      %s56 = ssub.s32 %s37, %s46
      %s57 = sor.u32 %s55, %s56
      %p58 = scmp.eq.s32.totalorder %s57, 0
      %s60 = sadd.s32 %s59, 1
      %s61 = scalar_select %p58, %s59, %s60
      %p64 = pneg %p58
      %p65 = scmp.eq.s32.totalorder %s28, 1
      %p66 = por %p64, %p65
      %p67 = scmp.ne.s32.totalorder %s59, %s62
      %p68 = scmp.eq.s32.totalorder %s28, 0
      %p69 = por %p67, %p68
      %p70 = scmp.ne.s32.totalorder %s59, %s62
      %p71 = scmp.eq.s32.totalorder %s33, 1
      %p72 = por %p70, %p71
      %p73 = scmp.ne.s32.totalorder %s62, %s63
      %p74 = scmp.eq.s32.totalorder %s33, 0
      %p75 = por %p73, %p74
      %p76 = scmp.ne.s32.totalorder %s62, %s63
      %p77 = scmp.eq.s32.totalorder %s34, 1
      %p78 = por %p76, %p77
      %p80 = scmp.ne.s32.totalorder %s63, %s79
      %p81 = scmp.eq.s32.totalorder %s34, 0
      %p82 = por %p80, %p81
      %s84 = sadd.s32 %s83, 1
      %p87 = scmp.eq.s32.totalorder %s28, 1
      %p88 = scmp.ne.s32.totalorder %s83, %s85
      %p89 = scmp.eq.s32.totalorder %s28, 0
      %p90 = por %p88, %p89
      %p91 = scmp.ne.s32.totalorder %s83, %s85
      %p92 = scmp.eq.s32.totalorder %s33, 1
      %p93 = por %p91, %p92
      %p94 = scmp.ne.s32.totalorder %s85, %s86
      %p95 = scmp.eq.s32.totalorder %s33, 0
      %p96 = por %p94, %p95
      %p97 = scmp.ne.s32.totalorder %s85, %s86
      %p98 = scmp.eq.s32.totalorder %s34, 1
      %p99 = por %p97, %p98
      %p101 = scmp.ne.s32.totalorder %s86, %s100
      %p102 = scmp.eq.s32.totalorder %s34, 0
      %p103 = por %p101, %p102
      %s104 = ssub.s32 %s35, %s54
      %p105 = scmp.eq.s32.totalorder %s104, 0
      %s107 = sadd.s32 %s106, 1
      %s108 = scalar_select %p105, %s106, %s107
      %p111 = pneg %p105
      %p112 = scmp.eq.s32.totalorder %s28, 1
      %p113 = por %p111, %p112
      %p114 = scmp.ne.s32.totalorder %s106, %s109
      %p115 = scmp.eq.s32.totalorder %s28, 0
      %p116 = por %p114, %p115
      %p117 = scmp.ne.s32.totalorder %s106, %s109
      %p118 = scmp.eq.s32.totalorder %s33, 1
      %p119 = por %p117, %p118
      %p120 = scmp.ne.s32.totalorder %s109, %s110
      %p121 = scmp.eq.s32.totalorder %s33, 0
      %p122 = por %p120, %p121
      %p123 = scmp.ne.s32.totalorder %s109, %s110
      %p124 = scmp.eq.s32.totalorder %s34, 1
      %p125 = por %p123, %p124
      %p127 = scmp.ne.s32.totalorder %s110, %s126
      %p128 = scmp.eq.s32.totalorder %s34, 0
      %p129 = por %p127, %p128
      %s130 = ssub.s32 %s35, %s54
      %p131 = scmp.eq.s32.totalorder %s130, 0
      %s133 = sadd.s32 %s132, 1
      %s134 = scalar_select %p131, %s132, %s133
      %p137 = pneg %p131
      %p138 = scmp.eq.s32.totalorder %s28, 1
      %p139 = por %p137, %p138
      %p140 = scmp.ne.s32.totalorder %s132, %s135
      %p141 = scmp.eq.s32.totalorder %s28, 0
      %p142 = por %p140, %p141
      %p143 = scmp.ne.s32.totalorder %s132, %s135
      %p144 = scmp.eq.s32.totalorder %s33, 1
      %p145 = por %p143, %p144
      %p146 = scmp.ne.s32.totalorder %s135, %s136
      %p147 = scmp.eq.s32.totalorder %s33, 0
      %p148 = por %p146, %p147
      %p149 = scmp.ne.s32.totalorder %s135, %s136
      %p150 = scmp.eq.s32.totalorder %s34, 1
      %p151 = por %p149, %p150
      %p153 = scmp.ne.s32.totalorder %s136, %s152
      %p154 = scmp.eq.s32.totalorder %s34, 0
      %p155 = por %p153, %p154
      %s156 = ssub.s32 %s35, %s54
      %p157 = scmp.eq.s32.totalorder %s156, 0
      %s159 = sadd.s32 %s158, 1
      %s160 = scalar_select %p157, %s158, %s159
      %p163 = pneg %p157
      %p164 = scmp.eq.s32.totalorder %s28, 1
      %p165 = por %p163, %p164
      %p166 = scmp.ne.s32.totalorder %s158, %s161
      %p167 = scmp.eq.s32.totalorder %s28, 0
      %p168 = por %p166, %p167
      %p169 = scmp.ne.s32.totalorder %s158, %s161
      %p170 = scmp.eq.s32.totalorder %s33, 1
      %p171 = por %p169, %p170
      %p172 = scmp.ne.s32.totalorder %s161, %s162
      %p173 = scmp.eq.s32.totalorder %s33, 0
      %p174 = por %p172, %p173
      %p175 = scmp.ne.s32.totalorder %s161, %s162
      %p176 = scmp.eq.s32.totalorder %s34, 1
      %p177 = por %p175, %p176
      %p179 = scmp.ne.s32.totalorder %s162, %s178
      %p180 = scmp.eq.s32.totalorder %s34, 0
      %p181 = por %p179, %p180
      %s182 = ssub.s32 %s37, %s46
      %p183 = scmp.eq.s32.totalorder %s182, 0
      %s185 = sadd.s32 %s184, 1
      %s186 = scalar_select %p183, %s184, %s185
      %p189 = pneg %p183
      %p190 = scmp.eq.s32.totalorder %s28, 1
      %p191 = por %p189, %p190
      %p192 = scmp.ne.s32.totalorder %s184, %s187
      %p193 = scmp.eq.s32.totalorder %s28, 0
      %p194 = por %p192, %p193
      %p195 = scmp.ne.s32.totalorder %s184, %s187
      %p196 = scmp.eq.s32.totalorder %s33, 1
      %p197 = por %p195, %p196
      %p198 = scmp.ne.s32.totalorder %s187, %s188
      %p199 = scmp.eq.s32.totalorder %s33, 0
      %p200 = por %p198, %p199
      %p201 = scmp.ne.s32.totalorder %s187, %s188
      %p202 = scmp.eq.s32.totalorder %s34, 1
      %p203 = por %p201, %p202
      %p205 = scmp.ne.s32.totalorder %s188, %s204
      %p206 = scmp.eq.s32.totalorder %s34, 0
      %p207 = por %p205, %p206
      %s208 = ssub.s32 %s37, %s46
      %p209 = scmp.eq.s32.totalorder %s208, 0
      %s211 = sadd.s32 %s210, 1
      %s212 = scalar_select %p209, %s210, %s211
      %p215 = pneg %p209
      %p216 = scmp.eq.s32.totalorder %s28, 1
      %p217 = por %p215, %p216
      %p218 = scmp.ne.s32.totalorder %s210, %s213
      %p219 = scmp.eq.s32.totalorder %s28, 0
      %p220 = por %p218, %p219
      %p221 = scmp.ne.s32.totalorder %s210, %s213
      %p222 = scmp.eq.s32.totalorder %s33, 1
      %p223 = por %p221, %p222
      %p224 = scmp.ne.s32.totalorder %s213, %s214
      %p225 = scmp.eq.s32.totalorder %s33, 0
      %p226 = por %p224, %p225
      %p227 = scmp.ne.s32.totalorder %s213, %s214
      %p228 = scmp.eq.s32.totalorder %s34, 1
      %p229 = por %p227, %p228
      %p231 = scmp.ne.s32.totalorder %s214, %s230
      %p232 = scmp.eq.s32.totalorder %s34, 0
      %p233 = por %p231, %p232
      %s234 = ssub.s32 %s36, %s50
      %s235 = ssub.s32 %s37, %s46
      %s236 = sor.u32 %s234, %s235
      %s237 = ssub.s32 %s35, %s54
      %s238 = sor.u32 %s236, %s237
      %p239 = scmp.eq.s32.totalorder %s238, 0
      %s241 = sadd.s32 %s240, 1
      %s242 = scalar_select %p239, %s240, %s241
      %p245 = pneg %p239
      %p246 = scmp.eq.s32.totalorder %s28, 1
      %p247 = por %p245, %p246
      %p248 = scmp.ne.s32.totalorder %s240, %s243
      %p249 = scmp.eq.s32.totalorder %s28, 0
      %p250 = por %p248, %p249
      %p251 = scmp.ne.s32.totalorder %s240, %s243
      %p252 = scmp.eq.s32.totalorder %s33, 1
      %p253 = por %p251, %p252
      %p254 = scmp.ne.s32.totalorder %s243, %s244
      %p255 = scmp.eq.s32.totalorder %s33, 0
      %p256 = por %p254, %p255
      %p257 = scmp.ne.s32.totalorder %s243, %s244
      %p258 = scmp.eq.s32.totalorder %s34, 1
      %p259 = por %p257, %p258
      %p261 = scmp.ne.s32.totalorder %s244, %s260
      %p262 = scmp.eq.s32.totalorder %s34, 0
      %p263 = por %p261, %p262
      %s264 = ssub.s32 %s36, %s50
      %s265 = ssub.s32 %s37, %s46
      %s266 = sor.u32 %s264, %s265
      %s267 = ssub.s32 %s35, %s54
      %s268 = sor.u32 %s266, %s267
      %p269 = scmp.eq.s32.totalorder %s268, 0
      %s271 = sadd.s32 %s270, 1
      %s272 = scalar_select %p269, %s270, %s271
      %p275 = pneg %p269
      %p276 = scmp.eq.s32.totalorder %s28, 1
      %p277 = por %p275, %p276
      %p278 = scmp.ne.s32.totalorder %s270, %s273
      %p279 = scmp.eq.s32.totalorder %s28, 0
      %p280 = por %p278, %p279
      %p281 = scmp.ne.s32.totalorder %s270, %s273
      %p282 = scmp.eq.s32.totalorder %s33, 1
      %p283 = por %p281, %p282
      %p284 = scmp.ne.s32.totalorder %s273, %s274
      %p285 = scmp.eq.s32.totalorder %s33, 0
      %p286 = por %p284, %p285
      %p287 = scmp.ne.s32.totalorder %s273, %s274
      %p288 = scmp.eq.s32.totalorder %s34, 1
      %p289 = por %p287, %p288
      %p291 = scmp.ne.s32.totalorder %s274, %s290
      %p292 = scmp.eq.s32.totalorder %s34, 0
      %p293 = por %p291, %p292
      %s294 = ssub.s32 %s36, %s50
      %s295 = ssub.s32 %s37, %s46
      %s296 = sor.u32 %s294, %s295
      %s297 = ssub.s32 %s35, %s54
      %s298 = sor.u32 %s296, %s297
      %p299 = scmp.eq.s32.totalorder %s298, 0
      %s301 = sadd.s32 %s300, 1
      %s302 = scalar_select %p299, %s300, %s301
      %p305 = pneg %p299
      %p306 = scmp.eq.s32.totalorder %s28, 1
      %p307 = por %p305, %p306
      %p308 = scmp.ne.s32.totalorder %s300, %s303
      %p309 = scmp.eq.s32.totalorder %s28, 0
      %p310 = por %p308, %p309
      %p311 = scmp.ne.s32.totalorder %s300, %s303
      %p312 = scmp.eq.s32.totalorder %s33, 1
      %p313 = por %p311, %p312
      %p314 = scmp.ne.s32.totalorder %s303, %s304
      %p315 = scmp.eq.s32.totalorder %s33, 0
      %p316 = por %p314, %p315
      %p317 = scmp.ne.s32.totalorder %s303, %s304
      %p318 = scmp.eq.s32.totalorder %s34, 1
      %p319 = por %p317, %p318
      %p321 = scmp.ne.s32.totalorder %s304, %s320
      %p322 = scmp.eq.s32.totalorder %s34, 0
      %p323 = por %p321, %p322
      %p324 = scmp.le.s32.totalorder 1, %s28
      %p325 = scmp.lt.s32.totalorder %s28, 3
      %p326 = pnand %p324, %p325
      %p327 = pneg %p326
      // Predicated region
      $region9: #{tpu_custom_call.1} parent=5 // pred_check
        _
      $region10: #{tpu_custom_call.1} parent=5 // pred_check_branch
        %329 = sbr.rel (%p326) target = $region12
      $region11: #{tpu_custom_call.1} parent=5 // pred_region
        %s330 = ssub.s32 %s28, 1
        // Predicated region
        $region13: #{tpu_custom_call.1} parent=11 // pred_check
          %p331 = pneg %p96
        $region14: #{tpu_custom_call.1} parent=11 // pred_check_branch
          %333 = sbr.rel (%p331) target = $region16
        $region15: #{tpu_custom_call.1} parent=11 // pred_region
          %s335 = ssub.s32 64, 64
          %336 = vsyncadd [#allocation6], %s335
          %s338 = sshll.u32 [#allocation5], 4
          %s339 = int_to_ptr.vmem [resolvable:$true] %s338
          %341 = dma.hbm_to_vmem [thread:$0]  %s1, 64, %s339, [#allocation6]
        $region16: #{tpu_custom_call.1} parent=11 // pred_fallthru
          _
        // Predicated region
        $region17: #{tpu_custom_call.1} parent=11 // pred_check
          %p342 = pneg %p122
        $region18: #{tpu_custom_call.1} parent=11 // pred_check_branch
          %344 = sbr.rel (%p342) target = $region20
        $region19: #{tpu_custom_call.1} parent=11 // pred_region
          %s345 = smul.u32 4, %s38
          %s347 = ssub.s32 16384, 16384
          %348 = vsyncadd [#allocation6], %s347
          %s349 = smul.addr %s345, 64
          %s350 = scalar_lea.hbm %s2, %s349
          %s351 = sshll.u32 [#allocation7], 4
          %s352 = int_to_ptr.vmem [resolvable:$true] %s351
          %357 = dma.hbm_to_vmem [thread:$0]  %s350, 16384, %s352, [#allocation6], 256, 256, 16
        $region20: #{tpu_custom_call.1} parent=11 // pred_fallthru
          _
        // Predicated region
        $region21: #{tpu_custom_call.1} parent=11 // pred_check
          %p358 = pneg %p148
        $region22: #{tpu_custom_call.1} parent=11 // pred_check_branch
          %360 = sbr.rel (%p358) target = $region24
        $region23: #{tpu_custom_call.1} parent=11 // pred_region
          %s361 = smul.u32 4, %s38
          %s363 = ssub.s32 16384, 16384
          %364 = vsyncadd [#allocation9], %s363
          %s365 = smul.addr %s361, 64
          %s366 = scalar_lea.hbm %s3, %s365
          %s367 = sshll.u32 [#allocation8], 4
          %s368 = int_to_ptr.vmem [resolvable:$true] %s367
          %373 = dma.hbm_to_vmem [thread:$0]  %s366, 16384, %s368, [#allocation9], 256, 256, 16
        $region24: #{tpu_custom_call.1} parent=11 // pred_fallthru
          _
        // Predicated region
        $region25: #{tpu_custom_call.1} parent=11 // pred_check
          %p374 = pneg %p174
        $region26: #{tpu_custom_call.1} parent=11 // pred_check_branch
          %376 = sbr.rel (%p374) target = $region28
        $region27: #{tpu_custom_call.1} parent=11 // pred_region
          %s377 = smul.u32 4, %s38
          %s379 = ssub.s32 16384, 16384
          %380 = vsyncadd [#allocation9], %s379
          %s381 = smul.addr %s377, 64
          %s382 = scalar_lea.hbm %s4, %s381
          %s383 = sshll.u32 [#allocation10], 4
          %s384 = int_to_ptr.vmem [resolvable:$true] %s383
          %389 = dma.hbm_to_vmem [thread:$0]  %s382, 16384, %s384, [#allocation9], 256, 256, 16
        $region28: #{tpu_custom_call.1} parent=11 // pred_fallthru
          _
        // Predicated region
        $region29: #{tpu_custom_call.1} parent=11 // pred_check
          %p390 = pneg %p200
        $region30: #{tpu_custom_call.1} parent=11 // pred_check_branch
          %392 = sbr.rel (%p390) target = $region32
        $region31: #{tpu_custom_call.1} parent=11 // pred_region
          %s394 = ssub.s32 512, 512
          %395 = vsyncadd [#allocation12], %s394
          %s396 = smul.addr %s40, 4
          %s397 = smul.addr %s396, 128
          %s398 = scalar_lea.hbm %s5, %s397
          %s400 = sshll.u32 [#allocation11], 4
          %s401 = int_to_ptr.vmem [resolvable:$true] %s400
          %403 = dma.hbm_to_vmem [thread:$0]  %s398, 512, %s401, [#allocation12]
        $region32: #{tpu_custom_call.1} parent=11 // pred_fallthru
          _
        // Predicated region
        $region33: #{tpu_custom_call.1} parent=11 // pred_check
          %p404 = pneg %p226
        $region34: #{tpu_custom_call.1} parent=11 // pred_check_branch
          %406 = sbr.rel (%p404) target = $region36
        $region35: #{tpu_custom_call.1} parent=11 // pred_region
          %s408 = ssub.s32 512, 512
          %409 = vsyncadd [#allocation12], %s408
          %s410 = smul.addr %s40, 4
          %s411 = smul.addr %s410, 128
          %s412 = scalar_lea.hbm %s6, %s411
          %s414 = sshll.u32 [#allocation13], 4
          %s415 = int_to_ptr.vmem [resolvable:$true] %s414
          %417 = dma.hbm_to_vmem [thread:$0]  %s412, 512, %s415, [#allocation12]
        $region36: #{tpu_custom_call.1} parent=11 // pred_fallthru
          _
      $region12: #{tpu_custom_call.1} parent=5 // pred_fallthru
        _
      %p418 = scmp.lt.s32.totalorder %s28, 2
      // Predicated region
      $region37: #{tpu_custom_call.1} parent=5 // pred_check
        %p419 = pneg %p418
      $region38: #{tpu_custom_call.1} parent=5 // pred_check_branch
        %421 = sbr.rel (%p419) target = $region40
      $region39: #{tpu_custom_call.1} parent=5 // pred_region
        // Predicated region
        $region41: #{tpu_custom_call.1} parent=39 // pred_check
          %p422 = pneg %p69
        $region42: #{tpu_custom_call.1} parent=39 // pred_check_branch
          %424 = sbr.rel (%p422) target = $region44
        $region43: #{tpu_custom_call.1} parent=39 // pred_region
          %s425 = sand.u32 %s59, 1
          %s426 = scalar_lea.sflag [#allocation3], %s425
          %s427 = sand.u32 %s59, 1
          %s428 = smul.addr %s427, 32
          %s429 = scalar_lea.vmem [#allocation2], %s428
          %s431 = ssub.s32 512, 512
          %432 = vsyncadd %s426, %s431
          %s433 = smul.addr %s37, 4
          %s434 = smul.addr %s36, 4
          %s435 = sadd.s32 %s433, %s434
          %s436 = smul.addr %s435, 128
          %s437 = scalar_lea.hbm %s0, %s436
          %s439 = sshll.u32 %s429, 4
          %s440 = int_to_ptr.vmem [resolvable:$true] %s439
          %442 = dma.hbm_to_vmem [thread:$0]  %s437, 512, %s440, %s426
        $region44: #{tpu_custom_call.1} parent=39 // pred_fallthru
          _
      $region40: #{tpu_custom_call.1} parent=5 // pred_fallthru
        _
      %p443 = scmp.le.s32.totalorder 1, %s28
      %p444 = scmp.lt.s32.totalorder %s28, 3
      %p445 = pnand %p443, %p444
      %p446 = pneg %p445
      // Predicated region
      $region45: #{tpu_custom_call.1} parent=5 // pred_check
        _
      $region46: #{tpu_custom_call.1} parent=5 // pred_check_branch
        %448 = sbr.rel (%p445) target = $region48
      $region47: #{tpu_custom_call.1} parent=5 // pred_region
        %s449 = ssub.s32 %s28, 1
        %s450 = sand.u32 %s62, 1
        %s451 = scalar_lea.sflag [#allocation3], %s450
        %s452 = sand.u32 %s62, 1
        %s453 = smul.addr %s452, 32
        %s454 = scalar_lea.vmem [#allocation2], %s453
        // Predicated region
        $region49: #{tpu_custom_call.1} parent=47 // pred_check
          %p455 = pneg %p75
        $region50: #{tpu_custom_call.1} parent=47 // pred_check_branch
          %457 = sbr.rel (%p455) target = $region52
        $region51: #{tpu_custom_call.1} parent=47 // pred_region
          %458 = dma.done %s451, 512
        $region52: #{tpu_custom_call.1} parent=47 // pred_fallthru
          _
        // Predicated region
        $region53: #{tpu_custom_call.1} parent=47 // pred_check
          %p459 = pneg %p96
        $region54: #{tpu_custom_call.1} parent=47 // pred_check_branch
          %461 = sbr.rel (%p459) target = $region56
        $region55: #{tpu_custom_call.1} parent=47 // pred_region
          %462 = dma.done [#allocation6], 64
        $region56: #{tpu_custom_call.1} parent=47 // pred_fallthru
          _
        // Predicated region
        $region57: #{tpu_custom_call.1} parent=47 // pred_check
          %p463 = pneg %p122
        $region58: #{tpu_custom_call.1} parent=47 // pred_check_branch
          %465 = sbr.rel (%p463) target = $region60
        $region59: #{tpu_custom_call.1} parent=47 // pred_region
          %466 = dma.done [#allocation6], 16384
        $region60: #{tpu_custom_call.1} parent=47 // pred_fallthru
          _
        // Predicated region
        $region61: #{tpu_custom_call.1} parent=47 // pred_check
          %p467 = pneg %p148
        $region62: #{tpu_custom_call.1} parent=47 // pred_check_branch
          %469 = sbr.rel (%p467) target = $region64
        $region63: #{tpu_custom_call.1} parent=47 // pred_region
          %470 = dma.done [#allocation9], 16384
        $region64: #{tpu_custom_call.1} parent=47 // pred_fallthru
          _
        // Predicated region
        $region65: #{tpu_custom_call.1} parent=47 // pred_check
          %p471 = pneg %p174
        $region66: #{tpu_custom_call.1} parent=47 // pred_check_branch
          %473 = sbr.rel (%p471) target = $region68
        $region67: #{tpu_custom_call.1} parent=47 // pred_region
          %474 = dma.done [#allocation9], 16384
        $region68: #{tpu_custom_call.1} parent=47 // pred_fallthru
          _
        // Predicated region
        $region69: #{tpu_custom_call.1} parent=47 // pred_check
          %p475 = pneg %p200
        $region70: #{tpu_custom_call.1} parent=47 // pred_check_branch
          %477 = sbr.rel (%p475) target = $region72
        $region71: #{tpu_custom_call.1} parent=47 // pred_region
          %478 = dma.done [#allocation12], 512
        $region72: #{tpu_custom_call.1} parent=47 // pred_fallthru
          _
        // Predicated region
        $region73: #{tpu_custom_call.1} parent=47 // pred_check
          %p479 = pneg %p226
        $region74: #{tpu_custom_call.1} parent=47 // pred_check_branch
          %481 = sbr.rel (%p479) target = $region76
        $region75: #{tpu_custom_call.1} parent=47 // pred_region
          %482 = dma.done [#allocation12], 512
        $region76: #{tpu_custom_call.1} parent=47 // pred_fallthru
          _
        %s483 = sand.u32 %s62, 1
        %s484 = scalar_lea.sflag [#allocation3], %s483
        %s485 = sand.u32 %s62, 1
        %s486 = smul.addr %s485, 32
        %s487 = scalar_lea.vmem [#allocation2], %s486
        %p488 = pneg %p75
        %p489 = pneg %p72
        %p490 = pneg %p96
        %p491 = pneg %p93
        %p492 = pneg %p122
        %p493 = pneg %p119
        %p494 = pneg %p148
        %p495 = pneg %p145
        %p496 = pneg %p174
        %p497 = pneg %p171
        %p498 = pneg %p200
        %p499 = pneg %p197
        %p500 = pneg %p226
        %p501 = pneg %p223
        %p502 = pneg %p256
        %p503 = pneg %p253
        %s504 = sand.u32 %s243, 1
        %s505 = scalar_lea.sflag [#allocation4], %s504
        %s506 = sand.u32 %s243, 1
        %s507 = smul.addr %s506, 16
        %s508 = scalar_lea.vmem [#allocation14], %s507
        %p509 = pneg %p286
        %p510 = pneg %p283
        %s511 = sand.u32 %s33, 1
        %s512 = scalar_lea.sflag [#allocation16], %s511
        %s513 = sand.u32 %s273, 1
        %s514 = smul.addr %s513, 16
        %s515 = scalar_lea.vmem [#allocation15], %s514
        %p516 = pneg %p316
        %p517 = pneg %p313
        %s518 = sand.u32 %s33, 1
        %s519 = scalar_lea.sflag [#allocation16], %s518
        %s520 = sand.u32 %s303, 1
        %s521 = smul.addr %s520, 16
        %s522 = scalar_lea.vmem [#allocation17], %s521
        %s523 = smul.u32 4, %s38
        %s524 = smul.u32 4, %s38
        %s525 = smul.u32 4, %s38
        %s526 = smul.u32 4, %s38
        %s527 = smul.u32 4, %s38
        %s528 = smul.u32 4, %s38
        %v529 = vld [vmem:[%s454] sm:$0xff]
        %v530 = vld [vmem:[%s454 + $0x8] sm:$0xff]
        %v531 = vld [vmem:[%s454 + $0x10] sm:$0xff]
        %v532 = vld [vmem:[%s454 + $0x18] sm:$0xff]
        %v533 = vmul.f32 %v529, %v529
        %v534 = vmul.f32 %v530, %v530
        %v535 = vmul.f32 %v531, %v531
        %v536 = vmul.f32 %v532, %v532
        %v537 = vadd.f32 %v533, %v534
        %v538 = vadd.f32 %v537, %v535
        %v539 = vadd.f32 %v538, %v536
        %540 = vadd.xlane.f32.xlu0 %v539
        %v541 = vpop.xlane.xlu0 %540
        %v542 = vrcp.pop 512.0
        %v543 = vmul.f32 %v541, %v542
        %v544 = vadd.f32 %v543, 1e-05
        %v545 = vrsqrt.pop %v544
        %v546 = vmul.f32 %v529, %v545
        %v547 = vmul.f32 %v530, %v545
        %v548 = vmul.f32 %v531, %v545
        %v549 = vmul.f32 %v532, %v545
        %v550 = vld [vmem:[#allocation5] sm:$0xf]
        %v552 = vlaneseq
        %v553 = vshrl.u32 %v552, 7
        %v554 = vsub.s32 0, %v553
        %v555 = vrot.slane %v550, %v554
        %v556 = vlaneseq
        %v557 = vshrl.u32 %v556, 7
        %v558 = vsub.s32 1, %v557
        %v559 = vrot.slane %v550, %v558
        %v560 = vlaneseq
        %v561 = vshrl.u32 %v560, 7
        %v562 = vsub.s32 2, %v561
        %v563 = vrot.slane %v550, %v562
        %v564 = vlaneseq
        %v565 = vshrl.u32 %v564, 7
        %v566 = vsub.s32 3, %v565
        %v567 = vrot.slane %v550, %v566
        %v572 = vmul.f32 %v546, %v555
        %v573 = vmul.f32 %v547, %v559
        %v574 = vmul.f32 %v548, %v563
        %v575 = vmul.f32 %v549, %v567
        %v576 = vpack.c.bf16 %v572, %v572
        %v577 = vpack.c.bf16 %v573, %v573
        %v578 = vpack.c.bf16 %v574, %v574
        %v579 = vpack.c.bf16 %v575, %v575
        %v580 = vld [vmem:[#allocation11] sm:$0xff]
        %v581 = vld [vmem:[#allocation11 + $0x8] sm:$0xff]
        %v582 = vld [vmem:[#allocation11 + $0x10] sm:$0xff]
        %v583 = vld [vmem:[#allocation11 + $0x18] sm:$0xff]
        %v584 = vld [vmem:[#allocation13] sm:$0xff]
        %v585 = vld [vmem:[#allocation13 + $0x8] sm:$0xff]
        %v586 = vld [vmem:[#allocation13 + $0x10] sm:$0xff]
        %v587 = vld [vmem:[#allocation13 + $0x18] sm:$0xff]
        %v588 = vld [vmem:[#allocation7] sm:$0xff]
        %v589 = vld [vmem:[#allocation7 + $0x8] sm:$0xff]
        %v590 = vld [vmem:[#allocation7 + $0x10] sm:$0xff]
        %v591 = vld [vmem:[#allocation7 + $0x18] sm:$0xff]
        %v592 = vld [vmem:[#allocation7 + $0x20] sm:$0xff]
        %v593 = vld [vmem:[#allocation7 + $0x28] sm:$0xff]
        %v594 = vld [vmem:[#allocation7 + $0x30] sm:$0xff]
        %v595 = vld [vmem:[#allocation7 + $0x38] sm:$0xff]
        %v596 = vld [vmem:[#allocation7 + $0x40] sm:$0xff]
        %v597 = vld [vmem:[#allocation7 + $0x48] sm:$0xff]
        %v598 = vld [vmem:[#allocation7 + $0x50] sm:$0xff]
        %v599 = vld [vmem:[#allocation7 + $0x58] sm:$0xff]
        %v600 = vld [vmem:[#allocation7 + $0x60] sm:$0xff]
        %v601 = vld [vmem:[#allocation7 + $0x68] sm:$0xff]
        %v602 = vld [vmem:[#allocation7 + $0x70] sm:$0xff]
        %v603 = vld [vmem:[#allocation7 + $0x78] sm:$0xff]
        %v604 = vld [vmem:[#allocation7 + $0x80] sm:$0xff]
        %v605 = vld [vmem:[#allocation7 + $0x88] sm:$0xff]
        %v606 = vld [vmem:[#allocation7 + $0x90] sm:$0xff]
        %v607 = vld [vmem:[#allocation7 + $0x98] sm:$0xff]
        %v608 = vld [vmem:[#allocation7 + $0xa0] sm:$0xff]
        %v609 = vld [vmem:[#allocation7 + $0xa8] sm:$0xff]
        %v610 = vld [vmem:[#allocation7 + $0xb0] sm:$0xff]
        %v611 = vld [vmem:[#allocation7 + $0xb8] sm:$0xff]
        %v612 = vld [vmem:[#allocation7 + $0xc0] sm:$0xff]
        %v613 = vld [vmem:[#allocation7 + $0xc8] sm:$0xff]
        %v614 = vld [vmem:[#allocation7 + $0xd0] sm:$0xff]
        %v615 = vld [vmem:[#allocation7 + $0xd8] sm:$0xff]
        %v616 = vld [vmem:[#allocation7 + $0xe0] sm:$0xff]
        %v617 = vld [vmem:[#allocation7 + $0xe8] sm:$0xff]
        %v618 = vld [vmem:[#allocation7 + $0xf0] sm:$0xff]
        %v619 = vld [vmem:[#allocation7 + $0xf8] sm:$0xff]
        %v620 = vld [vmem:[#allocation7 + $0x100] sm:$0xff]
        %v621 = vld [vmem:[#allocation7 + $0x108] sm:$0xff]
        %v622 = vld [vmem:[#allocation7 + $0x110] sm:$0xff]
        %v623 = vld [vmem:[#allocation7 + $0x118] sm:$0xff]
        %v624 = vld [vmem:[#allocation7 + $0x120] sm:$0xff]
        %v625 = vld [vmem:[#allocation7 + $0x128] sm:$0xff]
        %v626 = vld [vmem:[#allocation7 + $0x130] sm:$0xff]
        %v627 = vld [vmem:[#allocation7 + $0x138] sm:$0xff]
        %v628 = vld [vmem:[#allocation7 + $0x140] sm:$0xff]
        %v629 = vld [vmem:[#allocation7 + $0x148] sm:$0xff]
        %v630 = vld [vmem:[#allocation7 + $0x150] sm:$0xff]
        %v631 = vld [vmem:[#allocation7 + $0x158] sm:$0xff]
        %v632 = vld [vmem:[#allocation7 + $0x160] sm:$0xff]
        %v633 = vld [vmem:[#allocation7 + $0x168] sm:$0xff]
        %v634 = vld [vmem:[#allocation7 + $0x170] sm:$0xff]
        %v635 = vld [vmem:[#allocation7 + $0x178] sm:$0xff]
        %v636 = vld [vmem:[#allocation7 + $0x180] sm:$0xff]
        %v637 = vld [vmem:[#allocation7 + $0x188] sm:$0xff]
        %v638 = vld [vmem:[#allocation7 + $0x190] sm:$0xff]
        %v639 = vld [vmem:[#allocation7 + $0x198] sm:$0xff]
        %v640 = vld [vmem:[#allocation7 + $0x1a0] sm:$0xff]
        %v641 = vld [vmem:[#allocation7 + $0x1a8] sm:$0xff]
        %v642 = vld [vmem:[#allocation7 + $0x1b0] sm:$0xff]
        %v643 = vld [vmem:[#allocation7 + $0x1b8] sm:$0xff]
        %v644 = vld [vmem:[#allocation7 + $0x1c0] sm:$0xff]
        %v645 = vld [vmem:[#allocation7 + $0x1c8] sm:$0xff]
        %v646 = vld [vmem:[#allocation7 + $0x1d0] sm:$0xff]
        %v647 = vld [vmem:[#allocation7 + $0x1d8] sm:$0xff]
        %v648 = vld [vmem:[#allocation7 + $0x1e0] sm:$0xff]
        %v649 = vld [vmem:[#allocation7 + $0x1e8] sm:$0xff]
        %v650 = vld [vmem:[#allocation7 + $0x1f0] sm:$0xff]
        %v651 = vld [vmem:[#allocation7 + $0x1f8] sm:$0xff]
        %v652 = vld [vmem:[#allocation7 + $0x200] sm:$0xff]
        %v653 = vld [vmem:[#allocation7 + $0x208] sm:$0xff]
        %v654 = vld [vmem:[#allocation7 + $0x210] sm:$0xff]
        %v655 = vld [vmem:[#allocation7 + $0x218] sm:$0xff]
        %v656 = vld [vmem:[#allocation7 + $0x220] sm:$0xff]
        %v657 = vld [vmem:[#allocation7 + $0x228] sm:$0xff]
        %v658 = vld [vmem:[#allocation7 + $0x230] sm:$0xff]
        %v659 = vld [vmem:[#allocation7 + $0x238] sm:$0xff]
        %v660 = vld [vmem:[#allocation7 + $0x240] sm:$0xff]
        %v661 = vld [vmem:[#allocation7 + $0x248] sm:$0xff]
        %v662 = vld [vmem:[#allocation7 + $0x250] sm:$0xff]
        %v663 = vld [vmem:[#allocation7 + $0x258] sm:$0xff]
        %v664 = vld [vmem:[#allocation7 + $0x260] sm:$0xff]
        %v665 = vld [vmem:[#allocation7 + $0x268] sm:$0xff]
        %v666 = vld [vmem:[#allocation7 + $0x270] sm:$0xff]
        %v667 = vld [vmem:[#allocation7 + $0x278] sm:$0xff]
        %v668 = vld [vmem:[#allocation7 + $0x280] sm:$0xff]
        %v669 = vld [vmem:[#allocation7 + $0x288] sm:$0xff]
        %v670 = vld [vmem:[#allocation7 + $0x290] sm:$0xff]
        %v671 = vld [vmem:[#allocation7 + $0x298] sm:$0xff]
        %v672 = vld [vmem:[#allocation7 + $0x2a0] sm:$0xff]
        %v673 = vld [vmem:[#allocation7 + $0x2a8] sm:$0xff]
        %v674 = vld [vmem:[#allocation7 + $0x2b0] sm:$0xff]
        %v675 = vld [vmem:[#allocation7 + $0x2b8] sm:$0xff]
        %v676 = vld [vmem:[#allocation7 + $0x2c0] sm:$0xff]
        %v677 = vld [vmem:[#allocation7 + $0x2c8] sm:$0xff]
        %v678 = vld [vmem:[#allocation7 + $0x2d0] sm:$0xff]
        %v679 = vld [vmem:[#allocation7 + $0x2d8] sm:$0xff]
        %v680 = vld [vmem:[#allocation7 + $0x2e0] sm:$0xff]
        %v681 = vld [vmem:[#allocation7 + $0x2e8] sm:$0xff]
        %v682 = vld [vmem:[#allocation7 + $0x2f0] sm:$0xff]
        %v683 = vld [vmem:[#allocation7 + $0x2f8] sm:$0xff]
        %v684 = vld [vmem:[#allocation7 + $0x300] sm:$0xff]
        %v685 = vld [vmem:[#allocation7 + $0x308] sm:$0xff]
        %v686 = vld [vmem:[#allocation7 + $0x310] sm:$0xff]
        %v687 = vld [vmem:[#allocation7 + $0x318] sm:$0xff]
        %v688 = vld [vmem:[#allocation7 + $0x320] sm:$0xff]
        %v689 = vld [vmem:[#allocation7 + $0x328] sm:$0xff]
        %v690 = vld [vmem:[#allocation7 + $0x330] sm:$0xff]
        %v691 = vld [vmem:[#allocation7 + $0x338] sm:$0xff]
        %v692 = vld [vmem:[#allocation7 + $0x340] sm:$0xff]
        %v693 = vld [vmem:[#allocation7 + $0x348] sm:$0xff]
        %v694 = vld [vmem:[#allocation7 + $0x350] sm:$0xff]
        %v695 = vld [vmem:[#allocation7 + $0x358] sm:$0xff]
        %v696 = vld [vmem:[#allocation7 + $0x360] sm:$0xff]
        %v697 = vld [vmem:[#allocation7 + $0x368] sm:$0xff]
        %v698 = vld [vmem:[#allocation7 + $0x370] sm:$0xff]
        %v699 = vld [vmem:[#allocation7 + $0x378] sm:$0xff]
        %v700 = vld [vmem:[#allocation7 + $0x380] sm:$0xff]
        %v701 = vld [vmem:[#allocation7 + $0x388] sm:$0xff]
        %v702 = vld [vmem:[#allocation7 + $0x390] sm:$0xff]
        %v703 = vld [vmem:[#allocation7 + $0x398] sm:$0xff]
        %v704 = vld [vmem:[#allocation7 + $0x3a0] sm:$0xff]
        %v705 = vld [vmem:[#allocation7 + $0x3a8] sm:$0xff]
        %v706 = vld [vmem:[#allocation7 + $0x3b0] sm:$0xff]
        %v707 = vld [vmem:[#allocation7 + $0x3b8] sm:$0xff]
        %v708 = vld [vmem:[#allocation7 + $0x3c0] sm:$0xff]
        %v709 = vld [vmem:[#allocation7 + $0x3c8] sm:$0xff]
        %v710 = vld [vmem:[#allocation7 + $0x3d0] sm:$0xff]
        %v711 = vld [vmem:[#allocation7 + $0x3d8] sm:$0xff]
        %v712 = vld [vmem:[#allocation7 + $0x3e0] sm:$0xff]
        %v713 = vld [vmem:[#allocation7 + $0x3e8] sm:$0xff]
        %v714 = vld [vmem:[#allocation7 + $0x3f0] sm:$0xff]
        %v715 = vld [vmem:[#allocation7 + $0x3f8] sm:$0xff]
        %v844 = vunpack.c.l.b16 %v588
        %v845 = vunpack.c.h.b16 %v588
        %v846 = vunpack.c.l.b16 %v589
        %v847 = vunpack.c.h.b16 %v589
        %v848 = vunpack.c.l.b16 %v590
        %v849 = vunpack.c.h.b16 %v590
        %v850 = vunpack.c.l.b16 %v591
        %v851 = vunpack.c.h.b16 %v591
        %v852 = vunpack.c.l.b16 %v592
        %v853 = vunpack.c.h.b16 %v592
        %v854 = vunpack.c.l.b16 %v593
        %v855 = vunpack.c.h.b16 %v593
        %v856 = vunpack.c.l.b16 %v594
        %v857 = vunpack.c.h.b16 %v594
        %v858 = vunpack.c.l.b16 %v595
        %v859 = vunpack.c.h.b16 %v595
        %v860 = vunpack.c.l.b16 %v596
        %v861 = vunpack.c.h.b16 %v596
        %v862 = vunpack.c.l.b16 %v597
        %v863 = vunpack.c.h.b16 %v597
        %v864 = vunpack.c.l.b16 %v598
        %v865 = vunpack.c.h.b16 %v598
        %v866 = vunpack.c.l.b16 %v599
        %v867 = vunpack.c.h.b16 %v599
        %v868 = vunpack.c.l.b16 %v600
        %v869 = vunpack.c.h.b16 %v600
        %v870 = vunpack.c.l.b16 %v601
        %v871 = vunpack.c.h.b16 %v601
        %v872 = vunpack.c.l.b16 %v602
        %v873 = vunpack.c.h.b16 %v602
        %v874 = vunpack.c.l.b16 %v603
        %v875 = vunpack.c.h.b16 %v603
        %v876 = vunpack.c.l.b16 %v604
        %v877 = vunpack.c.h.b16 %v604
        %v878 = vunpack.c.l.b16 %v605
        %v879 = vunpack.c.h.b16 %v605
        %v880 = vunpack.c.l.b16 %v606
        %v881 = vunpack.c.h.b16 %v606
        %v882 = vunpack.c.l.b16 %v607
        %v883 = vunpack.c.h.b16 %v607
        %v884 = vunpack.c.l.b16 %v608
        %v885 = vunpack.c.h.b16 %v608
        %v886 = vunpack.c.l.b16 %v609
        %v887 = vunpack.c.h.b16 %v609
        %v888 = vunpack.c.l.b16 %v610
        %v889 = vunpack.c.h.b16 %v610
        %v890 = vunpack.c.l.b16 %v611
        %v891 = vunpack.c.h.b16 %v611
        %v892 = vunpack.c.l.b16 %v612
        %v893 = vunpack.c.h.b16 %v612
        %v894 = vunpack.c.l.b16 %v613
        %v895 = vunpack.c.h.b16 %v613
        %v896 = vunpack.c.l.b16 %v614
        %v897 = vunpack.c.h.b16 %v614
        %v898 = vunpack.c.l.b16 %v615
        %v899 = vunpack.c.h.b16 %v615
        %v900 = vunpack.c.l.b16 %v616
        %v901 = vunpack.c.h.b16 %v616
        %v902 = vunpack.c.l.b16 %v617
        %v903 = vunpack.c.h.b16 %v617
        %v904 = vunpack.c.l.b16 %v618
        %v905 = vunpack.c.h.b16 %v618
        %v906 = vunpack.c.l.b16 %v619
        %v907 = vunpack.c.h.b16 %v619
        %v908 = vunpack.c.l.b16 %v620
        %v909 = vunpack.c.h.b16 %v620
        %v910 = vunpack.c.l.b16 %v621
        %v911 = vunpack.c.h.b16 %v621
        %v912 = vunpack.c.l.b16 %v622
        %v913 = vunpack.c.h.b16 %v622
        %v914 = vunpack.c.l.b16 %v623
        %v915 = vunpack.c.h.b16 %v623
        %v916 = vunpack.c.l.b16 %v624
        %v917 = vunpack.c.h.b16 %v624
        %v918 = vunpack.c.l.b16 %v625
        %v919 = vunpack.c.h.b16 %v625
        %v920 = vunpack.c.l.b16 %v626
        %v921 = vunpack.c.h.b16 %v626
        %v922 = vunpack.c.l.b16 %v627
        %v923 = vunpack.c.h.b16 %v627
        %v924 = vunpack.c.l.b16 %v628
        %v925 = vunpack.c.h.b16 %v628
        %v926 = vunpack.c.l.b16 %v629
        %v927 = vunpack.c.h.b16 %v629
        %v928 = vunpack.c.l.b16 %v630
        %v929 = vunpack.c.h.b16 %v630
        %v930 = vunpack.c.l.b16 %v631
        %v931 = vunpack.c.h.b16 %v631
        %v932 = vunpack.c.l.b16 %v632
        %v933 = vunpack.c.h.b16 %v632
        %v934 = vunpack.c.l.b16 %v633
        %v935 = vunpack.c.h.b16 %v633
        %v936 = vunpack.c.l.b16 %v634
        %v937 = vunpack.c.h.b16 %v634
        %v938 = vunpack.c.l.b16 %v635
        %v939 = vunpack.c.h.b16 %v635
        %v940 = vunpack.c.l.b16 %v636
        %v941 = vunpack.c.h.b16 %v636
        %v942 = vunpack.c.l.b16 %v637
        %v943 = vunpack.c.h.b16 %v637
        %v944 = vunpack.c.l.b16 %v638
        %v945 = vunpack.c.h.b16 %v638
        %v946 = vunpack.c.l.b16 %v639
        %v947 = vunpack.c.h.b16 %v639
        %v948 = vunpack.c.l.b16 %v640
        %v949 = vunpack.c.h.b16 %v640
        %v950 = vunpack.c.l.b16 %v641
        %v951 = vunpack.c.h.b16 %v641
        %v952 = vunpack.c.l.b16 %v642
        %v953 = vunpack.c.h.b16 %v642
        %v954 = vunpack.c.l.b16 %v643
        %v955 = vunpack.c.h.b16 %v643
        %v956 = vunpack.c.l.b16 %v644
        %v957 = vunpack.c.h.b16 %v644
        %v958 = vunpack.c.l.b16 %v645
        %v959 = vunpack.c.h.b16 %v645
        %v960 = vunpack.c.l.b16 %v646
        %v961 = vunpack.c.h.b16 %v646
        %v962 = vunpack.c.l.b16 %v647
        %v963 = vunpack.c.h.b16 %v647
        %v964 = vunpack.c.l.b16 %v648
        %v965 = vunpack.c.h.b16 %v648
        %v966 = vunpack.c.l.b16 %v649
        %v967 = vunpack.c.h.b16 %v649
        %v968 = vunpack.c.l.b16 %v650
        %v969 = vunpack.c.h.b16 %v650
        %v970 = vunpack.c.l.b16 %v651
        %v971 = vunpack.c.h.b16 %v651
        %v972 = vunpack.c.l.b16 %v652
        %v973 = vunpack.c.h.b16 %v652
        %v974 = vunpack.c.l.b16 %v653
        %v975 = vunpack.c.h.b16 %v653
        %v976 = vunpack.c.l.b16 %v654
        %v977 = vunpack.c.h.b16 %v654
        %v978 = vunpack.c.l.b16 %v655
        %v979 = vunpack.c.h.b16 %v655
        %v980 = vunpack.c.l.b16 %v656
        %v981 = vunpack.c.h.b16 %v656
        %v982 = vunpack.c.l.b16 %v657
        %v983 = vunpack.c.h.b16 %v657
        %v984 = vunpack.c.l.b16 %v658
        %v985 = vunpack.c.h.b16 %v658
        %v986 = vunpack.c.l.b16 %v659
        %v987 = vunpack.c.h.b16 %v659
        %v988 = vunpack.c.l.b16 %v660
        %v989 = vunpack.c.h.b16 %v660
        %v990 = vunpack.c.l.b16 %v661
        %v991 = vunpack.c.h.b16 %v661
        %v992 = vunpack.c.l.b16 %v662
        %v993 = vunpack.c.h.b16 %v662
        %v994 = vunpack.c.l.b16 %v663
        %v995 = vunpack.c.h.b16 %v663
        %v996 = vunpack.c.l.b16 %v664
        %v997 = vunpack.c.h.b16 %v664
        %v998 = vunpack.c.l.b16 %v665
        %v999 = vunpack.c.h.b16 %v665
        %v1000 = vunpack.c.l.b16 %v666
        %v1001 = vunpack.c.h.b16 %v666
        %v1002 = vunpack.c.l.b16 %v667
        %v1003 = vunpack.c.h.b16 %v667
        %v1004 = vunpack.c.l.b16 %v668
        %v1005 = vunpack.c.h.b16 %v668
        %v1006 = vunpack.c.l.b16 %v669
        %v1007 = vunpack.c.h.b16 %v669
        %v1008 = vunpack.c.l.b16 %v670
        %v1009 = vunpack.c.h.b16 %v670
        %v1010 = vunpack.c.l.b16 %v671
        %v1011 = vunpack.c.h.b16 %v671
        %v1012 = vunpack.c.l.b16 %v672
        %v1013 = vunpack.c.h.b16 %v672
        %v1014 = vunpack.c.l.b16 %v673
        %v1015 = vunpack.c.h.b16 %v673
        %v1016 = vunpack.c.l.b16 %v674
        %v1017 = vunpack.c.h.b16 %v674
        %v1018 = vunpack.c.l.b16 %v675
        %v1019 = vunpack.c.h.b16 %v675
        %v1020 = vunpack.c.l.b16 %v676
        %v1021 = vunpack.c.h.b16 %v676
        %v1022 = vunpack.c.l.b16 %v677
        %v1023 = vunpack.c.h.b16 %v677
        %v1024 = vunpack.c.l.b16 %v678
        %v1025 = vunpack.c.h.b16 %v678
        %v1026 = vunpack.c.l.b16 %v679
        %v1027 = vunpack.c.h.b16 %v679
        %v1028 = vunpack.c.l.b16 %v680
        %v1029 = vunpack.c.h.b16 %v680
        %v1030 = vunpack.c.l.b16 %v681
        %v1031 = vunpack.c.h.b16 %v681
        %v1032 = vunpack.c.l.b16 %v682
        %v1033 = vunpack.c.h.b16 %v682
        %v1034 = vunpack.c.l.b16 %v683
        %v1035 = vunpack.c.h.b16 %v683
        %v1036 = vunpack.c.l.b16 %v684
        %v1037 = vunpack.c.h.b16 %v684
        %v1038 = vunpack.c.l.b16 %v685
        %v1039 = vunpack.c.h.b16 %v685
        %v1040 = vunpack.c.l.b16 %v686
        %v1041 = vunpack.c.h.b16 %v686
        %v1042 = vunpack.c.l.b16 %v687
        %v1043 = vunpack.c.h.b16 %v687
        %v1044 = vunpack.c.l.b16 %v688
        %v1045 = vunpack.c.h.b16 %v688
        %v1046 = vunpack.c.l.b16 %v689
        %v1047 = vunpack.c.h.b16 %v689
        %v1048 = vunpack.c.l.b16 %v690
        %v1049 = vunpack.c.h.b16 %v690
        %v1050 = vunpack.c.l.b16 %v691
        %v1051 = vunpack.c.h.b16 %v691
        %v1052 = vunpack.c.l.b16 %v692
        %v1053 = vunpack.c.h.b16 %v692
        %v1054 = vunpack.c.l.b16 %v693
        %v1055 = vunpack.c.h.b16 %v693
        %v1056 = vunpack.c.l.b16 %v694
        %v1057 = vunpack.c.h.b16 %v694
        %v1058 = vunpack.c.l.b16 %v695
        %v1059 = vunpack.c.h.b16 %v695
        %v1060 = vunpack.c.l.b16 %v696
        %v1061 = vunpack.c.h.b16 %v696
        %v1062 = vunpack.c.l.b16 %v697
        %v1063 = vunpack.c.h.b16 %v697
        %v1064 = vunpack.c.l.b16 %v698
        %v1065 = vunpack.c.h.b16 %v698
        %v1066 = vunpack.c.l.b16 %v699
        %v1067 = vunpack.c.h.b16 %v699
        %v1068 = vunpack.c.l.b16 %v700
        %v1069 = vunpack.c.h.b16 %v700
        %v1070 = vunpack.c.l.b16 %v701
        %v1071 = vunpack.c.h.b16 %v701
        %v1072 = vunpack.c.l.b16 %v702
        %v1073 = vunpack.c.h.b16 %v702
        %v1074 = vunpack.c.l.b16 %v703
        %v1075 = vunpack.c.h.b16 %v703
        %v1076 = vunpack.c.l.b16 %v704
        %v1077 = vunpack.c.h.b16 %v704
        %v1078 = vunpack.c.l.b16 %v705
        %v1079 = vunpack.c.h.b16 %v705
        %v1080 = vunpack.c.l.b16 %v706
        %v1081 = vunpack.c.h.b16 %v706
        %v1082 = vunpack.c.l.b16 %v707
        %v1083 = vunpack.c.h.b16 %v707
        %v1084 = vunpack.c.l.b16 %v708
        %v1085 = vunpack.c.h.b16 %v708
        %v1086 = vunpack.c.l.b16 %v709
        %v1087 = vunpack.c.h.b16 %v709
        %v1088 = vunpack.c.l.b16 %v710
        %v1089 = vunpack.c.h.b16 %v710
        %v1090 = vunpack.c.l.b16 %v711
        %v1091 = vunpack.c.h.b16 %v711
        %v1092 = vunpack.c.l.b16 %v712
        %v1093 = vunpack.c.h.b16 %v712
        %v1094 = vunpack.c.l.b16 %v713
        %v1095 = vunpack.c.h.b16 %v713
        %v1096 = vunpack.c.l.b16 %v714
        %v1097 = vunpack.c.h.b16 %v714
        %v1098 = vunpack.c.l.b16 %v715
        %v1099 = vunpack.c.h.b16 %v715
        %v1100 = vpack.c.b16 %v848, %v844
        %v1101 = vpack.c.b16 %v849, %v845
        %v1102 = vpack.c.b16 %v850, %v846
        %v1103 = vpack.c.b16 %v851, %v847
        %v1104 = vpack.c.b16 %v856, %v852
        %v1105 = vpack.c.b16 %v857, %v853
        %v1106 = vpack.c.b16 %v858, %v854
        %v1107 = vpack.c.b16 %v859, %v855
        %v1108 = vpack.c.b16 %v864, %v860
        %v1109 = vpack.c.b16 %v865, %v861
        %v1110 = vpack.c.b16 %v866, %v862
        %v1111 = vpack.c.b16 %v867, %v863
        %v1112 = vpack.c.b16 %v872, %v868
        %v1113 = vpack.c.b16 %v873, %v869
        %v1114 = vpack.c.b16 %v874, %v870
        %v1115 = vpack.c.b16 %v875, %v871
        %v1116 = vpack.c.b16 %v880, %v876
        %v1117 = vpack.c.b16 %v881, %v877
        %v1118 = vpack.c.b16 %v882, %v878
        %v1119 = vpack.c.b16 %v883, %v879
        %v1120 = vpack.c.b16 %v888, %v884
        %v1121 = vpack.c.b16 %v889, %v885
        %v1122 = vpack.c.b16 %v890, %v886
        %v1123 = vpack.c.b16 %v891, %v887
        %v1124 = vpack.c.b16 %v896, %v892
        %v1125 = vpack.c.b16 %v897, %v893
        %v1126 = vpack.c.b16 %v898, %v894
        %v1127 = vpack.c.b16 %v899, %v895
        %v1128 = vpack.c.b16 %v904, %v900
        %v1129 = vpack.c.b16 %v905, %v901
        %v1130 = vpack.c.b16 %v906, %v902
        %v1131 = vpack.c.b16 %v907, %v903
        %v1132 = vpack.c.b16 %v912, %v908
        %v1133 = vpack.c.b16 %v913, %v909
        %v1134 = vpack.c.b16 %v914, %v910
        %v1135 = vpack.c.b16 %v915, %v911
        %v1136 = vpack.c.b16 %v920, %v916
        %v1137 = vpack.c.b16 %v921, %v917
        %v1138 = vpack.c.b16 %v922, %v918
        %v1139 = vpack.c.b16 %v923, %v919
        %v1140 = vpack.c.b16 %v928, %v924
        %v1141 = vpack.c.b16 %v929, %v925
        %v1142 = vpack.c.b16 %v930, %v926
        %v1143 = vpack.c.b16 %v931, %v927
        %v1144 = vpack.c.b16 %v936, %v932
        %v1145 = vpack.c.b16 %v937, %v933
        %v1146 = vpack.c.b16 %v938, %v934
        %v1147 = vpack.c.b16 %v939, %v935
        %v1148 = vpack.c.b16 %v944, %v940
        %v1149 = vpack.c.b16 %v945, %v941
        %v1150 = vpack.c.b16 %v946, %v942
        %v1151 = vpack.c.b16 %v947, %v943
        %v1152 = vpack.c.b16 %v952, %v948
        %v1153 = vpack.c.b16 %v953, %v949
        %v1154 = vpack.c.b16 %v954, %v950
        %v1155 = vpack.c.b16 %v955, %v951
        %v1156 = vpack.c.b16 %v960, %v956
        %v1157 = vpack.c.b16 %v961, %v957
        %v1158 = vpack.c.b16 %v962, %v958
        %v1159 = vpack.c.b16 %v963, %v959
        %v1160 = vpack.c.b16 %v968, %v964
        %v1161 = vpack.c.b16 %v969, %v965
        %v1162 = vpack.c.b16 %v970, %v966
        %v1163 = vpack.c.b16 %v971, %v967
        %v1164 = vpack.c.b16 %v976, %v972
        %v1165 = vpack.c.b16 %v977, %v973
        %v1166 = vpack.c.b16 %v978, %v974
        %v1167 = vpack.c.b16 %v979, %v975
        %v1168 = vpack.c.b16 %v984, %v980
        %v1169 = vpack.c.b16 %v985, %v981
        %v1170 = vpack.c.b16 %v986, %v982
        %v1171 = vpack.c.b16 %v987, %v983
        %v1172 = vpack.c.b16 %v992, %v988
        %v1173 = vpack.c.b16 %v993, %v989
        %v1174 = vpack.c.b16 %v994, %v990
        %v1175 = vpack.c.b16 %v995, %v991
        %v1176 = vpack.c.b16 %v1000, %v996
        %v1177 = vpack.c.b16 %v1001, %v997
        %v1178 = vpack.c.b16 %v1002, %v998
        %v1179 = vpack.c.b16 %v1003, %v999
        %v1180 = vpack.c.b16 %v1008, %v1004
        %v1181 = vpack.c.b16 %v1009, %v1005
        %v1182 = vpack.c.b16 %v1010, %v1006
        %v1183 = vpack.c.b16 %v1011, %v1007
        %v1184 = vpack.c.b16 %v1016, %v1012
        %v1185 = vpack.c.b16 %v1017, %v1013
        %v1186 = vpack.c.b16 %v1018, %v1014
        %v1187 = vpack.c.b16 %v1019, %v1015
        %v1188 = vpack.c.b16 %v1024, %v1020
        %v1189 = vpack.c.b16 %v1025, %v1021
        %v1190 = vpack.c.b16 %v1026, %v1022
        %v1191 = vpack.c.b16 %v1027, %v1023
        %v1192 = vpack.c.b16 %v1032, %v1028
        %v1193 = vpack.c.b16 %v1033, %v1029
        %v1194 = vpack.c.b16 %v1034, %v1030
        %v1195 = vpack.c.b16 %v1035, %v1031
        %v1196 = vpack.c.b16 %v1040, %v1036
        %v1197 = vpack.c.b16 %v1041, %v1037
        %v1198 = vpack.c.b16 %v1042, %v1038
        %v1199 = vpack.c.b16 %v1043, %v1039
        %v1200 = vpack.c.b16 %v1048, %v1044
        %v1201 = vpack.c.b16 %v1049, %v1045
        %v1202 = vpack.c.b16 %v1050, %v1046
        %v1203 = vpack.c.b16 %v1051, %v1047
        %v1204 = vpack.c.b16 %v1056, %v1052
        %v1205 = vpack.c.b16 %v1057, %v1053
        %v1206 = vpack.c.b16 %v1058, %v1054
        %v1207 = vpack.c.b16 %v1059, %v1055
        %v1208 = vpack.c.b16 %v1064, %v1060
        %v1209 = vpack.c.b16 %v1065, %v1061
        %v1210 = vpack.c.b16 %v1066, %v1062
        %v1211 = vpack.c.b16 %v1067, %v1063
        %v1212 = vpack.c.b16 %v1072, %v1068
        %v1213 = vpack.c.b16 %v1073, %v1069
        %v1214 = vpack.c.b16 %v1074, %v1070
        %v1215 = vpack.c.b16 %v1075, %v1071
        %v1216 = vpack.c.b16 %v1080, %v1076
        %v1217 = vpack.c.b16 %v1081, %v1077
        %v1218 = vpack.c.b16 %v1082, %v1078
        %v1219 = vpack.c.b16 %v1083, %v1079
        %v1220 = vpack.c.b16 %v1088, %v1084
        %v1221 = vpack.c.b16 %v1089, %v1085
        %v1222 = vpack.c.b16 %v1090, %v1086
        %v1223 = vpack.c.b16 %v1091, %v1087
        %v1224 = vpack.c.b16 %v1096, %v1092
        %v1225 = vpack.c.b16 %v1097, %v1093
        %v1226 = vpack.c.b16 %v1098, %v1094
        %v1227 = vpack.c.b16 %v1099, %v1095
        %1356 = vmatprep.subr.bf16.mxu0 %v1101
        %1357 = vmatpush1.bf16.msra.mxu0 %v1100
        %1358 = vmatprep.subr.bf16.mxu0 %v1105
        %1359 = vmatpush1.bf16.msra.mxu0 %v1104
        %1360 = vmatprep.subr.bf16.mxu0 %v1109
        %1361 = vmatpush1.bf16.msra.mxu0 %v1108
        %1362 = vmatprep.subr.bf16.mxu0 %v1113
        %1363 = vmatpush1.bf16.msra.mxu0 %v1112
        %1364 = vmatprep.subr.bf16.mxu0 %v1117
        %1365 = vmatpush1.bf16.msra.mxu0 %v1116
        %1366 = vmatprep.subr.bf16.mxu0 %v1121
        %1367 = vmatpush1.bf16.msra.mxu0 %v1120
        %1368 = vmatprep.subr.bf16.mxu0 %v1125
        %1369 = vmatpush1.bf16.msra.mxu0 %v1124
        %1370 = vmatprep.subr.bf16.mxu0 %v1129
        %1371 = vmatpush1.bf16.msra.mxu0 %v1128
        %1372 = vmatprep.subr.bf16.mxu0 %v1133
        %1373 = vmatpush1.bf16.msra.mxu0 %v1132
        %1374 = vmatprep.subr.bf16.mxu0 %v1137
        %1375 = vmatpush1.bf16.msra.mxu0 %v1136
        %1376 = vmatprep.subr.bf16.mxu0 %v1141
        %1377 = vmatpush1.bf16.msra.mxu0 %v1140
        %1378 = vmatprep.subr.bf16.mxu0 %v1145
        %1379 = vmatpush1.bf16.msra.mxu0 %v1144
        %1380 = vmatprep.subr.bf16.mxu0 %v1149
        %1381 = vmatpush1.bf16.msra.mxu0 %v1148
        %1382 = vmatprep.subr.bf16.mxu0 %v1153
        %1383 = vmatpush1.bf16.msra.mxu0 %v1152
        %1384 = vmatprep.subr.bf16.mxu0 %v1157
        %1385 = vmatpush1.bf16.msra.mxu0 %v1156
        %1386 = vmatprep.subr.bf16.mxu0 %v1161
        %1387 = vmatpush1.bf16.msra.mxu0 %v1160
        %1388 = vmatprep.mubr.bf16.mxu0 %v577
        %1389 = vmatmul.mubr.bf16.gmra.mrb[0].mxu0 %v576
        %v1390 = vpop.f32.mrb[0].mxu0
        %v1391 = vadd.f32 0.0, %v1390
        %v1392 = vpop.f32.mrb[0].mxu0
        %v1393 = vadd.f32 0.0, %v1392
        %v1394 = vpop.f32.mrb[0].mxu0
        %v1395 = vpop.f32.mrb[0].mxu0
        %1396 = vdwg.mxu0
        %1397 = vmatprep.subr.bf16.mxu0 %v1165
        %1398 = vmatpush1.bf16.msra.mxu0 %v1164
        %1399 = vmatprep.subr.bf16.mxu0 %v1169
        %1400 = vmatpush1.bf16.msra.mxu0 %v1168
        %1401 = vmatprep.subr.bf16.mxu0 %v1173
        %1402 = vmatpush1.bf16.msra.mxu0 %v1172
        %1403 = vmatprep.subr.bf16.mxu0 %v1177
        %1404 = vmatpush1.bf16.msra.mxu0 %v1176
        %1405 = vmatprep.subr.bf16.mxu0 %v1181
        %1406 = vmatpush1.bf16.msra.mxu0 %v1180
        %1407 = vmatprep.subr.bf16.mxu0 %v1185
        %1408 = vmatpush1.bf16.msra.mxu0 %v1184
        %1409 = vmatprep.subr.bf16.mxu0 %v1189
        %1410 = vmatpush1.bf16.msra.mxu0 %v1188
        %1411 = vmatprep.subr.bf16.mxu0 %v1193
        %1412 = vmatpush1.bf16.msra.mxu0 %v1192
        %1413 = vmatprep.subr.bf16.mxu0 %v1197
        %1414 = vmatpush1.bf16.msra.mxu0 %v1196
        %1415 = vmatprep.subr.bf16.mxu0 %v1201
        %1416 = vmatpush1.bf16.msra.mxu0 %v1200
        %1417 = vmatprep.subr.bf16.mxu0 %v1205
        %1418 = vmatpush1.bf16.msra.mxu0 %v1204
        %1419 = vmatprep.subr.bf16.mxu0 %v1209
        %1420 = vmatpush1.bf16.msra.mxu0 %v1208
        %1421 = vmatprep.subr.bf16.mxu0 %v1213
        %1422 = vmatpush1.bf16.msra.mxu0 %v1212
        %1423 = vmatprep.subr.bf16.mxu0 %v1217
        %1424 = vmatpush1.bf16.msra.mxu0 %v1216
        %1425 = vmatprep.subr.bf16.mxu0 %v1221
        %1426 = vmatpush1.bf16.msra.mxu0 %v1220
        %1427 = vmatprep.subr.bf16.mxu0 %v1225
        %1428 = vmatpush1.bf16.msra.mxu0 %v1224
        %1429 = vmatprep.mubr.bf16.mxu0 %v579
        %1430 = vmatmul.mubr.bf16.gmra.mrb[0].mxu0 %v578
        %v1431 = vpop.f32.mrb[0].mxu0
        %v1432 = vadd.f32 %v1391, %v1431
        %v1433 = vpop.f32.mrb[0].mxu0
        %v1434 = vadd.f32 %v1393, %v1433
        %v1435 = vpop.f32.mrb[0].mxu0
        %v1436 = vpop.f32.mrb[0].mxu0
        %1437 = vdwg.mxu0
        %1438 = vmatprep.subr.bf16.mxu0 %v1103
        %1439 = vmatpush1.bf16.msra.mxu0 %v1102
        %1440 = vmatprep.subr.bf16.mxu0 %v1107
        %1441 = vmatpush1.bf16.msra.mxu0 %v1106
        %1442 = vmatprep.subr.bf16.mxu0 %v1111
        %1443 = vmatpush1.bf16.msra.mxu0 %v1110
        %1444 = vmatprep.subr.bf16.mxu0 %v1115
        %1445 = vmatpush1.bf16.msra.mxu0 %v1114
        %1446 = vmatprep.subr.bf16.mxu0 %v1119
        %1447 = vmatpush1.bf16.msra.mxu0 %v1118
        %1448 = vmatprep.subr.bf16.mxu0 %v1123
        %1449 = vmatpush1.bf16.msra.mxu0 %v1122
        %1450 = vmatprep.subr.bf16.mxu0 %v1127
        %1451 = vmatpush1.bf16.msra.mxu0 %v1126
        %1452 = vmatprep.subr.bf16.mxu0 %v1131
        %1453 = vmatpush1.bf16.msra.mxu0 %v1130
        %1454 = vmatprep.subr.bf16.mxu0 %v1135
        %1455 = vmatpush1.bf16.msra.mxu0 %v1134
        %1456 = vmatprep.subr.bf16.mxu0 %v1139
        %1457 = vmatpush1.bf16.msra.mxu0 %v1138
        %1458 = vmatprep.subr.bf16.mxu0 %v1143
        %1459 = vmatpush1.bf16.msra.mxu0 %v1142
        %1460 = vmatprep.subr.bf16.mxu0 %v1147
        %1461 = vmatpush1.bf16.msra.mxu0 %v1146
        %1462 = vmatprep.subr.bf16.mxu0 %v1151
        %1463 = vmatpush1.bf16.msra.mxu0 %v1150
        %1464 = vmatprep.subr.bf16.mxu0 %v1155
        %1465 = vmatpush1.bf16.msra.mxu0 %v1154
        %1466 = vmatprep.subr.bf16.mxu0 %v1159
        %1467 = vmatpush1.bf16.msra.mxu0 %v1158
        %1468 = vmatprep.subr.bf16.mxu0 %v1163
        %1469 = vmatpush1.bf16.msra.mxu0 %v1162
        %1470 = vmatprep.mubr.bf16.mxu0 %v577
        %1471 = vmatmul.mubr.bf16.gmra.mrb[0].mxu0 %v576
        %v1472 = vpop.f32.mrb[0].mxu0
        %v1473 = vadd.f32 0.0, %v1472
        %v1474 = vpop.f32.mrb[0].mxu0
        %v1475 = vadd.f32 0.0, %v1474
        %v1476 = vpop.f32.mrb[0].mxu0
        %v1477 = vpop.f32.mrb[0].mxu0
        %1478 = vdwg.mxu0
        %1479 = vmatprep.subr.bf16.mxu0 %v1167
        %1480 = vmatpush1.bf16.msra.mxu0 %v1166
        %1481 = vmatprep.subr.bf16.mxu0 %v1171
        %1482 = vmatpush1.bf16.msra.mxu0 %v1170
        %1483 = vmatprep.subr.bf16.mxu0 %v1175
        %1484 = vmatpush1.bf16.msra.mxu0 %v1174
        %1485 = vmatprep.subr.bf16.mxu0 %v1179
        %1486 = vmatpush1.bf16.msra.mxu0 %v1178
        %1487 = vmatprep.subr.bf16.mxu0 %v1183
        %1488 = vmatpush1.bf16.msra.mxu0 %v1182
        %1489 = vmatprep.subr.bf16.mxu0 %v1187
        %1490 = vmatpush1.bf16.msra.mxu0 %v1186
        %1491 = vmatprep.subr.bf16.mxu0 %v1191
        %1492 = vmatpush1.bf16.msra.mxu0 %v1190
        %1493 = vmatprep.subr.bf16.mxu0 %v1195
        %1494 = vmatpush1.bf16.msra.mxu0 %v1194
        %1495 = vmatprep.subr.bf16.mxu0 %v1199
        %1496 = vmatpush1.bf16.msra.mxu0 %v1198
        %1497 = vmatprep.subr.bf16.mxu0 %v1203
        %1498 = vmatpush1.bf16.msra.mxu0 %v1202
        %1499 = vmatprep.subr.bf16.mxu0 %v1207
        %1500 = vmatpush1.bf16.msra.mxu0 %v1206
        %1501 = vmatprep.subr.bf16.mxu0 %v1211
        %1502 = vmatpush1.bf16.msra.mxu0 %v1210
        %1503 = vmatprep.subr.bf16.mxu0 %v1215
        %1504 = vmatpush1.bf16.msra.mxu0 %v1214
        %1505 = vmatprep.subr.bf16.mxu0 %v1219
        %1506 = vmatpush1.bf16.msra.mxu0 %v1218
        %1507 = vmatprep.subr.bf16.mxu0 %v1223
        %1508 = vmatpush1.bf16.msra.mxu0 %v1222
        %1509 = vmatprep.subr.bf16.mxu0 %v1227
        %1510 = vmatpush1.bf16.msra.mxu0 %v1226
        %1511 = vmatprep.mubr.bf16.mxu0 %v579
        %1512 = vmatmul.mubr.bf16.gmra.mrb[0].mxu0 %v578
        %v1513 = vpop.f32.mrb[0].mxu0
        %v1514 = vadd.f32 %v1473, %v1513
        %v1515 = vpop.f32.mrb[0].mxu0
        %v1516 = vadd.f32 %v1475, %v1515
        %v1517 = vpop.f32.mrb[0].mxu0
        %v1518 = vpop.f32.mrb[0].mxu0
        %1519 = vdwg.mxu0
        %v1520 = vmul.f32 %v1432, %v580
        %v1521 = vmul.f32 %v1434, %v581
        %v1522 = vmul.f32 %v1514, %v582
        %v1523 = vmul.f32 %v1516, %v583
        %v1524 = vmul.f32 %v1514, %v584
        %v1525 = vmul.f32 %v1516, %v585
        %v1526 = vmul.f32 %v1432, %v586
        %v1527 = vmul.f32 %v1434, %v587
        %v1528 = vadd.f32 %v1520, %v1524
        %v1529 = vadd.f32 %v1521, %v1525
        %v1530 = vadd.f32 %v1522, %v1526
        %v1531 = vadd.f32 %v1523, %v1527
        %v1532 = vpack.c.bf16 %v1528, %v1528
        %v1533 = vpack.c.bf16 %v1529, %v1529
        %v1534 = vpack.c.bf16 %v1530, %v1530
        %v1535 = vpack.c.bf16 %v1531, %v1531
        %v1540 = vunpack.c.l.b16 %v1532
        %v1541 = vunpack.c.l.b16 %v1533
        %v1542 = vunpack.c.l.b16 %v1534
        %v1543 = vunpack.c.l.b16 %v1535
        %v1544 = vpack.c.b16 %v1541, %v1540
        %v1545 = vpack.c.b16 %v1543, %v1542
        %1548 = vst [vmem:[%s508] sm:$0xff] %v1544
        %1549 = vst [vmem:[%s508 + $0x8] sm:$0xff] %v1545
        %v1550 = vld [vmem:[#allocation8] sm:$0xff]
        %v1551 = vld [vmem:[#allocation8 + $0x8] sm:$0xff]
        %v1552 = vld [vmem:[#allocation8 + $0x10] sm:$0xff]
        %v1553 = vld [vmem:[#allocation8 + $0x18] sm:$0xff]
        %v1554 = vld [vmem:[#allocation8 + $0x20] sm:$0xff]
        %v1555 = vld [vmem:[#allocation8 + $0x28] sm:$0xff]
        %v1556 = vld [vmem:[#allocation8 + $0x30] sm:$0xff]
        %v1557 = vld [vmem:[#allocation8 + $0x38] sm:$0xff]
        %v1558 = vld [vmem:[#allocation8 + $0x40] sm:$0xff]
        %v1559 = vld [vmem:[#allocation8 + $0x48] sm:$0xff]
        %v1560 = vld [vmem:[#allocation8 + $0x50] sm:$0xff]
        %v1561 = vld [vmem:[#allocation8 + $0x58] sm:$0xff]
        %v1562 = vld [vmem:[#allocation8 + $0x60] sm:$0xff]
        %v1563 = vld [vmem:[#allocation8 + $0x68] sm:$0xff]
        %v1564 = vld [vmem:[#allocation8 + $0x70] sm:$0xff]
        %v1565 = vld [vmem:[#allocation8 + $0x78] sm:$0xff]
        %v1566 = vld [vmem:[#allocation8 + $0x80] sm:$0xff]
        %v1567 = vld [vmem:[#allocation8 + $0x88] sm:$0xff]
        %v1568 = vld [vmem:[#allocation8 + $0x90] sm:$0xff]
        %v1569 = vld [vmem:[#allocation8 + $0x98] sm:$0xff]
        %v1570 = vld [vmem:[#allocation8 + $0xa0] sm:$0xff]
        %v1571 = vld [vmem:[#allocation8 + $0xa8] sm:$0xff]
        %v1572 = vld [vmem:[#allocation8 + $0xb0] sm:$0xff]
        %v1573 = vld [vmem:[#allocation8 + $0xb8] sm:$0xff]
        %v1574 = vld [vmem:[#allocation8 + $0xc0] sm:$0xff]
        %v1575 = vld [vmem:[#allocation8 + $0xc8] sm:$0xff]
        %v1576 = vld [vmem:[#allocation8 + $0xd0] sm:$0xff]
        %v1577 = vld [vmem:[#allocation8 + $0xd8] sm:$0xff]
        %v1578 = vld [vmem:[#allocation8 + $0xe0] sm:$0xff]
        %v1579 = vld [vmem:[#allocation8 + $0xe8] sm:$0xff]
        %v1580 = vld [vmem:[#allocation8 + $0xf0] sm:$0xff]
        %v1581 = vld [vmem:[#allocation8 + $0xf8] sm:$0xff]
        %v1582 = vld [vmem:[#allocation8 + $0x100] sm:$0xff]
        %v1583 = vld [vmem:[#allocation8 + $0x108] sm:$0xff]
        %v1584 = vld [vmem:[#allocation8 + $0x110] sm:$0xff]
        %v1585 = vld [vmem:[#allocation8 + $0x118] sm:$0xff]
        %v1586 = vld [vmem:[#allocation8 + $0x120] sm:$0xff]
        %v1587 = vld [vmem:[#allocation8 + $0x128] sm:$0xff]
        %v1588 = vld [vmem:[#allocation8 + $0x130] sm:$0xff]
        %v1589 = vld [vmem:[#allocation8 + $0x138] sm:$0xff]
        %v1590 = vld [vmem:[#allocation8 + $0x140] sm:$0xff]
        %v1591 = vld [vmem:[#allocation8 + $0x148] sm:$0xff]
        %v1592 = vld [vmem:[#allocation8 + $0x150] sm:$0xff]
        %v1593 = vld [vmem:[#allocation8 + $0x158] sm:$0xff]
        %v1594 = vld [vmem:[#allocation8 + $0x160] sm:$0xff]
        %v1595 = vld [vmem:[#allocation8 + $0x168] sm:$0xff]
        %v1596 = vld [vmem:[#allocation8 + $0x170] sm:$0xff]
        %v1597 = vld [vmem:[#allocation8 + $0x178] sm:$0xff]
        %v1598 = vld [vmem:[#allocation8 + $0x180] sm:$0xff]
        %v1599 = vld [vmem:[#allocation8 + $0x188] sm:$0xff]
        %v1600 = vld [vmem:[#allocation8 + $0x190] sm:$0xff]
        %v1601 = vld [vmem:[#allocation8 + $0x198] sm:$0xff]
        %v1602 = vld [vmem:[#allocation8 + $0x1a0] sm:$0xff]
        %v1603 = vld [vmem:[#allocation8 + $0x1a8] sm:$0xff]
        %v1604 = vld [vmem:[#allocation8 + $0x1b0] sm:$0xff]
        %v1605 = vld [vmem:[#allocation8 + $0x1b8] sm:$0xff]
        %v1606 = vld [vmem:[#allocation8 + $0x1c0] sm:$0xff]
        %v1607 = vld [vmem:[#allocation8 + $0x1c8] sm:$0xff]
        %v1608 = vld [vmem:[#allocation8 + $0x1d0] sm:$0xff]
        %v1609 = vld [vmem:[#allocation8 + $0x1d8] sm:$0xff]
        %v1610 = vld [vmem:[#allocation8 + $0x1e0] sm:$0xff]
        %v1611 = vld [vmem:[#allocation8 + $0x1e8] sm:$0xff]
        %v1612 = vld [vmem:[#allocation8 + $0x1f0] sm:$0xff]
        %v1613 = vld [vmem:[#allocation8 + $0x1f8] sm:$0xff]
        %v1614 = vld [vmem:[#allocation8 + $0x200] sm:$0xff]
        %v1615 = vld [vmem:[#allocation8 + $0x208] sm:$0xff]
        %v1616 = vld [vmem:[#allocation8 + $0x210] sm:$0xff]
        %v1617 = vld [vmem:[#allocation8 + $0x218] sm:$0xff]
        %v1618 = vld [vmem:[#allocation8 + $0x220] sm:$0xff]
        %v1619 = vld [vmem:[#allocation8 + $0x228] sm:$0xff]
        %v1620 = vld [vmem:[#allocation8 + $0x230] sm:$0xff]
        %v1621 = vld [vmem:[#allocation8 + $0x238] sm:$0xff]
        %v1622 = vld [vmem:[#allocation8 + $0x240] sm:$0xff]
        %v1623 = vld [vmem:[#allocation8 + $0x248] sm:$0xff]
        %v1624 = vld [vmem:[#allocation8 + $0x250] sm:$0xff]
        %v1625 = vld [vmem:[#allocation8 + $0x258] sm:$0xff]
        %v1626 = vld [vmem:[#allocation8 + $0x260] sm:$0xff]
        %v1627 = vld [vmem:[#allocation8 + $0x268] sm:$0xff]
        %v1628 = vld [vmem:[#allocation8 + $0x270] sm:$0xff]
        %v1629 = vld [vmem:[#allocation8 + $0x278] sm:$0xff]
        %v1630 = vld [vmem:[#allocation8 + $0x280] sm:$0xff]
        %v1631 = vld [vmem:[#allocation8 + $0x288] sm:$0xff]
        %v1632 = vld [vmem:[#allocation8 + $0x290] sm:$0xff]
        %v1633 = vld [vmem:[#allocation8 + $0x298] sm:$0xff]
        %v1634 = vld [vmem:[#allocation8 + $0x2a0] sm:$0xff]
        %v1635 = vld [vmem:[#allocation8 + $0x2a8] sm:$0xff]
        %v1636 = vld [vmem:[#allocation8 + $0x2b0] sm:$0xff]
        %v1637 = vld [vmem:[#allocation8 + $0x2b8] sm:$0xff]
        %v1638 = vld [vmem:[#allocation8 + $0x2c0] sm:$0xff]
        %v1639 = vld [vmem:[#allocation8 + $0x2c8] sm:$0xff]
        %v1640 = vld [vmem:[#allocation8 + $0x2d0] sm:$0xff]
        %v1641 = vld [vmem:[#allocation8 + $0x2d8] sm:$0xff]
        %v1642 = vld [vmem:[#allocation8 + $0x2e0] sm:$0xff]
        %v1643 = vld [vmem:[#allocation8 + $0x2e8] sm:$0xff]
        %v1644 = vld [vmem:[#allocation8 + $0x2f0] sm:$0xff]
        %v1645 = vld [vmem:[#allocation8 + $0x2f8] sm:$0xff]
        %v1646 = vld [vmem:[#allocation8 + $0x300] sm:$0xff]
        %v1647 = vld [vmem:[#allocation8 + $0x308] sm:$0xff]
        %v1648 = vld [vmem:[#allocation8 + $0x310] sm:$0xff]
        %v1649 = vld [vmem:[#allocation8 + $0x318] sm:$0xff]
        %v1650 = vld [vmem:[#allocation8 + $0x320] sm:$0xff]
        %v1651 = vld [vmem:[#allocation8 + $0x328] sm:$0xff]
        %v1652 = vld [vmem:[#allocation8 + $0x330] sm:$0xff]
        %v1653 = vld [vmem:[#allocation8 + $0x338] sm:$0xff]
        %v1654 = vld [vmem:[#allocation8 + $0x340] sm:$0xff]
        %v1655 = vld [vmem:[#allocation8 + $0x348] sm:$0xff]
        %v1656 = vld [vmem:[#allocation8 + $0x350] sm:$0xff]
        %v1657 = vld [vmem:[#allocation8 + $0x358] sm:$0xff]
        %v1658 = vld [vmem:[#allocation8 + $0x360] sm:$0xff]
        %v1659 = vld [vmem:[#allocation8 + $0x368] sm:$0xff]
        %v1660 = vld [vmem:[#allocation8 + $0x370] sm:$0xff]
        %v1661 = vld [vmem:[#allocation8 + $0x378] sm:$0xff]
        %v1662 = vld [vmem:[#allocation8 + $0x380] sm:$0xff]
        %v1663 = vld [vmem:[#allocation8 + $0x388] sm:$0xff]
        %v1664 = vld [vmem:[#allocation8 + $0x390] sm:$0xff]
        %v1665 = vld [vmem:[#allocation8 + $0x398] sm:$0xff]
        %v1666 = vld [vmem:[#allocation8 + $0x3a0] sm:$0xff]
        %v1667 = vld [vmem:[#allocation8 + $0x3a8] sm:$0xff]
        %v1668 = vld [vmem:[#allocation8 + $0x3b0] sm:$0xff]
        %v1669 = vld [vmem:[#allocation8 + $0x3b8] sm:$0xff]
        %v1670 = vld [vmem:[#allocation8 + $0x3c0] sm:$0xff]
        %v1671 = vld [vmem:[#allocation8 + $0x3c8] sm:$0xff]
        %v1672 = vld [vmem:[#allocation8 + $0x3d0] sm:$0xff]
        %v1673 = vld [vmem:[#allocation8 + $0x3d8] sm:$0xff]
        %v1674 = vld [vmem:[#allocation8 + $0x3e0] sm:$0xff]
        %v1675 = vld [vmem:[#allocation8 + $0x3e8] sm:$0xff]
        %v1676 = vld [vmem:[#allocation8 + $0x3f0] sm:$0xff]
        %v1677 = vld [vmem:[#allocation8 + $0x3f8] sm:$0xff]
        %v1806 = vunpack.c.l.b16 %v1550
        %v1807 = vunpack.c.h.b16 %v1550
        %v1808 = vunpack.c.l.b16 %v1551
        %v1809 = vunpack.c.h.b16 %v1551
        %v1810 = vunpack.c.l.b16 %v1552
        %v1811 = vunpack.c.h.b16 %v1552
        %v1812 = vunpack.c.l.b16 %v1553
        %v1813 = vunpack.c.h.b16 %v1553
        %v1814 = vunpack.c.l.b16 %v1554
        %v1815 = vunpack.c.h.b16 %v1554
        %v1816 = vunpack.c.l.b16 %v1555
        %v1817 = vunpack.c.h.b16 %v1555
        %v1818 = vunpack.c.l.b16 %v1556
        %v1819 = vunpack.c.h.b16 %v1556
        %v1820 = vunpack.c.l.b16 %v1557
        %v1821 = vunpack.c.h.b16 %v1557
        %v1822 = vunpack.c.l.b16 %v1558
        %v1823 = vunpack.c.h.b16 %v1558
        %v1824 = vunpack.c.l.b16 %v1559
        %v1825 = vunpack.c.h.b16 %v1559
        %v1826 = vunpack.c.l.b16 %v1560
        %v1827 = vunpack.c.h.b16 %v1560
        %v1828 = vunpack.c.l.b16 %v1561
        %v1829 = vunpack.c.h.b16 %v1561
        %v1830 = vunpack.c.l.b16 %v1562
        %v1831 = vunpack.c.h.b16 %v1562
        %v1832 = vunpack.c.l.b16 %v1563
        %v1833 = vunpack.c.h.b16 %v1563
        %v1834 = vunpack.c.l.b16 %v1564
        %v1835 = vunpack.c.h.b16 %v1564
        %v1836 = vunpack.c.l.b16 %v1565
        %v1837 = vunpack.c.h.b16 %v1565
        %v1838 = vunpack.c.l.b16 %v1566
        %v1839 = vunpack.c.h.b16 %v1566
        %v1840 = vunpack.c.l.b16 %v1567
        %v1841 = vunpack.c.h.b16 %v1567
        %v1842 = vunpack.c.l.b16 %v1568
        %v1843 = vunpack.c.h.b16 %v1568
        %v1844 = vunpack.c.l.b16 %v1569
        %v1845 = vunpack.c.h.b16 %v1569
        %v1846 = vunpack.c.l.b16 %v1570
        %v1847 = vunpack.c.h.b16 %v1570
        %v1848 = vunpack.c.l.b16 %v1571
        %v1849 = vunpack.c.h.b16 %v1571
        %v1850 = vunpack.c.l.b16 %v1572
        %v1851 = vunpack.c.h.b16 %v1572
        %v1852 = vunpack.c.l.b16 %v1573
        %v1853 = vunpack.c.h.b16 %v1573
        %v1854 = vunpack.c.l.b16 %v1574
        %v1855 = vunpack.c.h.b16 %v1574
        %v1856 = vunpack.c.l.b16 %v1575
        %v1857 = vunpack.c.h.b16 %v1575
        %v1858 = vunpack.c.l.b16 %v1576
        %v1859 = vunpack.c.h.b16 %v1576
        %v1860 = vunpack.c.l.b16 %v1577
        %v1861 = vunpack.c.h.b16 %v1577
        %v1862 = vunpack.c.l.b16 %v1578
        %v1863 = vunpack.c.h.b16 %v1578
        %v1864 = vunpack.c.l.b16 %v1579
        %v1865 = vunpack.c.h.b16 %v1579
        %v1866 = vunpack.c.l.b16 %v1580
        %v1867 = vunpack.c.h.b16 %v1580
        %v1868 = vunpack.c.l.b16 %v1581
        %v1869 = vunpack.c.h.b16 %v1581
        %v1870 = vunpack.c.l.b16 %v1582
        %v1871 = vunpack.c.h.b16 %v1582
        %v1872 = vunpack.c.l.b16 %v1583
        %v1873 = vunpack.c.h.b16 %v1583
        %v1874 = vunpack.c.l.b16 %v1584
        %v1875 = vunpack.c.h.b16 %v1584
        %v1876 = vunpack.c.l.b16 %v1585
        %v1877 = vunpack.c.h.b16 %v1585
        %v1878 = vunpack.c.l.b16 %v1586
        %v1879 = vunpack.c.h.b16 %v1586
        %v1880 = vunpack.c.l.b16 %v1587
        %v1881 = vunpack.c.h.b16 %v1587
        %v1882 = vunpack.c.l.b16 %v1588
        %v1883 = vunpack.c.h.b16 %v1588
        %v1884 = vunpack.c.l.b16 %v1589
        %v1885 = vunpack.c.h.b16 %v1589
        %v1886 = vunpack.c.l.b16 %v1590
        %v1887 = vunpack.c.h.b16 %v1590
        %v1888 = vunpack.c.l.b16 %v1591
        %v1889 = vunpack.c.h.b16 %v1591
        %v1890 = vunpack.c.l.b16 %v1592
        %v1891 = vunpack.c.h.b16 %v1592
        %v1892 = vunpack.c.l.b16 %v1593
        %v1893 = vunpack.c.h.b16 %v1593
        %v1894 = vunpack.c.l.b16 %v1594
        %v1895 = vunpack.c.h.b16 %v1594
        %v1896 = vunpack.c.l.b16 %v1595
        %v1897 = vunpack.c.h.b16 %v1595
        %v1898 = vunpack.c.l.b16 %v1596
        %v1899 = vunpack.c.h.b16 %v1596
        %v1900 = vunpack.c.l.b16 %v1597
        %v1901 = vunpack.c.h.b16 %v1597
        %v1902 = vunpack.c.l.b16 %v1598
        %v1903 = vunpack.c.h.b16 %v1598
        %v1904 = vunpack.c.l.b16 %v1599
        %v1905 = vunpack.c.h.b16 %v1599
        %v1906 = vunpack.c.l.b16 %v1600
        %v1907 = vunpack.c.h.b16 %v1600
        %v1908 = vunpack.c.l.b16 %v1601
        %v1909 = vunpack.c.h.b16 %v1601
        %v1910 = vunpack.c.l.b16 %v1602
        %v1911 = vunpack.c.h.b16 %v1602
        %v1912 = vunpack.c.l.b16 %v1603
        %v1913 = vunpack.c.h.b16 %v1603
        %v1914 = vunpack.c.l.b16 %v1604
        %v1915 = vunpack.c.h.b16 %v1604
        %v1916 = vunpack.c.l.b16 %v1605
        %v1917 = vunpack.c.h.b16 %v1605
        %v1918 = vunpack.c.l.b16 %v1606
        %v1919 = vunpack.c.h.b16 %v1606
        %v1920 = vunpack.c.l.b16 %v1607
        %v1921 = vunpack.c.h.b16 %v1607
        %v1922 = vunpack.c.l.b16 %v1608
        %v1923 = vunpack.c.h.b16 %v1608
        %v1924 = vunpack.c.l.b16 %v1609
        %v1925 = vunpack.c.h.b16 %v1609
        %v1926 = vunpack.c.l.b16 %v1610
        %v1927 = vunpack.c.h.b16 %v1610
        %v1928 = vunpack.c.l.b16 %v1611
        %v1929 = vunpack.c.h.b16 %v1611
        %v1930 = vunpack.c.l.b16 %v1612
        %v1931 = vunpack.c.h.b16 %v1612
        %v1932 = vunpack.c.l.b16 %v1613
        %v1933 = vunpack.c.h.b16 %v1613
        %v1934 = vunpack.c.l.b16 %v1614
        %v1935 = vunpack.c.h.b16 %v1614
        %v1936 = vunpack.c.l.b16 %v1615
        %v1937 = vunpack.c.h.b16 %v1615
        %v1938 = vunpack.c.l.b16 %v1616
        %v1939 = vunpack.c.h.b16 %v1616
        %v1940 = vunpack.c.l.b16 %v1617
        %v1941 = vunpack.c.h.b16 %v1617
        %v1942 = vunpack.c.l.b16 %v1618
        %v1943 = vunpack.c.h.b16 %v1618
        %v1944 = vunpack.c.l.b16 %v1619
        %v1945 = vunpack.c.h.b16 %v1619
        %v1946 = vunpack.c.l.b16 %v1620
        %v1947 = vunpack.c.h.b16 %v1620
        %v1948 = vunpack.c.l.b16 %v1621
        %v1949 = vunpack.c.h.b16 %v1621
        %v1950 = vunpack.c.l.b16 %v1622
        %v1951 = vunpack.c.h.b16 %v1622
        %v1952 = vunpack.c.l.b16 %v1623
        %v1953 = vunpack.c.h.b16 %v1623
        %v1954 = vunpack.c.l.b16 %v1624
        %v1955 = vunpack.c.h.b16 %v1624
        %v1956 = vunpack.c.l.b16 %v1625
        %v1957 = vunpack.c.h.b16 %v1625
        %v1958 = vunpack.c.l.b16 %v1626
        %v1959 = vunpack.c.h.b16 %v1626
        %v1960 = vunpack.c.l.b16 %v1627
        %v1961 = vunpack.c.h.b16 %v1627
        %v1962 = vunpack.c.l.b16 %v1628
        %v1963 = vunpack.c.h.b16 %v1628
        %v1964 = vunpack.c.l.b16 %v1629
        %v1965 = vunpack.c.h.b16 %v1629
        %v1966 = vunpack.c.l.b16 %v1630
        %v1967 = vunpack.c.h.b16 %v1630
        %v1968 = vunpack.c.l.b16 %v1631
        %v1969 = vunpack.c.h.b16 %v1631
        %v1970 = vunpack.c.l.b16 %v1632
        %v1971 = vunpack.c.h.b16 %v1632
        %v1972 = vunpack.c.l.b16 %v1633
        %v1973 = vunpack.c.h.b16 %v1633
        %v1974 = vunpack.c.l.b16 %v1634
        %v1975 = vunpack.c.h.b16 %v1634
        %v1976 = vunpack.c.l.b16 %v1635
        %v1977 = vunpack.c.h.b16 %v1635
        %v1978 = vunpack.c.l.b16 %v1636
        %v1979 = vunpack.c.h.b16 %v1636
        %v1980 = vunpack.c.l.b16 %v1637
        %v1981 = vunpack.c.h.b16 %v1637
        %v1982 = vunpack.c.l.b16 %v1638
        %v1983 = vunpack.c.h.b16 %v1638
        %v1984 = vunpack.c.l.b16 %v1639
        %v1985 = vunpack.c.h.b16 %v1639
        %v1986 = vunpack.c.l.b16 %v1640
        %v1987 = vunpack.c.h.b16 %v1640
        %v1988 = vunpack.c.l.b16 %v1641
        %v1989 = vunpack.c.h.b16 %v1641
        %v1990 = vunpack.c.l.b16 %v1642
        %v1991 = vunpack.c.h.b16 %v1642
        %v1992 = vunpack.c.l.b16 %v1643
        %v1993 = vunpack.c.h.b16 %v1643
        %v1994 = vunpack.c.l.b16 %v1644
        %v1995 = vunpack.c.h.b16 %v1644
        %v1996 = vunpack.c.l.b16 %v1645
        %v1997 = vunpack.c.h.b16 %v1645
        %v1998 = vunpack.c.l.b16 %v1646
        %v1999 = vunpack.c.h.b16 %v1646
        %v2000 = vunpack.c.l.b16 %v1647
        %v2001 = vunpack.c.h.b16 %v1647
        %v2002 = vunpack.c.l.b16 %v1648
        %v2003 = vunpack.c.h.b16 %v1648
        %v2004 = vunpack.c.l.b16 %v1649
        %v2005 = vunpack.c.h.b16 %v1649
        %v2006 = vunpack.c.l.b16 %v1650
        %v2007 = vunpack.c.h.b16 %v1650
        %v2008 = vunpack.c.l.b16 %v1651
        %v2009 = vunpack.c.h.b16 %v1651
        %v2010 = vunpack.c.l.b16 %v1652
        %v2011 = vunpack.c.h.b16 %v1652
        %v2012 = vunpack.c.l.b16 %v1653
        %v2013 = vunpack.c.h.b16 %v1653
        %v2014 = vunpack.c.l.b16 %v1654
        %v2015 = vunpack.c.h.b16 %v1654
        %v2016 = vunpack.c.l.b16 %v1655
        %v2017 = vunpack.c.h.b16 %v1655
        %v2018 = vunpack.c.l.b16 %v1656
        %v2019 = vunpack.c.h.b16 %v1656
        %v2020 = vunpack.c.l.b16 %v1657
        %v2021 = vunpack.c.h.b16 %v1657
        %v2022 = vunpack.c.l.b16 %v1658
        %v2023 = vunpack.c.h.b16 %v1658
        %v2024 = vunpack.c.l.b16 %v1659
        %v2025 = vunpack.c.h.b16 %v1659
        %v2026 = vunpack.c.l.b16 %v1660
        %v2027 = vunpack.c.h.b16 %v1660
        %v2028 = vunpack.c.l.b16 %v1661
        %v2029 = vunpack.c.h.b16 %v1661
        %v2030 = vunpack.c.l.b16 %v1662
        %v2031 = vunpack.c.h.b16 %v1662
        %v2032 = vunpack.c.l.b16 %v1663
        %v2033 = vunpack.c.h.b16 %v1663
        %v2034 = vunpack.c.l.b16 %v1664
        %v2035 = vunpack.c.h.b16 %v1664
        %v2036 = vunpack.c.l.b16 %v1665
        %v2037 = vunpack.c.h.b16 %v1665
        %v2038 = vunpack.c.l.b16 %v1666
        %v2039 = vunpack.c.h.b16 %v1666
        %v2040 = vunpack.c.l.b16 %v1667
        %v2041 = vunpack.c.h.b16 %v1667
        %v2042 = vunpack.c.l.b16 %v1668
        %v2043 = vunpack.c.h.b16 %v1668
        %v2044 = vunpack.c.l.b16 %v1669
        %v2045 = vunpack.c.h.b16 %v1669
        %v2046 = vunpack.c.l.b16 %v1670
        %v2047 = vunpack.c.h.b16 %v1670
        %v2048 = vunpack.c.l.b16 %v1671
        %v2049 = vunpack.c.h.b16 %v1671
        %v2050 = vunpack.c.l.b16 %v1672
        %v2051 = vunpack.c.h.b16 %v1672
        %v2052 = vunpack.c.l.b16 %v1673
        %v2053 = vunpack.c.h.b16 %v1673
        %v2054 = vunpack.c.l.b16 %v1674
        %v2055 = vunpack.c.h.b16 %v1674
        %v2056 = vunpack.c.l.b16 %v1675
        %v2057 = vunpack.c.h.b16 %v1675
        %v2058 = vunpack.c.l.b16 %v1676
        %v2059 = vunpack.c.h.b16 %v1676
        %v2060 = vunpack.c.l.b16 %v1677
        %v2061 = vunpack.c.h.b16 %v1677
        %v2062 = vpack.c.b16 %v1810, %v1806
        %v2063 = vpack.c.b16 %v1811, %v1807
        %v2064 = vpack.c.b16 %v1812, %v1808
        %v2065 = vpack.c.b16 %v1813, %v1809
        %v2066 = vpack.c.b16 %v1818, %v1814
        %v2067 = vpack.c.b16 %v1819, %v1815
        %v2068 = vpack.c.b16 %v1820, %v1816
        %v2069 = vpack.c.b16 %v1821, %v1817
        %v2070 = vpack.c.b16 %v1826, %v1822
        %v2071 = vpack.c.b16 %v1827, %v1823
        %v2072 = vpack.c.b16 %v1828, %v1824
        %v2073 = vpack.c.b16 %v1829, %v1825
        %v2074 = vpack.c.b16 %v1834, %v1830
        %v2075 = vpack.c.b16 %v1835, %v1831
        %v2076 = vpack.c.b16 %v1836, %v1832
        %v2077 = vpack.c.b16 %v1837, %v1833
        %v2078 = vpack.c.b16 %v1842, %v1838
        %v2079 = vpack.c.b16 %v1843, %v1839
        %v2080 = vpack.c.b16 %v1844, %v1840
        %v2081 = vpack.c.b16 %v1845, %v1841
        %v2082 = vpack.c.b16 %v1850, %v1846
        %v2083 = vpack.c.b16 %v1851, %v1847
        %v2084 = vpack.c.b16 %v1852, %v1848
        %v2085 = vpack.c.b16 %v1853, %v1849
        %v2086 = vpack.c.b16 %v1858, %v1854
        %v2087 = vpack.c.b16 %v1859, %v1855
        %v2088 = vpack.c.b16 %v1860, %v1856
        %v2089 = vpack.c.b16 %v1861, %v1857
        %v2090 = vpack.c.b16 %v1866, %v1862
        %v2091 = vpack.c.b16 %v1867, %v1863
        %v2092 = vpack.c.b16 %v1868, %v1864
        %v2093 = vpack.c.b16 %v1869, %v1865
        %v2094 = vpack.c.b16 %v1874, %v1870
        %v2095 = vpack.c.b16 %v1875, %v1871
        %v2096 = vpack.c.b16 %v1876, %v1872
        %v2097 = vpack.c.b16 %v1877, %v1873
        %v2098 = vpack.c.b16 %v1882, %v1878
        %v2099 = vpack.c.b16 %v1883, %v1879
        %v2100 = vpack.c.b16 %v1884, %v1880
        %v2101 = vpack.c.b16 %v1885, %v1881
        %v2102 = vpack.c.b16 %v1890, %v1886
        %v2103 = vpack.c.b16 %v1891, %v1887
        %v2104 = vpack.c.b16 %v1892, %v1888
        %v2105 = vpack.c.b16 %v1893, %v1889
        %v2106 = vpack.c.b16 %v1898, %v1894
        %v2107 = vpack.c.b16 %v1899, %v1895
        %v2108 = vpack.c.b16 %v1900, %v1896
        %v2109 = vpack.c.b16 %v1901, %v1897
        %v2110 = vpack.c.b16 %v1906, %v1902
        %v2111 = vpack.c.b16 %v1907, %v1903
        %v2112 = vpack.c.b16 %v1908, %v1904
        %v2113 = vpack.c.b16 %v1909, %v1905
        %v2114 = vpack.c.b16 %v1914, %v1910
        %v2115 = vpack.c.b16 %v1915, %v1911
        %v2116 = vpack.c.b16 %v1916, %v1912
        %v2117 = vpack.c.b16 %v1917, %v1913
        %v2118 = vpack.c.b16 %v1922, %v1918
        %v2119 = vpack.c.b16 %v1923, %v1919
        %v2120 = vpack.c.b16 %v1924, %v1920
        %v2121 = vpack.c.b16 %v1925, %v1921
        %v2122 = vpack.c.b16 %v1930, %v1926
        %v2123 = vpack.c.b16 %v1931, %v1927
        %v2124 = vpack.c.b16 %v1932, %v1928
        %v2125 = vpack.c.b16 %v1933, %v1929
        %v2126 = vpack.c.b16 %v1938, %v1934
        %v2127 = vpack.c.b16 %v1939, %v1935
        %v2128 = vpack.c.b16 %v1940, %v1936
        %v2129 = vpack.c.b16 %v1941, %v1937
        %v2130 = vpack.c.b16 %v1946, %v1942
        %v2131 = vpack.c.b16 %v1947, %v1943
        %v2132 = vpack.c.b16 %v1948, %v1944
        %v2133 = vpack.c.b16 %v1949, %v1945
        %v2134 = vpack.c.b16 %v1954, %v1950
        %v2135 = vpack.c.b16 %v1955, %v1951
        %v2136 = vpack.c.b16 %v1956, %v1952
        %v2137 = vpack.c.b16 %v1957, %v1953
        %v2138 = vpack.c.b16 %v1962, %v1958
        %v2139 = vpack.c.b16 %v1963, %v1959
        %v2140 = vpack.c.b16 %v1964, %v1960
        %v2141 = vpack.c.b16 %v1965, %v1961
        %v2142 = vpack.c.b16 %v1970, %v1966
        %v2143 = vpack.c.b16 %v1971, %v1967
        %v2144 = vpack.c.b16 %v1972, %v1968
        %v2145 = vpack.c.b16 %v1973, %v1969
        %v2146 = vpack.c.b16 %v1978, %v1974
        %v2147 = vpack.c.b16 %v1979, %v1975
        %v2148 = vpack.c.b16 %v1980, %v1976
        %v2149 = vpack.c.b16 %v1981, %v1977
        %v2150 = vpack.c.b16 %v1986, %v1982
        %v2151 = vpack.c.b16 %v1987, %v1983
        %v2152 = vpack.c.b16 %v1988, %v1984
        %v2153 = vpack.c.b16 %v1989, %v1985
        %v2154 = vpack.c.b16 %v1994, %v1990
        %v2155 = vpack.c.b16 %v1995, %v1991
        %v2156 = vpack.c.b16 %v1996, %v1992
        %v2157 = vpack.c.b16 %v1997, %v1993
        %v2158 = vpack.c.b16 %v2002, %v1998
        %v2159 = vpack.c.b16 %v2003, %v1999
        %v2160 = vpack.c.b16 %v2004, %v2000
        %v2161 = vpack.c.b16 %v2005, %v2001
        %v2162 = vpack.c.b16 %v2010, %v2006
        %v2163 = vpack.c.b16 %v2011, %v2007
        %v2164 = vpack.c.b16 %v2012, %v2008
        %v2165 = vpack.c.b16 %v2013, %v2009
        %v2166 = vpack.c.b16 %v2018, %v2014
        %v2167 = vpack.c.b16 %v2019, %v2015
        %v2168 = vpack.c.b16 %v2020, %v2016
        %v2169 = vpack.c.b16 %v2021, %v2017
        %v2170 = vpack.c.b16 %v2026, %v2022
        %v2171 = vpack.c.b16 %v2027, %v2023
        %v2172 = vpack.c.b16 %v2028, %v2024
        %v2173 = vpack.c.b16 %v2029, %v2025
        %v2174 = vpack.c.b16 %v2034, %v2030
        %v2175 = vpack.c.b16 %v2035, %v2031
        %v2176 = vpack.c.b16 %v2036, %v2032
        %v2177 = vpack.c.b16 %v2037, %v2033
        %v2178 = vpack.c.b16 %v2042, %v2038
        %v2179 = vpack.c.b16 %v2043, %v2039
        %v2180 = vpack.c.b16 %v2044, %v2040
        %v2181 = vpack.c.b16 %v2045, %v2041
        %v2182 = vpack.c.b16 %v2050, %v2046
        %v2183 = vpack.c.b16 %v2051, %v2047
        %v2184 = vpack.c.b16 %v2052, %v2048
        %v2185 = vpack.c.b16 %v2053, %v2049
        %v2186 = vpack.c.b16 %v2058, %v2054
        %v2187 = vpack.c.b16 %v2059, %v2055
        %v2188 = vpack.c.b16 %v2060, %v2056
        %v2189 = vpack.c.b16 %v2061, %v2057
        %2318 = vmatprep.subr.bf16.mxu0 %v2063
        %2319 = vmatpush1.bf16.msra.mxu0 %v2062
        %2320 = vmatprep.subr.bf16.mxu0 %v2067
        %2321 = vmatpush1.bf16.msra.mxu0 %v2066
        %2322 = vmatprep.subr.bf16.mxu0 %v2071
        %2323 = vmatpush1.bf16.msra.mxu0 %v2070
        %2324 = vmatprep.subr.bf16.mxu0 %v2075
        %2325 = vmatpush1.bf16.msra.mxu0 %v2074
        %2326 = vmatprep.subr.bf16.mxu0 %v2079
        %2327 = vmatpush1.bf16.msra.mxu0 %v2078
        %2328 = vmatprep.subr.bf16.mxu0 %v2083
        %2329 = vmatpush1.bf16.msra.mxu0 %v2082
        %2330 = vmatprep.subr.bf16.mxu0 %v2087
        %2331 = vmatpush1.bf16.msra.mxu0 %v2086
        %2332 = vmatprep.subr.bf16.mxu0 %v2091
        %2333 = vmatpush1.bf16.msra.mxu0 %v2090
        %2334 = vmatprep.subr.bf16.mxu0 %v2095
        %2335 = vmatpush1.bf16.msra.mxu0 %v2094
        %2336 = vmatprep.subr.bf16.mxu0 %v2099
        %2337 = vmatpush1.bf16.msra.mxu0 %v2098
        %2338 = vmatprep.subr.bf16.mxu0 %v2103
        %2339 = vmatpush1.bf16.msra.mxu0 %v2102
        %2340 = vmatprep.subr.bf16.mxu0 %v2107
        %2341 = vmatpush1.bf16.msra.mxu0 %v2106
        %2342 = vmatprep.subr.bf16.mxu0 %v2111
        %2343 = vmatpush1.bf16.msra.mxu0 %v2110
        %2344 = vmatprep.subr.bf16.mxu0 %v2115
        %2345 = vmatpush1.bf16.msra.mxu0 %v2114
        %2346 = vmatprep.subr.bf16.mxu0 %v2119
        %2347 = vmatpush1.bf16.msra.mxu0 %v2118
        %2348 = vmatprep.subr.bf16.mxu0 %v2123
        %2349 = vmatpush1.bf16.msra.mxu0 %v2122
        %2350 = vmatprep.mubr.bf16.mxu0 %v577
        %2351 = vmatmul.mubr.bf16.gmra.mrb[0].mxu0 %v576
        %v2352 = vpop.f32.mrb[0].mxu0
        %v2353 = vadd.f32 0.0, %v2352
        %v2354 = vpop.f32.mrb[0].mxu0
        %v2355 = vadd.f32 0.0, %v2354
        %v2356 = vpop.f32.mrb[0].mxu0
        %v2357 = vpop.f32.mrb[0].mxu0
        %2358 = vdwg.mxu0
        %2359 = vmatprep.subr.bf16.mxu0 %v2127
        %2360 = vmatpush1.bf16.msra.mxu0 %v2126
        %2361 = vmatprep.subr.bf16.mxu0 %v2131
        %2362 = vmatpush1.bf16.msra.mxu0 %v2130
        %2363 = vmatprep.subr.bf16.mxu0 %v2135
        %2364 = vmatpush1.bf16.msra.mxu0 %v2134
        %2365 = vmatprep.subr.bf16.mxu0 %v2139
        %2366 = vmatpush1.bf16.msra.mxu0 %v2138
        %2367 = vmatprep.subr.bf16.mxu0 %v2143
        %2368 = vmatpush1.bf16.msra.mxu0 %v2142
        %2369 = vmatprep.subr.bf16.mxu0 %v2147
        %2370 = vmatpush1.bf16.msra.mxu0 %v2146
        %2371 = vmatprep.subr.bf16.mxu0 %v2151
        %2372 = vmatpush1.bf16.msra.mxu0 %v2150
        %2373 = vmatprep.subr.bf16.mxu0 %v2155
        %2374 = vmatpush1.bf16.msra.mxu0 %v2154
        %2375 = vmatprep.subr.bf16.mxu0 %v2159
        %2376 = vmatpush1.bf16.msra.mxu0 %v2158
        %2377 = vmatprep.subr.bf16.mxu0 %v2163
        %2378 = vmatpush1.bf16.msra.mxu0 %v2162
        %2379 = vmatprep.subr.bf16.mxu0 %v2167
        %2380 = vmatpush1.bf16.msra.mxu0 %v2166
        %2381 = vmatprep.subr.bf16.mxu0 %v2171
        %2382 = vmatpush1.bf16.msra.mxu0 %v2170
        %2383 = vmatprep.subr.bf16.mxu0 %v2175
        %2384 = vmatpush1.bf16.msra.mxu0 %v2174
        %2385 = vmatprep.subr.bf16.mxu0 %v2179
        %2386 = vmatpush1.bf16.msra.mxu0 %v2178
        %2387 = vmatprep.subr.bf16.mxu0 %v2183
        %2388 = vmatpush1.bf16.msra.mxu0 %v2182
        %2389 = vmatprep.subr.bf16.mxu0 %v2187
        %2390 = vmatpush1.bf16.msra.mxu0 %v2186
        %2391 = vmatprep.mubr.bf16.mxu0 %v579
        %2392 = vmatmul.mubr.bf16.gmra.mrb[0].mxu0 %v578
        %v2393 = vpop.f32.mrb[0].mxu0
        %v2394 = vadd.f32 %v2353, %v2393
        %v2395 = vpop.f32.mrb[0].mxu0
        %v2396 = vadd.f32 %v2355, %v2395
        %v2397 = vpop.f32.mrb[0].mxu0
        %v2398 = vpop.f32.mrb[0].mxu0
        %2399 = vdwg.mxu0
        %2400 = vmatprep.subr.bf16.mxu0 %v2065
        %2401 = vmatpush1.bf16.msra.mxu0 %v2064
        %2402 = vmatprep.subr.bf16.mxu0 %v2069
        %2403 = vmatpush1.bf16.msra.mxu0 %v2068
        %2404 = vmatprep.subr.bf16.mxu0 %v2073
        %2405 = vmatpush1.bf16.msra.mxu0 %v2072
        %2406 = vmatprep.subr.bf16.mxu0 %v2077
        %2407 = vmatpush1.bf16.msra.mxu0 %v2076
        %2408 = vmatprep.subr.bf16.mxu0 %v2081
        %2409 = vmatpush1.bf16.msra.mxu0 %v2080
        %2410 = vmatprep.subr.bf16.mxu0 %v2085
        %2411 = vmatpush1.bf16.msra.mxu0 %v2084
        %2412 = vmatprep.subr.bf16.mxu0 %v2089
        %2413 = vmatpush1.bf16.msra.mxu0 %v2088
        %2414 = vmatprep.subr.bf16.mxu0 %v2093
        %2415 = vmatpush1.bf16.msra.mxu0 %v2092
        %2416 = vmatprep.subr.bf16.mxu0 %v2097
        %2417 = vmatpush1.bf16.msra.mxu0 %v2096
        %2418 = vmatprep.subr.bf16.mxu0 %v2101
        %2419 = vmatpush1.bf16.msra.mxu0 %v2100
        %2420 = vmatprep.subr.bf16.mxu0 %v2105
        %2421 = vmatpush1.bf16.msra.mxu0 %v2104
        %2422 = vmatprep.subr.bf16.mxu0 %v2109
        %2423 = vmatpush1.bf16.msra.mxu0 %v2108
        %2424 = vmatprep.subr.bf16.mxu0 %v2113
        %2425 = vmatpush1.bf16.msra.mxu0 %v2112
        %2426 = vmatprep.subr.bf16.mxu0 %v2117
        %2427 = vmatpush1.bf16.msra.mxu0 %v2116
        %2428 = vmatprep.subr.bf16.mxu0 %v2121
        %2429 = vmatpush1.bf16.msra.mxu0 %v2120
        %2430 = vmatprep.subr.bf16.mxu0 %v2125
        %2431 = vmatpush1.bf16.msra.mxu0 %v2124
        %2432 = vmatprep.mubr.bf16.mxu0 %v577
        %2433 = vmatmul.mubr.bf16.gmra.mrb[0].mxu0 %v576
        %v2434 = vpop.f32.mrb[0].mxu0
        %v2435 = vadd.f32 0.0, %v2434
        %v2436 = vpop.f32.mrb[0].mxu0
        %v2437 = vadd.f32 0.0, %v2436
        %v2438 = vpop.f32.mrb[0].mxu0
        %v2439 = vpop.f32.mrb[0].mxu0
        %2440 = vdwg.mxu0
        %2441 = vmatprep.subr.bf16.mxu0 %v2129
        %2442 = vmatpush1.bf16.msra.mxu0 %v2128
        %2443 = vmatprep.subr.bf16.mxu0 %v2133
        %2444 = vmatpush1.bf16.msra.mxu0 %v2132
        %2445 = vmatprep.subr.bf16.mxu0 %v2137
        %2446 = vmatpush1.bf16.msra.mxu0 %v2136
        %2447 = vmatprep.subr.bf16.mxu0 %v2141
        %2448 = vmatpush1.bf16.msra.mxu0 %v2140
        %2449 = vmatprep.subr.bf16.mxu0 %v2145
        %2450 = vmatpush1.bf16.msra.mxu0 %v2144
        %2451 = vmatprep.subr.bf16.mxu0 %v2149
        %2452 = vmatpush1.bf16.msra.mxu0 %v2148
        %2453 = vmatprep.subr.bf16.mxu0 %v2153
        %2454 = vmatpush1.bf16.msra.mxu0 %v2152
        %2455 = vmatprep.subr.bf16.mxu0 %v2157
        %2456 = vmatpush1.bf16.msra.mxu0 %v2156
        %2457 = vmatprep.subr.bf16.mxu0 %v2161
        %2458 = vmatpush1.bf16.msra.mxu0 %v2160
        %2459 = vmatprep.subr.bf16.mxu0 %v2165
        %2460 = vmatpush1.bf16.msra.mxu0 %v2164
        %2461 = vmatprep.subr.bf16.mxu0 %v2169
        %2462 = vmatpush1.bf16.msra.mxu0 %v2168
        %2463 = vmatprep.subr.bf16.mxu0 %v2173
        %2464 = vmatpush1.bf16.msra.mxu0 %v2172
        %2465 = vmatprep.subr.bf16.mxu0 %v2177
        %2466 = vmatpush1.bf16.msra.mxu0 %v2176
        %2467 = vmatprep.subr.bf16.mxu0 %v2181
        %2468 = vmatpush1.bf16.msra.mxu0 %v2180
        %2469 = vmatprep.subr.bf16.mxu0 %v2185
        %2470 = vmatpush1.bf16.msra.mxu0 %v2184
        %2471 = vmatprep.subr.bf16.mxu0 %v2189
        %2472 = vmatpush1.bf16.msra.mxu0 %v2188
        %2473 = vmatprep.mubr.bf16.mxu0 %v579
        %2474 = vmatmul.mubr.bf16.gmra.mrb[0].mxu0 %v578
        %v2475 = vpop.f32.mrb[0].mxu0
        %v2476 = vadd.f32 %v2435, %v2475
        %v2477 = vpop.f32.mrb[0].mxu0
        %v2478 = vadd.f32 %v2437, %v2477
        %v2479 = vpop.f32.mrb[0].mxu0
        %v2480 = vpop.f32.mrb[0].mxu0
        %2481 = vdwg.mxu0
        %v2482 = vmul.f32 %v2394, %v580
        %v2483 = vmul.f32 %v2396, %v581
        %v2484 = vmul.f32 %v2476, %v582
        %v2485 = vmul.f32 %v2478, %v583
        %v2486 = vmul.f32 %v2476, %v584
        %v2487 = vmul.f32 %v2478, %v585
        %v2488 = vmul.f32 %v2394, %v586
        %v2489 = vmul.f32 %v2396, %v587
        %v2490 = vadd.f32 %v2482, %v2486
        %v2491 = vadd.f32 %v2483, %v2487
        %v2492 = vadd.f32 %v2484, %v2488
        %v2493 = vadd.f32 %v2485, %v2489
        %v2494 = vpack.c.bf16 %v2490, %v2490
        %v2495 = vpack.c.bf16 %v2491, %v2491
        %v2496 = vpack.c.bf16 %v2492, %v2492
        %v2497 = vpack.c.bf16 %v2493, %v2493
        %v2502 = vunpack.c.l.b16 %v2494
        %v2503 = vunpack.c.l.b16 %v2495
        %v2504 = vunpack.c.l.b16 %v2496
        %v2505 = vunpack.c.l.b16 %v2497
        %v2506 = vpack.c.b16 %v2503, %v2502
        %v2507 = vpack.c.b16 %v2505, %v2504
        %2510 = vst [vmem:[%s515] sm:$0xff] %v2506
        %2511 = vst [vmem:[%s515 + $0x8] sm:$0xff] %v2507
        %v2512 = vld [vmem:[#allocation10] sm:$0xff]
        %v2513 = vld [vmem:[#allocation10 + $0x8] sm:$0xff]
        %v2514 = vld [vmem:[#allocation10 + $0x10] sm:$0xff]
        %v2515 = vld [vmem:[#allocation10 + $0x18] sm:$0xff]
        %v2516 = vld [vmem:[#allocation10 + $0x20] sm:$0xff]
        %v2517 = vld [vmem:[#allocation10 + $0x28] sm:$0xff]
        %v2518 = vld [vmem:[#allocation10 + $0x30] sm:$0xff]
        %v2519 = vld [vmem:[#allocation10 + $0x38] sm:$0xff]
        %v2520 = vld [vmem:[#allocation10 + $0x40] sm:$0xff]
        %v2521 = vld [vmem:[#allocation10 + $0x48] sm:$0xff]
        %v2522 = vld [vmem:[#allocation10 + $0x50] sm:$0xff]
        %v2523 = vld [vmem:[#allocation10 + $0x58] sm:$0xff]
        %v2524 = vld [vmem:[#allocation10 + $0x60] sm:$0xff]
        %v2525 = vld [vmem:[#allocation10 + $0x68] sm:$0xff]
        %v2526 = vld [vmem:[#allocation10 + $0x70] sm:$0xff]
        %v2527 = vld [vmem:[#allocation10 + $0x78] sm:$0xff]
        %v2528 = vld [vmem:[#allocation10 + $0x80] sm:$0xff]
        %v2529 = vld [vmem:[#allocation10 + $0x88] sm:$0xff]
        %v2530 = vld [vmem:[#allocation10 + $0x90] sm:$0xff]
        %v2531 = vld [vmem:[#allocation10 + $0x98] sm:$0xff]
        %v2532 = vld [vmem:[#allocation10 + $0xa0] sm:$0xff]
        %v2533 = vld [vmem:[#allocation10 + $0xa8] sm:$0xff]
        %v2534 = vld [vmem:[#allocation10 + $0xb0] sm:$0xff]
        %v2535 = vld [vmem:[#allocation10 + $0xb8] sm:$0xff]
        %v2536 = vld [vmem:[#allocation10 + $0xc0] sm:$0xff]
        %v2537 = vld [vmem:[#allocation10 + $0xc8] sm:$0xff]
        %v2538 = vld [vmem:[#allocation10 + $0xd0] sm:$0xff]
        %v2539 = vld [vmem:[#allocation10 + $0xd8] sm:$0xff]
        %v2540 = vld [vmem:[#allocation10 + $0xe0] sm:$0xff]
        %v2541 = vld [vmem:[#allocation10 + $0xe8] sm:$0xff]
        %v2542 = vld [vmem:[#allocation10 + $0xf0] sm:$0xff]
        %v2543 = vld [vmem:[#allocation10 + $0xf8] sm:$0xff]
        %v2544 = vld [vmem:[#allocation10 + $0x100] sm:$0xff]
        %v2545 = vld [vmem:[#allocation10 + $0x108] sm:$0xff]
        %v2546 = vld [vmem:[#allocation10 + $0x110] sm:$0xff]
        %v2547 = vld [vmem:[#allocation10 + $0x118] sm:$0xff]
        %v2548 = vld [vmem:[#allocation10 + $0x120] sm:$0xff]
        %v2549 = vld [vmem:[#allocation10 + $0x128] sm:$0xff]
        %v2550 = vld [vmem:[#allocation10 + $0x130] sm:$0xff]
        %v2551 = vld [vmem:[#allocation10 + $0x138] sm:$0xff]
        %v2552 = vld [vmem:[#allocation10 + $0x140] sm:$0xff]
        %v2553 = vld [vmem:[#allocation10 + $0x148] sm:$0xff]
        %v2554 = vld [vmem:[#allocation10 + $0x150] sm:$0xff]
        %v2555 = vld [vmem:[#allocation10 + $0x158] sm:$0xff]
        %v2556 = vld [vmem:[#allocation10 + $0x160] sm:$0xff]
        %v2557 = vld [vmem:[#allocation10 + $0x168] sm:$0xff]
        %v2558 = vld [vmem:[#allocation10 + $0x170] sm:$0xff]
        %v2559 = vld [vmem:[#allocation10 + $0x178] sm:$0xff]
        %v2560 = vld [vmem:[#allocation10 + $0x180] sm:$0xff]
        %v2561 = vld [vmem:[#allocation10 + $0x188] sm:$0xff]
        %v2562 = vld [vmem:[#allocation10 + $0x190] sm:$0xff]
        %v2563 = vld [vmem:[#allocation10 + $0x198] sm:$0xff]
        %v2564 = vld [vmem:[#allocation10 + $0x1a0] sm:$0xff]
        %v2565 = vld [vmem:[#allocation10 + $0x1a8] sm:$0xff]
        %v2566 = vld [vmem:[#allocation10 + $0x1b0] sm:$0xff]
        %v2567 = vld [vmem:[#allocation10 + $0x1b8] sm:$0xff]
        %v2568 = vld [vmem:[#allocation10 + $0x1c0] sm:$0xff]
        %v2569 = vld [vmem:[#allocation10 + $0x1c8] sm:$0xff]
        %v2570 = vld [vmem:[#allocation10 + $0x1d0] sm:$0xff]
        %v2571 = vld [vmem:[#allocation10 + $0x1d8] sm:$0xff]
        %v2572 = vld [vmem:[#allocation10 + $0x1e0] sm:$0xff]
        %v2573 = vld [vmem:[#allocation10 + $0x1e8] sm:$0xff]
        %v2574 = vld [vmem:[#allocation10 + $0x1f0] sm:$0xff]
        %v2575 = vld [vmem:[#allocation10 + $0x1f8] sm:$0xff]
        %v2576 = vld [vmem:[#allocation10 + $0x200] sm:$0xff]
        %v2577 = vld [vmem:[#allocation10 + $0x208] sm:$0xff]
        %v2578 = vld [vmem:[#allocation10 + $0x210] sm:$0xff]
        %v2579 = vld [vmem:[#allocation10 + $0x218] sm:$0xff]
        %v2580 = vld [vmem:[#allocation10 + $0x220] sm:$0xff]
        %v2581 = vld [vmem:[#allocation10 + $0x228] sm:$0xff]
        %v2582 = vld [vmem:[#allocation10 + $0x230] sm:$0xff]
        %v2583 = vld [vmem:[#allocation10 + $0x238] sm:$0xff]
        %v2584 = vld [vmem:[#allocation10 + $0x240] sm:$0xff]
        %v2585 = vld [vmem:[#allocation10 + $0x248] sm:$0xff]
        %v2586 = vld [vmem:[#allocation10 + $0x250] sm:$0xff]
        %v2587 = vld [vmem:[#allocation10 + $0x258] sm:$0xff]
        %v2588 = vld [vmem:[#allocation10 + $0x260] sm:$0xff]
        %v2589 = vld [vmem:[#allocation10 + $0x268] sm:$0xff]
        %v2590 = vld [vmem:[#allocation10 + $0x270] sm:$0xff]
        %v2591 = vld [vmem:[#allocation10 + $0x278] sm:$0xff]
        %v2592 = vld [vmem:[#allocation10 + $0x280] sm:$0xff]
        %v2593 = vld [vmem:[#allocation10 + $0x288] sm:$0xff]
        %v2594 = vld [vmem:[#allocation10 + $0x290] sm:$0xff]
        %v2595 = vld [vmem:[#allocation10 + $0x298] sm:$0xff]
        %v2596 = vld [vmem:[#allocation10 + $0x2a0] sm:$0xff]
        %v2597 = vld [vmem:[#allocation10 + $0x2a8] sm:$0xff]
        %v2598 = vld [vmem:[#allocation10 + $0x2b0] sm:$0xff]
        %v2599 = vld [vmem:[#allocation10 + $0x2b8] sm:$0xff]
        %v2600 = vld [vmem:[#allocation10 + $0x2c0] sm:$0xff]
        %v2601 = vld [vmem:[#allocation10 + $0x2c8] sm:$0xff]
        %v2602 = vld [vmem:[#allocation10 + $0x2d0] sm:$0xff]
        %v2603 = vld [vmem:[#allocation10 + $0x2d8] sm:$0xff]
        %v2604 = vld [vmem:[#allocation10 + $0x2e0] sm:$0xff]
        %v2605 = vld [vmem:[#allocation10 + $0x2e8] sm:$0xff]
        %v2606 = vld [vmem:[#allocation10 + $0x2f0] sm:$0xff]
        %v2607 = vld [vmem:[#allocation10 + $0x2f8] sm:$0xff]
        %v2608 = vld [vmem:[#allocation10 + $0x300] sm:$0xff]
        %v2609 = vld [vmem:[#allocation10 + $0x308] sm:$0xff]
        %v2610 = vld [vmem:[#allocation10 + $0x310] sm:$0xff]
        %v2611 = vld [vmem:[#allocation10 + $0x318] sm:$0xff]
        %v2612 = vld [vmem:[#allocation10 + $0x320] sm:$0xff]
        %v2613 = vld [vmem:[#allocation10 + $0x328] sm:$0xff]
        %v2614 = vld [vmem:[#allocation10 + $0x330] sm:$0xff]
        %v2615 = vld [vmem:[#allocation10 + $0x338] sm:$0xff]
        %v2616 = vld [vmem:[#allocation10 + $0x340] sm:$0xff]
        %v2617 = vld [vmem:[#allocation10 + $0x348] sm:$0xff]
        %v2618 = vld [vmem:[#allocation10 + $0x350] sm:$0xff]
        %v2619 = vld [vmem:[#allocation10 + $0x358] sm:$0xff]
        %v2620 = vld [vmem:[#allocation10 + $0x360] sm:$0xff]
        %v2621 = vld [vmem:[#allocation10 + $0x368] sm:$0xff]
        %v2622 = vld [vmem:[#allocation10 + $0x370] sm:$0xff]
        %v2623 = vld [vmem:[#allocation10 + $0x378] sm:$0xff]
        %v2624 = vld [vmem:[#allocation10 + $0x380] sm:$0xff]
        %v2625 = vld [vmem:[#allocation10 + $0x388] sm:$0xff]
        %v2626 = vld [vmem:[#allocation10 + $0x390] sm:$0xff]
        %v2627 = vld [vmem:[#allocation10 + $0x398] sm:$0xff]
        %v2628 = vld [vmem:[#allocation10 + $0x3a0] sm:$0xff]
        %v2629 = vld [vmem:[#allocation10 + $0x3a8] sm:$0xff]
        %v2630 = vld [vmem:[#allocation10 + $0x3b0] sm:$0xff]
        %v2631 = vld [vmem:[#allocation10 + $0x3b8] sm:$0xff]
        %v2632 = vld [vmem:[#allocation10 + $0x3c0] sm:$0xff]
        %v2633 = vld [vmem:[#allocation10 + $0x3c8] sm:$0xff]
        %v2634 = vld [vmem:[#allocation10 + $0x3d0] sm:$0xff]
        %v2635 = vld [vmem:[#allocation10 + $0x3d8] sm:$0xff]
        %v2636 = vld [vmem:[#allocation10 + $0x3e0] sm:$0xff]
        %v2637 = vld [vmem:[#allocation10 + $0x3e8] sm:$0xff]
        %v2638 = vld [vmem:[#allocation10 + $0x3f0] sm:$0xff]
        %v2639 = vld [vmem:[#allocation10 + $0x3f8] sm:$0xff]
        %v2768 = vunpack.c.l.b16 %v2512
        %v2769 = vunpack.c.h.b16 %v2512
        %v2770 = vunpack.c.l.b16 %v2513
        %v2771 = vunpack.c.h.b16 %v2513
        %v2772 = vunpack.c.l.b16 %v2514
        %v2773 = vunpack.c.h.b16 %v2514
        %v2774 = vunpack.c.l.b16 %v2515
        %v2775 = vunpack.c.h.b16 %v2515
        %v2776 = vunpack.c.l.b16 %v2516
        %v2777 = vunpack.c.h.b16 %v2516
        %v2778 = vunpack.c.l.b16 %v2517
        %v2779 = vunpack.c.h.b16 %v2517
        %v2780 = vunpack.c.l.b16 %v2518
        %v2781 = vunpack.c.h.b16 %v2518
        %v2782 = vunpack.c.l.b16 %v2519
        %v2783 = vunpack.c.h.b16 %v2519
        %v2784 = vunpack.c.l.b16 %v2520
        %v2785 = vunpack.c.h.b16 %v2520
        %v2786 = vunpack.c.l.b16 %v2521
        %v2787 = vunpack.c.h.b16 %v2521
        %v2788 = vunpack.c.l.b16 %v2522
        %v2789 = vunpack.c.h.b16 %v2522
        %v2790 = vunpack.c.l.b16 %v2523
        %v2791 = vunpack.c.h.b16 %v2523
        %v2792 = vunpack.c.l.b16 %v2524
        %v2793 = vunpack.c.h.b16 %v2524
        %v2794 = vunpack.c.l.b16 %v2525
        %v2795 = vunpack.c.h.b16 %v2525
        %v2796 = vunpack.c.l.b16 %v2526
        %v2797 = vunpack.c.h.b16 %v2526
        %v2798 = vunpack.c.l.b16 %v2527
        %v2799 = vunpack.c.h.b16 %v2527
        %v2800 = vunpack.c.l.b16 %v2528
        %v2801 = vunpack.c.h.b16 %v2528
        %v2802 = vunpack.c.l.b16 %v2529
        %v2803 = vunpack.c.h.b16 %v2529
        %v2804 = vunpack.c.l.b16 %v2530
        %v2805 = vunpack.c.h.b16 %v2530
        %v2806 = vunpack.c.l.b16 %v2531
        %v2807 = vunpack.c.h.b16 %v2531
        %v2808 = vunpack.c.l.b16 %v2532
        %v2809 = vunpack.c.h.b16 %v2532
        %v2810 = vunpack.c.l.b16 %v2533
        %v2811 = vunpack.c.h.b16 %v2533
        %v2812 = vunpack.c.l.b16 %v2534
        %v2813 = vunpack.c.h.b16 %v2534
        %v2814 = vunpack.c.l.b16 %v2535
        %v2815 = vunpack.c.h.b16 %v2535
        %v2816 = vunpack.c.l.b16 %v2536
        %v2817 = vunpack.c.h.b16 %v2536
        %v2818 = vunpack.c.l.b16 %v2537
        %v2819 = vunpack.c.h.b16 %v2537
        %v2820 = vunpack.c.l.b16 %v2538
        %v2821 = vunpack.c.h.b16 %v2538
        %v2822 = vunpack.c.l.b16 %v2539
        %v2823 = vunpack.c.h.b16 %v2539
        %v2824 = vunpack.c.l.b16 %v2540
        %v2825 = vunpack.c.h.b16 %v2540
        %v2826 = vunpack.c.l.b16 %v2541
        %v2827 = vunpack.c.h.b16 %v2541
        %v2828 = vunpack.c.l.b16 %v2542
        %v2829 = vunpack.c.h.b16 %v2542
        %v2830 = vunpack.c.l.b16 %v2543
        %v2831 = vunpack.c.h.b16 %v2543
        %v2832 = vunpack.c.l.b16 %v2544
        %v2833 = vunpack.c.h.b16 %v2544
        %v2834 = vunpack.c.l.b16 %v2545
        %v2835 = vunpack.c.h.b16 %v2545
        %v2836 = vunpack.c.l.b16 %v2546
        %v2837 = vunpack.c.h.b16 %v2546
        %v2838 = vunpack.c.l.b16 %v2547
        %v2839 = vunpack.c.h.b16 %v2547
        %v2840 = vunpack.c.l.b16 %v2548
        %v2841 = vunpack.c.h.b16 %v2548
        %v2842 = vunpack.c.l.b16 %v2549
        %v2843 = vunpack.c.h.b16 %v2549
        %v2844 = vunpack.c.l.b16 %v2550
        %v2845 = vunpack.c.h.b16 %v2550
        %v2846 = vunpack.c.l.b16 %v2551
        %v2847 = vunpack.c.h.b16 %v2551
        %v2848 = vunpack.c.l.b16 %v2552
        %v2849 = vunpack.c.h.b16 %v2552
        %v2850 = vunpack.c.l.b16 %v2553
        %v2851 = vunpack.c.h.b16 %v2553
        %v2852 = vunpack.c.l.b16 %v2554
        %v2853 = vunpack.c.h.b16 %v2554
        %v2854 = vunpack.c.l.b16 %v2555
        %v2855 = vunpack.c.h.b16 %v2555
        %v2856 = vunpack.c.l.b16 %v2556
        %v2857 = vunpack.c.h.b16 %v2556
        %v2858 = vunpack.c.l.b16 %v2557
        %v2859 = vunpack.c.h.b16 %v2557
        %v2860 = vunpack.c.l.b16 %v2558
        %v2861 = vunpack.c.h.b16 %v2558
        %v2862 = vunpack.c.l.b16 %v2559
        %v2863 = vunpack.c.h.b16 %v2559
        %v2864 = vunpack.c.l.b16 %v2560
        %v2865 = vunpack.c.h.b16 %v2560
        %v2866 = vunpack.c.l.b16 %v2561
        %v2867 = vunpack.c.h.b16 %v2561
        %v2868 = vunpack.c.l.b16 %v2562
        %v2869 = vunpack.c.h.b16 %v2562
        %v2870 = vunpack.c.l.b16 %v2563
        %v2871 = vunpack.c.h.b16 %v2563
        %v2872 = vunpack.c.l.b16 %v2564
        %v2873 = vunpack.c.h.b16 %v2564
        %v2874 = vunpack.c.l.b16 %v2565
        %v2875 = vunpack.c.h.b16 %v2565
        %v2876 = vunpack.c.l.b16 %v2566
        %v2877 = vunpack.c.h.b16 %v2566
        %v2878 = vunpack.c.l.b16 %v2567
        %v2879 = vunpack.c.h.b16 %v2567
        %v2880 = vunpack.c.l.b16 %v2568
        %v2881 = vunpack.c.h.b16 %v2568
        %v2882 = vunpack.c.l.b16 %v2569
        %v2883 = vunpack.c.h.b16 %v2569
        %v2884 = vunpack.c.l.b16 %v2570
        %v2885 = vunpack.c.h.b16 %v2570
        %v2886 = vunpack.c.l.b16 %v2571
        %v2887 = vunpack.c.h.b16 %v2571
        %v2888 = vunpack.c.l.b16 %v2572
        %v2889 = vunpack.c.h.b16 %v2572
        %v2890 = vunpack.c.l.b16 %v2573
        %v2891 = vunpack.c.h.b16 %v2573
        %v2892 = vunpack.c.l.b16 %v2574
        %v2893 = vunpack.c.h.b16 %v2574
        %v2894 = vunpack.c.l.b16 %v2575
        %v2895 = vunpack.c.h.b16 %v2575
        %v2896 = vunpack.c.l.b16 %v2576
        %v2897 = vunpack.c.h.b16 %v2576
        %v2898 = vunpack.c.l.b16 %v2577
        %v2899 = vunpack.c.h.b16 %v2577
        %v2900 = vunpack.c.l.b16 %v2578
        %v2901 = vunpack.c.h.b16 %v2578
        %v2902 = vunpack.c.l.b16 %v2579
        %v2903 = vunpack.c.h.b16 %v2579
        %v2904 = vunpack.c.l.b16 %v2580
        %v2905 = vunpack.c.h.b16 %v2580
        %v2906 = vunpack.c.l.b16 %v2581
        %v2907 = vunpack.c.h.b16 %v2581
        %v2908 = vunpack.c.l.b16 %v2582
        %v2909 = vunpack.c.h.b16 %v2582
        %v2910 = vunpack.c.l.b16 %v2583
        %v2911 = vunpack.c.h.b16 %v2583
        %v2912 = vunpack.c.l.b16 %v2584
        %v2913 = vunpack.c.h.b16 %v2584
        %v2914 = vunpack.c.l.b16 %v2585
        %v2915 = vunpack.c.h.b16 %v2585
        %v2916 = vunpack.c.l.b16 %v2586
        %v2917 = vunpack.c.h.b16 %v2586
        %v2918 = vunpack.c.l.b16 %v2587
        %v2919 = vunpack.c.h.b16 %v2587
        %v2920 = vunpack.c.l.b16 %v2588
        %v2921 = vunpack.c.h.b16 %v2588
        %v2922 = vunpack.c.l.b16 %v2589
        %v2923 = vunpack.c.h.b16 %v2589
        %v2924 = vunpack.c.l.b16 %v2590
        %v2925 = vunpack.c.h.b16 %v2590
        %v2926 = vunpack.c.l.b16 %v2591
        %v2927 = vunpack.c.h.b16 %v2591
        %v2928 = vunpack.c.l.b16 %v2592
        %v2929 = vunpack.c.h.b16 %v2592
        %v2930 = vunpack.c.l.b16 %v2593
        %v2931 = vunpack.c.h.b16 %v2593
        %v2932 = vunpack.c.l.b16 %v2594
        %v2933 = vunpack.c.h.b16 %v2594
        %v2934 = vunpack.c.l.b16 %v2595
        %v2935 = vunpack.c.h.b16 %v2595
        %v2936 = vunpack.c.l.b16 %v2596
        %v2937 = vunpack.c.h.b16 %v2596
        %v2938 = vunpack.c.l.b16 %v2597
        %v2939 = vunpack.c.h.b16 %v2597
        %v2940 = vunpack.c.l.b16 %v2598
        %v2941 = vunpack.c.h.b16 %v2598
        %v2942 = vunpack.c.l.b16 %v2599
        %v2943 = vunpack.c.h.b16 %v2599
        %v2944 = vunpack.c.l.b16 %v2600
        %v2945 = vunpack.c.h.b16 %v2600
        %v2946 = vunpack.c.l.b16 %v2601
        %v2947 = vunpack.c.h.b16 %v2601
        %v2948 = vunpack.c.l.b16 %v2602
        %v2949 = vunpack.c.h.b16 %v2602
        %v2950 = vunpack.c.l.b16 %v2603
        %v2951 = vunpack.c.h.b16 %v2603
        %v2952 = vunpack.c.l.b16 %v2604
        %v2953 = vunpack.c.h.b16 %v2604
        %v2954 = vunpack.c.l.b16 %v2605
        %v2955 = vunpack.c.h.b16 %v2605
        %v2956 = vunpack.c.l.b16 %v2606
        %v2957 = vunpack.c.h.b16 %v2606
        %v2958 = vunpack.c.l.b16 %v2607
        %v2959 = vunpack.c.h.b16 %v2607
        %v2960 = vunpack.c.l.b16 %v2608
        %v2961 = vunpack.c.h.b16 %v2608
        %v2962 = vunpack.c.l.b16 %v2609
        %v2963 = vunpack.c.h.b16 %v2609
        %v2964 = vunpack.c.l.b16 %v2610
        %v2965 = vunpack.c.h.b16 %v2610
        %v2966 = vunpack.c.l.b16 %v2611
        %v2967 = vunpack.c.h.b16 %v2611
        %v2968 = vunpack.c.l.b16 %v2612
        %v2969 = vunpack.c.h.b16 %v2612
        %v2970 = vunpack.c.l.b16 %v2613
        %v2971 = vunpack.c.h.b16 %v2613
        %v2972 = vunpack.c.l.b16 %v2614
        %v2973 = vunpack.c.h.b16 %v2614
        %v2974 = vunpack.c.l.b16 %v2615
        %v2975 = vunpack.c.h.b16 %v2615
        %v2976 = vunpack.c.l.b16 %v2616
        %v2977 = vunpack.c.h.b16 %v2616
        %v2978 = vunpack.c.l.b16 %v2617
        %v2979 = vunpack.c.h.b16 %v2617
        %v2980 = vunpack.c.l.b16 %v2618
        %v2981 = vunpack.c.h.b16 %v2618
        %v2982 = vunpack.c.l.b16 %v2619
        %v2983 = vunpack.c.h.b16 %v2619
        %v2984 = vunpack.c.l.b16 %v2620
        %v2985 = vunpack.c.h.b16 %v2620
        %v2986 = vunpack.c.l.b16 %v2621
        %v2987 = vunpack.c.h.b16 %v2621
        %v2988 = vunpack.c.l.b16 %v2622
        %v2989 = vunpack.c.h.b16 %v2622
        %v2990 = vunpack.c.l.b16 %v2623
        %v2991 = vunpack.c.h.b16 %v2623
        %v2992 = vunpack.c.l.b16 %v2624
        %v2993 = vunpack.c.h.b16 %v2624
        %v2994 = vunpack.c.l.b16 %v2625
        %v2995 = vunpack.c.h.b16 %v2625
        %v2996 = vunpack.c.l.b16 %v2626
        %v2997 = vunpack.c.h.b16 %v2626
        %v2998 = vunpack.c.l.b16 %v2627
        %v2999 = vunpack.c.h.b16 %v2627
        %v3000 = vunpack.c.l.b16 %v2628
        %v3001 = vunpack.c.h.b16 %v2628
        %v3002 = vunpack.c.l.b16 %v2629
        %v3003 = vunpack.c.h.b16 %v2629
        %v3004 = vunpack.c.l.b16 %v2630
        %v3005 = vunpack.c.h.b16 %v2630
        %v3006 = vunpack.c.l.b16 %v2631
        %v3007 = vunpack.c.h.b16 %v2631
        %v3008 = vunpack.c.l.b16 %v2632
        %v3009 = vunpack.c.h.b16 %v2632
        %v3010 = vunpack.c.l.b16 %v2633
        %v3011 = vunpack.c.h.b16 %v2633
        %v3012 = vunpack.c.l.b16 %v2634
        %v3013 = vunpack.c.h.b16 %v2634
        %v3014 = vunpack.c.l.b16 %v2635
        %v3015 = vunpack.c.h.b16 %v2635
        %v3016 = vunpack.c.l.b16 %v2636
        %v3017 = vunpack.c.h.b16 %v2636
        %v3018 = vunpack.c.l.b16 %v2637
        %v3019 = vunpack.c.h.b16 %v2637
        %v3020 = vunpack.c.l.b16 %v2638
        %v3021 = vunpack.c.h.b16 %v2638
        %v3022 = vunpack.c.l.b16 %v2639
        %v3023 = vunpack.c.h.b16 %v2639
        %v3024 = vpack.c.b16 %v2772, %v2768
        %v3025 = vpack.c.b16 %v2773, %v2769
        %v3026 = vpack.c.b16 %v2774, %v2770
        %v3027 = vpack.c.b16 %v2775, %v2771
        %v3028 = vpack.c.b16 %v2780, %v2776
        %v3029 = vpack.c.b16 %v2781, %v2777
        %v3030 = vpack.c.b16 %v2782, %v2778
        %v3031 = vpack.c.b16 %v2783, %v2779
        %v3032 = vpack.c.b16 %v2788, %v2784
        %v3033 = vpack.c.b16 %v2789, %v2785
        %v3034 = vpack.c.b16 %v2790, %v2786
        %v3035 = vpack.c.b16 %v2791, %v2787
        %v3036 = vpack.c.b16 %v2796, %v2792
        %v3037 = vpack.c.b16 %v2797, %v2793
        %v3038 = vpack.c.b16 %v2798, %v2794
        %v3039 = vpack.c.b16 %v2799, %v2795
        %v3040 = vpack.c.b16 %v2804, %v2800
        %v3041 = vpack.c.b16 %v2805, %v2801
        %v3042 = vpack.c.b16 %v2806, %v2802
        %v3043 = vpack.c.b16 %v2807, %v2803
        %v3044 = vpack.c.b16 %v2812, %v2808
        %v3045 = vpack.c.b16 %v2813, %v2809
        %v3046 = vpack.c.b16 %v2814, %v2810
        %v3047 = vpack.c.b16 %v2815, %v2811
        %v3048 = vpack.c.b16 %v2820, %v2816
        %v3049 = vpack.c.b16 %v2821, %v2817
        %v3050 = vpack.c.b16 %v2822, %v2818
        %v3051 = vpack.c.b16 %v2823, %v2819
        %v3052 = vpack.c.b16 %v2828, %v2824
        %v3053 = vpack.c.b16 %v2829, %v2825
        %v3054 = vpack.c.b16 %v2830, %v2826
        %v3055 = vpack.c.b16 %v2831, %v2827
        %v3056 = vpack.c.b16 %v2836, %v2832
        %v3057 = vpack.c.b16 %v2837, %v2833
        %v3058 = vpack.c.b16 %v2838, %v2834
        %v3059 = vpack.c.b16 %v2839, %v2835
        %v3060 = vpack.c.b16 %v2844, %v2840
        %v3061 = vpack.c.b16 %v2845, %v2841
        %v3062 = vpack.c.b16 %v2846, %v2842
        %v3063 = vpack.c.b16 %v2847, %v2843
        %v3064 = vpack.c.b16 %v2852, %v2848
        %v3065 = vpack.c.b16 %v2853, %v2849
        %v3066 = vpack.c.b16 %v2854, %v2850
        %v3067 = vpack.c.b16 %v2855, %v2851
        %v3068 = vpack.c.b16 %v2860, %v2856
        %v3069 = vpack.c.b16 %v2861, %v2857
        %v3070 = vpack.c.b16 %v2862, %v2858
        %v3071 = vpack.c.b16 %v2863, %v2859
        %v3072 = vpack.c.b16 %v2868, %v2864
        %v3073 = vpack.c.b16 %v2869, %v2865
        %v3074 = vpack.c.b16 %v2870, %v2866
        %v3075 = vpack.c.b16 %v2871, %v2867
        %v3076 = vpack.c.b16 %v2876, %v2872
        %v3077 = vpack.c.b16 %v2877, %v2873
        %v3078 = vpack.c.b16 %v2878, %v2874
        %v3079 = vpack.c.b16 %v2879, %v2875
        %v3080 = vpack.c.b16 %v2884, %v2880
        %v3081 = vpack.c.b16 %v2885, %v2881
        %v3082 = vpack.c.b16 %v2886, %v2882
        %v3083 = vpack.c.b16 %v2887, %v2883
        %v3084 = vpack.c.b16 %v2892, %v2888
        %v3085 = vpack.c.b16 %v2893, %v2889
        %v3086 = vpack.c.b16 %v2894, %v2890
        %v3087 = vpack.c.b16 %v2895, %v2891
        %v3088 = vpack.c.b16 %v2900, %v2896
        %v3089 = vpack.c.b16 %v2901, %v2897
        %v3090 = vpack.c.b16 %v2902, %v2898
        %v3091 = vpack.c.b16 %v2903, %v2899
        %v3092 = vpack.c.b16 %v2908, %v2904
        %v3093 = vpack.c.b16 %v2909, %v2905
        %v3094 = vpack.c.b16 %v2910, %v2906
        %v3095 = vpack.c.b16 %v2911, %v2907
        %v3096 = vpack.c.b16 %v2916, %v2912
        %v3097 = vpack.c.b16 %v2917, %v2913
        %v3098 = vpack.c.b16 %v2918, %v2914
        %v3099 = vpack.c.b16 %v2919, %v2915
        %v3100 = vpack.c.b16 %v2924, %v2920
        %v3101 = vpack.c.b16 %v2925, %v2921
        %v3102 = vpack.c.b16 %v2926, %v2922
        %v3103 = vpack.c.b16 %v2927, %v2923
        %v3104 = vpack.c.b16 %v2932, %v2928
        %v3105 = vpack.c.b16 %v2933, %v2929
        %v3106 = vpack.c.b16 %v2934, %v2930
        %v3107 = vpack.c.b16 %v2935, %v2931
        %v3108 = vpack.c.b16 %v2940, %v2936
        %v3109 = vpack.c.b16 %v2941, %v2937
        %v3110 = vpack.c.b16 %v2942, %v2938
        %v3111 = vpack.c.b16 %v2943, %v2939
        %v3112 = vpack.c.b16 %v2948, %v2944
        %v3113 = vpack.c.b16 %v2949, %v2945
        %v3114 = vpack.c.b16 %v2950, %v2946
        %v3115 = vpack.c.b16 %v2951, %v2947
        %v3116 = vpack.c.b16 %v2956, %v2952
        %v3117 = vpack.c.b16 %v2957, %v2953
        %v3118 = vpack.c.b16 %v2958, %v2954
        %v3119 = vpack.c.b16 %v2959, %v2955
        %v3120 = vpack.c.b16 %v2964, %v2960
        %v3121 = vpack.c.b16 %v2965, %v2961
        %v3122 = vpack.c.b16 %v2966, %v2962
        %v3123 = vpack.c.b16 %v2967, %v2963
        %v3124 = vpack.c.b16 %v2972, %v2968
        %v3125 = vpack.c.b16 %v2973, %v2969
        %v3126 = vpack.c.b16 %v2974, %v2970
        %v3127 = vpack.c.b16 %v2975, %v2971
        %v3128 = vpack.c.b16 %v2980, %v2976
        %v3129 = vpack.c.b16 %v2981, %v2977
        %v3130 = vpack.c.b16 %v2982, %v2978
        %v3131 = vpack.c.b16 %v2983, %v2979
        %v3132 = vpack.c.b16 %v2988, %v2984
        %v3133 = vpack.c.b16 %v2989, %v2985
        %v3134 = vpack.c.b16 %v2990, %v2986
        %v3135 = vpack.c.b16 %v2991, %v2987
        %v3136 = vpack.c.b16 %v2996, %v2992
        %v3137 = vpack.c.b16 %v2997, %v2993
        %v3138 = vpack.c.b16 %v2998, %v2994
        %v3139 = vpack.c.b16 %v2999, %v2995
        %v3140 = vpack.c.b16 %v3004, %v3000
        %v3141 = vpack.c.b16 %v3005, %v3001
        %v3142 = vpack.c.b16 %v3006, %v3002
        %v3143 = vpack.c.b16 %v3007, %v3003
        %v3144 = vpack.c.b16 %v3012, %v3008
        %v3145 = vpack.c.b16 %v3013, %v3009
        %v3146 = vpack.c.b16 %v3014, %v3010
        %v3147 = vpack.c.b16 %v3015, %v3011
        %v3148 = vpack.c.b16 %v3020, %v3016
        %v3149 = vpack.c.b16 %v3021, %v3017
        %v3150 = vpack.c.b16 %v3022, %v3018
        %v3151 = vpack.c.b16 %v3023, %v3019
        %3280 = vmatprep.subr.bf16.mxu0 %v3025
        %3281 = vmatpush1.bf16.msra.mxu0 %v3024
        %3282 = vmatprep.subr.bf16.mxu0 %v3029
        %3283 = vmatpush1.bf16.msra.mxu0 %v3028
        %3284 = vmatprep.subr.bf16.mxu0 %v3033
        %3285 = vmatpush1.bf16.msra.mxu0 %v3032
        %3286 = vmatprep.subr.bf16.mxu0 %v3037
        %3287 = vmatpush1.bf16.msra.mxu0 %v3036
        %3288 = vmatprep.subr.bf16.mxu0 %v3041
        %3289 = vmatpush1.bf16.msra.mxu0 %v3040
        %3290 = vmatprep.subr.bf16.mxu0 %v3045
        %3291 = vmatpush1.bf16.msra.mxu0 %v3044
        %3292 = vmatprep.subr.bf16.mxu0 %v3049
        %3293 = vmatpush1.bf16.msra.mxu0 %v3048
        %3294 = vmatprep.subr.bf16.mxu0 %v3053
        %3295 = vmatpush1.bf16.msra.mxu0 %v3052
        %3296 = vmatprep.subr.bf16.mxu0 %v3057
        %3297 = vmatpush1.bf16.msra.mxu0 %v3056
        %3298 = vmatprep.subr.bf16.mxu0 %v3061
        %3299 = vmatpush1.bf16.msra.mxu0 %v3060
        %3300 = vmatprep.subr.bf16.mxu0 %v3065
        %3301 = vmatpush1.bf16.msra.mxu0 %v3064
        %3302 = vmatprep.subr.bf16.mxu0 %v3069
        %3303 = vmatpush1.bf16.msra.mxu0 %v3068
        %3304 = vmatprep.subr.bf16.mxu0 %v3073
        %3305 = vmatpush1.bf16.msra.mxu0 %v3072
        %3306 = vmatprep.subr.bf16.mxu0 %v3077
        %3307 = vmatpush1.bf16.msra.mxu0 %v3076
        %3308 = vmatprep.subr.bf16.mxu0 %v3081
        %3309 = vmatpush1.bf16.msra.mxu0 %v3080
        %3310 = vmatprep.subr.bf16.mxu0 %v3085
        %3311 = vmatpush1.bf16.msra.mxu0 %v3084
        %3312 = vmatprep.mubr.bf16.mxu0 %v577
        %3313 = vmatmul.mubr.bf16.gmra.mrb[0].mxu0 %v576
        %v3314 = vpop.f32.mrb[0].mxu0
        %v3315 = vadd.f32 0.0, %v3314
        %v3316 = vpop.f32.mrb[0].mxu0
        %v3317 = vadd.f32 0.0, %v3316
        %v3318 = vpop.f32.mrb[0].mxu0
        %v3319 = vpop.f32.mrb[0].mxu0
        %3320 = vdwg.mxu0
        %3321 = vmatprep.subr.bf16.mxu0 %v3089
        %3322 = vmatpush1.bf16.msra.mxu0 %v3088
        %3323 = vmatprep.subr.bf16.mxu0 %v3093
        %3324 = vmatpush1.bf16.msra.mxu0 %v3092
        %3325 = vmatprep.subr.bf16.mxu0 %v3097
        %3326 = vmatpush1.bf16.msra.mxu0 %v3096
        %3327 = vmatprep.subr.bf16.mxu0 %v3101
        %3328 = vmatpush1.bf16.msra.mxu0 %v3100
        %3329 = vmatprep.subr.bf16.mxu0 %v3105
        %3330 = vmatpush1.bf16.msra.mxu0 %v3104
        %3331 = vmatprep.subr.bf16.mxu0 %v3109
        %3332 = vmatpush1.bf16.msra.mxu0 %v3108
        %3333 = vmatprep.subr.bf16.mxu0 %v3113
        %3334 = vmatpush1.bf16.msra.mxu0 %v3112
        %3335 = vmatprep.subr.bf16.mxu0 %v3117
        %3336 = vmatpush1.bf16.msra.mxu0 %v3116
        %3337 = vmatprep.subr.bf16.mxu0 %v3121
        %3338 = vmatpush1.bf16.msra.mxu0 %v3120
        %3339 = vmatprep.subr.bf16.mxu0 %v3125
        %3340 = vmatpush1.bf16.msra.mxu0 %v3124
        %3341 = vmatprep.subr.bf16.mxu0 %v3129
        %3342 = vmatpush1.bf16.msra.mxu0 %v3128
        %3343 = vmatprep.subr.bf16.mxu0 %v3133
        %3344 = vmatpush1.bf16.msra.mxu0 %v3132
        %3345 = vmatprep.subr.bf16.mxu0 %v3137
        %3346 = vmatpush1.bf16.msra.mxu0 %v3136
        %3347 = vmatprep.subr.bf16.mxu0 %v3141
        %3348 = vmatpush1.bf16.msra.mxu0 %v3140
        %3349 = vmatprep.subr.bf16.mxu0 %v3145
        %3350 = vmatpush1.bf16.msra.mxu0 %v3144
        %3351 = vmatprep.subr.bf16.mxu0 %v3149
        %3352 = vmatpush1.bf16.msra.mxu0 %v3148
        %3353 = vmatprep.mubr.bf16.mxu0 %v579
        %3354 = vmatmul.mubr.bf16.gmra.mrb[0].mxu0 %v578
        %v3355 = vpop.f32.mrb[0].mxu0
        %v3356 = vadd.f32 %v3315, %v3355
        %v3357 = vpop.f32.mrb[0].mxu0
        %v3358 = vadd.f32 %v3317, %v3357
        %v3359 = vpop.f32.mrb[0].mxu0
        %v3360 = vpop.f32.mrb[0].mxu0
        %3361 = vdwg.mxu0
        %3362 = vmatprep.subr.bf16.mxu0 %v3027
        %3363 = vmatpush1.bf16.msra.mxu0 %v3026
        %3364 = vmatprep.subr.bf16.mxu0 %v3031
        %3365 = vmatpush1.bf16.msra.mxu0 %v3030
        %3366 = vmatprep.subr.bf16.mxu0 %v3035
        %3367 = vmatpush1.bf16.msra.mxu0 %v3034
        %3368 = vmatprep.subr.bf16.mxu0 %v3039
        %3369 = vmatpush1.bf16.msra.mxu0 %v3038
        %3370 = vmatprep.subr.bf16.mxu0 %v3043
        %3371 = vmatpush1.bf16.msra.mxu0 %v3042
        %3372 = vmatprep.subr.bf16.mxu0 %v3047
        %3373 = vmatpush1.bf16.msra.mxu0 %v3046
        %3374 = vmatprep.subr.bf16.mxu0 %v3051
        %3375 = vmatpush1.bf16.msra.mxu0 %v3050
        %3376 = vmatprep.subr.bf16.mxu0 %v3055
        %3377 = vmatpush1.bf16.msra.mxu0 %v3054
        %3378 = vmatprep.subr.bf16.mxu0 %v3059
        %3379 = vmatpush1.bf16.msra.mxu0 %v3058
        %3380 = vmatprep.subr.bf16.mxu0 %v3063
        %3381 = vmatpush1.bf16.msra.mxu0 %v3062
        %3382 = vmatprep.subr.bf16.mxu0 %v3067
        %3383 = vmatpush1.bf16.msra.mxu0 %v3066
        %3384 = vmatprep.subr.bf16.mxu0 %v3071
        %3385 = vmatpush1.bf16.msra.mxu0 %v3070
        %3386 = vmatprep.subr.bf16.mxu0 %v3075
        %3387 = vmatpush1.bf16.msra.mxu0 %v3074
        %3388 = vmatprep.subr.bf16.mxu0 %v3079
        %3389 = vmatpush1.bf16.msra.mxu0 %v3078
        %3390 = vmatprep.subr.bf16.mxu0 %v3083
        %3391 = vmatpush1.bf16.msra.mxu0 %v3082
        %3392 = vmatprep.subr.bf16.mxu0 %v3087
        %3393 = vmatpush1.bf16.msra.mxu0 %v3086
        %3394 = vmatprep.mubr.bf16.mxu0 %v577
        %3395 = vmatmul.mubr.bf16.gmra.mrb[0].mxu0 %v576
        %v3396 = vpop.f32.mrb[0].mxu0
        %v3397 = vadd.f32 0.0, %v3396
        %v3398 = vpop.f32.mrb[0].mxu0
        %v3399 = vadd.f32 0.0, %v3398
        %v3400 = vpop.f32.mrb[0].mxu0
        %v3401 = vpop.f32.mrb[0].mxu0
        %3402 = vdwg.mxu0
        %3403 = vmatprep.subr.bf16.mxu0 %v3091
        %3404 = vmatpush1.bf16.msra.mxu0 %v3090
        %3405 = vmatprep.subr.bf16.mxu0 %v3095
        %3406 = vmatpush1.bf16.msra.mxu0 %v3094
        %3407 = vmatprep.subr.bf16.mxu0 %v3099
        %3408 = vmatpush1.bf16.msra.mxu0 %v3098
        %3409 = vmatprep.subr.bf16.mxu0 %v3103
        %3410 = vmatpush1.bf16.msra.mxu0 %v3102
        %3411 = vmatprep.subr.bf16.mxu0 %v3107
        %3412 = vmatpush1.bf16.msra.mxu0 %v3106
        %3413 = vmatprep.subr.bf16.mxu0 %v3111
        %3414 = vmatpush1.bf16.msra.mxu0 %v3110
        %3415 = vmatprep.subr.bf16.mxu0 %v3115
        %3416 = vmatpush1.bf16.msra.mxu0 %v3114
        %3417 = vmatprep.subr.bf16.mxu0 %v3119
        %3418 = vmatpush1.bf16.msra.mxu0 %v3118
        %3419 = vmatprep.subr.bf16.mxu0 %v3123
        %3420 = vmatpush1.bf16.msra.mxu0 %v3122
        %3421 = vmatprep.subr.bf16.mxu0 %v3127
        %3422 = vmatpush1.bf16.msra.mxu0 %v3126
        %3423 = vmatprep.subr.bf16.mxu0 %v3131
        %3424 = vmatpush1.bf16.msra.mxu0 %v3130
        %3425 = vmatprep.subr.bf16.mxu0 %v3135
        %3426 = vmatpush1.bf16.msra.mxu0 %v3134
        %3427 = vmatprep.subr.bf16.mxu0 %v3139
        %3428 = vmatpush1.bf16.msra.mxu0 %v3138
        %3429 = vmatprep.subr.bf16.mxu0 %v3143
        %3430 = vmatpush1.bf16.msra.mxu0 %v3142
        %3431 = vmatprep.subr.bf16.mxu0 %v3147
        %3432 = vmatpush1.bf16.msra.mxu0 %v3146
        %3433 = vmatprep.subr.bf16.mxu0 %v3151
        %3434 = vmatpush1.bf16.msra.mxu0 %v3150
        %3435 = vmatprep.mubr.bf16.mxu0 %v579
        %3436 = vmatmul.mubr.bf16.gmra.mrb[0].mxu0 %v578
        %v3437 = vpop.f32.mrb[0].mxu0
        %v3438 = vadd.f32 %v3397, %v3437
        %v3439 = vpop.f32.mrb[0].mxu0
        %v3440 = vadd.f32 %v3399, %v3439
        %v3441 = vpop.f32.mrb[0].mxu0
        %v3442 = vpop.f32.mrb[0].mxu0
        %3443 = vdwg.mxu0
        %v3444 = vpack.c.bf16 %v3356, %v3356
        %v3445 = vpack.c.bf16 %v3358, %v3358
        %v3446 = vpack.c.bf16 %v3438, %v3438
        %v3447 = vpack.c.bf16 %v3440, %v3440
        %v3452 = vunpack.c.l.b16 %v3444
        %v3453 = vunpack.c.l.b16 %v3445
        %v3454 = vunpack.c.l.b16 %v3446
        %v3455 = vunpack.c.l.b16 %v3447
        %v3456 = vpack.c.b16 %v3453, %v3452
        %v3457 = vpack.c.b16 %v3455, %v3454
        %3460 = vst [vmem:[%s522] sm:$0xff] %v3456
        %3461 = vst [vmem:[%s522 + $0x8] sm:$0xff] %v3457
        %s3462 = sand.u32 %s243, 1
        %s3463 = scalar_lea.sflag [#allocation4], %s3462
        %s3464 = sand.u32 %s243, 1
        %s3465 = smul.addr %s3464, 16
        %s3466 = scalar_lea.vmem [#allocation14], %s3465
        %s3467 = sand.u32 %s33, 1
        %s3468 = scalar_lea.sflag [#allocation16], %s3467
        %s3469 = sand.u32 %s273, 1
        %s3470 = smul.addr %s3469, 16
        %s3471 = scalar_lea.vmem [#allocation15], %s3470
        %s3472 = sand.u32 %s33, 1
        %s3473 = scalar_lea.sflag [#allocation16], %s3472
        %s3474 = sand.u32 %s303, 1
        %s3475 = smul.addr %s3474, 16
        %s3476 = scalar_lea.vmem [#allocation17], %s3475
        // Predicated region
        $region77: #{tpu_custom_call.1} parent=47 // pred_check
          %p3477 = pneg %p253
        $region78: #{tpu_custom_call.1} parent=47 // pred_check_branch
          %3479 = sbr.rel (%p3477) target = $region80
        $region79: #{tpu_custom_call.1} parent=47 // pred_region
          %s3480 = smul.u32 4, %s38
          %s3482 = ssub.s32 256, 256
          %3483 = vsyncadd %s3463, %s3482
          %s3484 = smul.addr %s40, 4
          %s3485 = sadd.s32 %s3480, %s3484
          %s3486 = smul.addr %s39, 4
          %s3487 = sadd.s32 %s3485, %s3486
          %s3488 = smul.addr %s3487, 64
          %s3489 = scalar_lea.hbm %s7, %s3488
          %s3491 = sshll.u32 %s3466, 4
          %s3492 = int_to_ptr.vmem [resolvable:$true] %s3491
          %3494 = dma.vmem_to_hbm [thread:$0]  %s3492, 256, %s3489, %s3463
        $region80: #{tpu_custom_call.1} parent=47 // pred_fallthru
          _
        // Predicated region
        $region81: #{tpu_custom_call.1} parent=47 // pred_check
          %p3495 = pneg %p283
        $region82: #{tpu_custom_call.1} parent=47 // pred_check_branch
          %3497 = sbr.rel (%p3495) target = $region84
        $region83: #{tpu_custom_call.1} parent=47 // pred_region
          %s3498 = smul.u32 4, %s38
          %s3500 = ssub.s32 256, 256
          %3501 = vsyncadd %s3468, %s3500
          %s3502 = smul.addr %s40, 4
          %s3503 = sadd.s32 %s3498, %s3502
          %s3504 = smul.addr %s39, 4
          %s3505 = sadd.s32 %s3503, %s3504
          %s3506 = smul.addr %s3505, 64
          %s3507 = scalar_lea.hbm %s8, %s3506
          %s3509 = sshll.u32 %s3471, 4
          %s3510 = int_to_ptr.vmem [resolvable:$true] %s3509
          %3512 = dma.vmem_to_hbm [thread:$0]  %s3510, 256, %s3507, %s3468
        $region84: #{tpu_custom_call.1} parent=47 // pred_fallthru
          _
        // Predicated region
        $region85: #{tpu_custom_call.1} parent=47 // pred_check
          %p3513 = pneg %p313
        $region86: #{tpu_custom_call.1} parent=47 // pred_check_branch
          %3515 = sbr.rel (%p3513) target = $region88
        $region87: #{tpu_custom_call.1} parent=47 // pred_region
          %s3516 = smul.u32 4, %s38
          %s3518 = ssub.s32 256, 256
          %3519 = vsyncadd %s3473, %s3518
          %s3520 = smul.addr %s40, 4
          %s3521 = sadd.s32 %s3516, %s3520
          %s3522 = smul.addr %s39, 4
          %s3523 = sadd.s32 %s3521, %s3522
          %s3524 = smul.addr %s3523, 64
          %s3525 = scalar_lea.hbm %s9, %s3524
          %s3527 = sshll.u32 %s3476, 4
          %s3528 = int_to_ptr.vmem [resolvable:$true] %s3527
          %3530 = dma.vmem_to_hbm [thread:$0]  %s3528, 256, %s3525, %s3473
        $region88: #{tpu_custom_call.1} parent=47 // pred_fallthru
          _
      $region48: #{tpu_custom_call.1} parent=5 // pred_fallthru
        _
      %p3531 = scmp.le.s32.totalorder 2, %s28
      // Predicated region
      $region89: #{tpu_custom_call.1} parent=5 // pred_check
        %p3532 = pneg %p3531
      $region90: #{tpu_custom_call.1} parent=5 // pred_check_branch
        %3534 = sbr.rel (%p3532) target = $region92
      $region91: #{tpu_custom_call.1} parent=5 // pred_region
        %s3535 = ssub.s32 %s28, 2
        // Predicated region
        $region93: #{tpu_custom_call.1} parent=91 // pred_check
          %p3536 = pneg %p259
        $region94: #{tpu_custom_call.1} parent=91 // pred_check_branch
          %3538 = sbr.rel (%p3536) target = $region96
        $region95: #{tpu_custom_call.1} parent=91 // pred_region
          %s3539 = sand.u32 %s244, 1
          %s3540 = scalar_lea.sflag [#allocation4], %s3539
          %s3541 = sand.u32 %s244, 1
          %s3542 = smul.addr %s3541, 16
          %s3543 = scalar_lea.vmem [#allocation14], %s3542
          %3544 = dma.done %s3540, 256
        $region96: #{tpu_custom_call.1} parent=91 // pred_fallthru
          _
        // Predicated region
        $region97: #{tpu_custom_call.1} parent=91 // pred_check
          %p3545 = pneg %p289
        $region98: #{tpu_custom_call.1} parent=91 // pred_check_branch
          %3547 = sbr.rel (%p3545) target = $region100
        $region99: #{tpu_custom_call.1} parent=91 // pred_region
          %s3548 = sand.u32 %s34, 1
          %s3549 = scalar_lea.sflag [#allocation16], %s3548
          %s3550 = sand.u32 %s274, 1
          %s3551 = smul.addr %s3550, 16
          %s3552 = scalar_lea.vmem [#allocation15], %s3551
          %3553 = dma.done %s3549, 256
        $region100: #{tpu_custom_call.1} parent=91 // pred_fallthru
          _
        // Predicated region
        $region101: #{tpu_custom_call.1} parent=91 // pred_check
          %p3554 = pneg %p319
        $region102: #{tpu_custom_call.1} parent=91 // pred_check_branch
          %3556 = sbr.rel (%p3554) target = $region104
        $region103: #{tpu_custom_call.1} parent=91 // pred_region
          %s3557 = sand.u32 %s34, 1
          %s3558 = scalar_lea.sflag [#allocation16], %s3557
          %s3559 = sand.u32 %s304, 1
          %s3560 = smul.addr %s3559, 16
          %s3561 = scalar_lea.vmem [#allocation17], %s3560
          %3562 = dma.done %s3558, 256
        $region104: #{tpu_custom_call.1} parent=91 // pred_fallthru
          _
      $region92: #{tpu_custom_call.1} parent=5 // pred_fallthru
        _
    $region6: #{tpu_custom_call.1} parent=1 // loop_footer
      %s32 = sadd.s32 1, %s28
    $region7: #{tpu_custom_call.1} parent=1 // loop_footer_branch
      %27 = sbr.rel target = $region3
    $region8: #{tpu_custom_call.1} parent=1 // loop_exit
      _
    %3563 = vsyncpa [#allocation3], 1
    %s3564 = scalar_lea.sflag [#allocation3], 1
    %3565 = vsyncpa %s3564, 1
    %3566 = vsyncpa [#allocation6], 1
    %3567 = vsyncpa [#allocation9], 1
    %3568 = vsyncpa [#allocation12], 1
    %3569 = vsyncpa [#allocation4], 1
    %s3570 = scalar_lea.sflag [#allocation4], 1
    %3571 = vsyncpa %s3570, 1
    %3572 = vsyncpa [#allocation16], 1
    %s3573 = scalar_lea.sflag [#allocation16], 1
    %3574 = vsyncpa %s3573, 1

</llo_original>
